<compile_context>
chip_gen: v7x
topology: tpu7x:2x2x1
jax: 0.10.0
libtpu: 0.0.40
codegen_flags: <defaults>
</compile_context>

<pallas_src>
import jax
import jax.numpy as jnp
from jax.experimental import pallas as pl
from jax.experimental.pallas import tpu as pltpu


_VMEM_LIMIT = 48 * 1024 * 1024


def _round_up(x, m):
    return ((x + m - 1) // m) * m


# ----------------------------------------------------------------------------
# Pallas kernels
# ----------------------------------------------------------------------------
def _matmul_bias_kernel(x_ref, w_ref, b_ref, o_ref):
    """(tm,K)@(K,N) in bf16 on the MXU, f32 accumulate, + bias."""
    acc = jnp.dot(x_ref[...], w_ref[...], preferred_element_type=jnp.float32)
    o_ref[...] = (acc + b_ref[...]).astype(o_ref.dtype)


def _conv_bias_relu_pool_kernel(x_ref, w_ref, b_ref, o_ref):
    """Fused conv-as-matmul + bias + ReLU + 2x2 maxpool.

    x_ref: (4, tm, K) -- plane p holds the im2col rows of pool-window offset p
    (dy,dx); the four planes at the same row index form one 2x2 pool window.
    Uses max(relu(x_i + b)) == relu(max_i(x_i) + b) to pool before the epilogue.
    """
    w = w_ref[...]
    m0 = jnp.dot(x_ref[0], w, preferred_element_type=jnp.float32)
    m1 = jnp.dot(x_ref[1], w, preferred_element_type=jnp.float32)
    m2 = jnp.dot(x_ref[2], w, preferred_element_type=jnp.float32)
    m3 = jnp.dot(x_ref[3], w, preferred_element_type=jnp.float32)
    pooled = jnp.maximum(jnp.maximum(m0, m1), jnp.maximum(m2, m3))
    o_ref[...] = jnp.maximum(pooled + b_ref[...], 0.0).astype(o_ref.dtype)


# ----------------------------------------------------------------------------
# Wrappers (M-tiled, pipelined, weight resident)
# ----------------------------------------------------------------------------
def matmul_bias(x, w, b, *, out_dtype):
    M, K = x.shape
    K2, N = w.shape
    assert K == K2, (K, K2)
    tm = min(512, _round_up(M, 8))
    Mp = _round_up(M, tm)
    if Mp != M:
        x = jnp.pad(x, ((0, Mp - M), (0, 0)))
    x = x.astype(jnp.bfloat16)
    w = w.astype(jnp.bfloat16)
    b = b.astype(jnp.float32).reshape(1, N)

    out = pl.pallas_call(
        _matmul_bias_kernel,
        out_shape=jax.ShapeDtypeStruct((Mp, N), out_dtype),
        grid=(Mp // tm,),
        in_specs=[
            pl.BlockSpec((tm, K), lambda i: (i, 0)),
            pl.BlockSpec((K, N), lambda i: (0, 0)),     # weight resident across M tiles
            pl.BlockSpec((1, N), lambda i: (0, 0)),
        ],
        out_specs=pl.BlockSpec((tm, N), lambda i: (i, 0)),
        compiler_params=pltpu.CompilerParams(
            dimension_semantics=("parallel",),
            vmem_limit_bytes=_VMEM_LIMIT,
        ),
    )(x, w, b)
    return out[:M]


def _im2col_pool_planes(x, kh, kw, k_pad):
    """x: (N,H,W,C) -> (4, N*(H//2)*(W//2), k_pad) im2col patches.

    Plane 2*dy+dx holds the patch rows of conv-output pixels (2*ph+dy, 2*pw+dx).
    Patch element order is (ky, kx, cin), matching the HWIO weight reshape.
    """
    N, H, W, C = x.shape
    pad = kh // 2
    xp = jnp.pad(x, ((0, 0), (pad, pad), (pad, pad), (0, 0)))
    P = N * (H // 2) * (W // 2)
    planes = []
    for dy in range(2):
        for dx in range(2):
            cols = []
            for ky in range(kh):
                for kx in range(kw):
                    ys = dy + ky
                    xs = dx + kx
                    cols.append(xp[:, ys:ys + H - 1:2, xs:xs + W - 1:2, :])
            plane = jnp.stack(cols, axis=-2)            # (N, H/2, W/2, kh*kw, C)
            planes.append(plane.reshape(P, kh * kw * C))
    patches = jnp.stack(planes, axis=0)                 # (4, P, kh*kw*C)
    if k_pad > kh * kw * C:
        patches = jnp.pad(patches, ((0, 0), (0, 0), (0, k_pad - kh * kw * C)))
    return patches


def conv5x5_bias_relu_pool(x, wmat, b, *, out_dtype=jnp.bfloat16):
    """Conv2d(k=5, s=1, p=2) + ReLU + MaxPool2d(2,2), fused in one Pallas kernel."""
    N, H, W, _ = x.shape
    Kp, Cout = wmat.shape
    patches = _im2col_pool_planes(x, 5, 5, Kp).astype(jnp.bfloat16)
    P = N * (H // 2) * (W // 2)
    tm = min(512, _round_up(P, 8))
    Pp = _round_up(P, tm)
    if Pp != P:
        patches = jnp.pad(patches, ((0, 0), (0, Pp - P), (0, 0)))
    b = b.astype(jnp.float32).reshape(1, Cout)

    out = pl.pallas_call(
        _conv_bias_relu_pool_kernel,
        out_shape=jax.ShapeDtypeStruct((Pp, Cout), out_dtype),
        grid=(Pp // tm,),
        in_specs=[
            pl.BlockSpec((4, tm, Kp), lambda i: (0, i, 0)),
            pl.BlockSpec((Kp, Cout), lambda i: (0, 0)),  # weight resident
            pl.BlockSpec((1, Cout), lambda i: (0, 0)),
        ],
        out_specs=pl.BlockSpec((tm, Cout), lambda i: (i, 0)),
        compiler_params=pltpu.CompilerParams(
            dimension_semantics=("parallel",),
            vmem_limit_bytes=_VMEM_LIMIT,
        ),
    )(patches, wmat.astype(jnp.bfloat16), b)
    return out[:P].reshape(N, H // 2, W // 2, Cout)


# ----------------------------------------------------------------------------
# Parameters (PyTorch layouts -> one-time kernel-friendly layouts)
# ----------------------------------------------------------------------------
def init_torch_params(key, image_size):
    """Random parameters in PyTorch ConvNet layouts (OIHW conv, (out,in) linear)."""
    ks = jax.random.split(key, 8)
    s = image_size // 4
    fc1_in = s * s * 64
    init = lambda k, shape: 0.05 * jax.random.normal(k, shape, jnp.float32)
    return {
        "conv1_w": init(ks[0], (32, 1, 5, 5)),
        "conv1_b": init(ks[1], (32,)),
        "conv2_w": init(ks[2], (64, 32, 5, 5)),
        "conv2_b": init(ks[3], (64,)),
        "fc1_w": init(ks[4], (1000, fc1_in)),
        "fc1_b": init(ks[5], (1000,)),
        "fc2_w": init(ks[6], (10, 1000)),
        "fc2_b": init(ks[7], (10,)),
    }


def prepare_params(pt, image_size):
    """One-time, host-side conversion of PyTorch-layout params for the kernels."""
    s = image_size // 4

    def conv_mat(w_oihw, k_pad):
        cout, cin, kh, kw = w_oihw.shape
        m = jnp.transpose(w_oihw, (2, 3, 1, 0)).reshape(kh * kw * cin, cout)  # (ky,kx,cin)
        if k_pad > m.shape[0]:
            m = jnp.pad(m, ((0, k_pad - m.shape[0]), (0, 0)))
        return m.astype(jnp.bfloat16)

    # fc1: y = x @ W.T; permute weight rows from NCHW (c,h,w) flatten order to
    # NHWC (h,w,c) so no per-forward transpose is needed; pad 1000 -> 1024 cols.
    fc1 = jnp.transpose(pt["fc1_w"], (1, 0))                       # (fc1_in, 1000)
    fc1 = fc1.reshape(64, s, s, 1000).transpose(1, 2, 0, 3).reshape(-1, 1000)
    fc1 = jnp.pad(fc1, ((0, 0), (0, 24)))
    fc1_b = jnp.pad(pt["fc1_b"], (0, 24))

    # fc2: pad K 1000 -> 1024 (zero rows match fc1's zero pad columns) and pad
    # the 10 logits out to 128 lanes (sliced back to 10 after the kernel).
    fc2 = jnp.transpose(pt["fc2_w"], (1, 0))                       # (1000, 10)
    fc2 = jnp.pad(fc2, ((0, 24), (0, 118)))
    fc2_b = jnp.pad(pt["fc2_b"], (0, 118))

    return {
        "w1": conv_mat(pt["conv1_w"], 32),      # (32, 32): K padded 25 -> 32
        "b1": pt["conv1_b"].astype(jnp.float32),
        "w2": conv_mat(pt["conv2_w"], 800),     # (800, 64)
        "b2": pt["conv2_b"].astype(jnp.float32),
        "fc1_w": fc1.astype(jnp.bfloat16),
        "fc1_b": fc1_b.astype(jnp.float32),
        "fc2_w": fc2.astype(jnp.bfloat16),
        "fc2_b": fc2_b.astype(jnp.float32),
    }


# ----------------------------------------------------------------------------
# Forward pass (matches PyTorch ConvNet.forward semantics, inference mode)
# ----------------------------------------------------------------------------
def convnet_forward(params, x_nchw):
    x = jnp.transpose(x_nchw, (0, 2, 3, 1))                        # NCHW -> NHWC

    # layer1: Conv2d(1,32,5,s=1,p=2) + ReLU + MaxPool2d(2,2)  (fused)
    out = conv5x5_bias_relu_pool(x, params["w1"], params["b1"])
    # layer2: Conv2d(32,64,5,s=1,p=2) + ReLU + MaxPool2d(2,2) (fused)
    out = conv5x5_bias_relu_pool(out, params["w2"], params["b2"])

    n = out.shape[0]
    flat = out.reshape(n, -1)   # NHWC flatten; fc1_w rows were pre-permuted to match

    # TODO(synk): nn.Dropout(p=0.5) is identity at inference; training-mode
    # stochastic masking/scaling is not implemented here.

    h = matmul_bias(flat, params["fc1_w"], params["fc1_b"], out_dtype=jnp.bfloat16)
    logits = matmul_bias(h, params["fc2_w"], params["fc2_b"], out_dtype=jnp.float32)
    return logits[:, :10]


if __name__ == "__main__":
    image_size = 16       # small, divisible by 4 (FashionMNIST would be 28)
    batch = 2

    key = jax.random.PRNGKey(0)
    k_param, k_data = jax.random.split(key)
    params = prepare_params(init_torch_params(k_param, image_size), image_size)

    # PyTorch-style NCHW input: (N, 1, H, W)
    x = jax.random.normal(k_data, (batch, 1, image_size, image_size), jnp.float32)

    fwd = jax.jit(convnet_forward)
    logits = fwd(params, x)
    jax.block_until_ready(logits)

    assert logits.shape == (batch, 10), logits.shape
    assert logits.dtype == jnp.float32
    assert bool(jnp.all(jnp.isfinite(logits)))
    print("KERNEL_OK")
</pallas_src>

<mosaic_0001>
module attributes {stable_mosaic.version = 11 : i64} {
  func.func @_conv_bias_relu_pool_kernel(%arg0: i32, %arg1: memref<4x128x32xbf16, #tpu.memory_space<vmem>>, %arg2: memref<32x32xbf16, #tpu.memory_space<vmem>>, %arg3: memref<1x32xf32, #tpu.memory_space<vmem>>, %arg4: memref<128x32xbf16, #tpu.memory_space<vmem>>) attributes {dimension_semantics = [#tpu.dimension_semantics<parallel>], iteration_bounds = array<i64: 1>, scalar_prefetch = 0 : i64, scratch_operands = 0 : i64, tpu.core_type = #tpu.core_type<tc>, window_params = [{transform_indices = @transform_0, window_bounds = array<i64: 4, 128, 32>}, {pipeline_mode = #tpu.pipeline_mode<synchronous>, transform_indices = @transform_1, window_bounds = array<i64: 32, 32>}, {pipeline_mode = #tpu.pipeline_mode<synchronous>, transform_indices = @transform_2, window_bounds = array<i64: 1, 32>}, {transform_indices = @transform_3, window_bounds = array<i64: 128, 32>}]} {
    %c0 = arith.constant 0 : index
    %c0_0 = arith.constant 0 : index
    %0 = vector.load %arg2[%c0, %c0_0] : memref<32x32xbf16, #tpu.memory_space<vmem>>, vector<32x32xbf16>
    %c0_1 = arith.constant 0 : index
    %c0_2 = arith.constant 0 : index
    %c0_3 = arith.constant 0 : index
    %1 = vector.load %arg1[%c0_1, %c0_2, %c0_3] : memref<4x128x32xbf16, #tpu.memory_space<vmem>>, vector<1x128x32xbf16>
    %2 = vector.shape_cast %1 : vector<1x128x32xbf16> to vector<128x32xbf16>
    %cst = arith.constant dense<0.000000e+00> : vector<128x32xf32>
    %3 = tpu.matmul %2, %0, %cst {dimension_numbers = #tpu.dot_dimension_numbers<[1], [0], [0], [1], [0, 0, 1, 1], [], []>} : vector<128x32xbf16>, vector<32x32xbf16>, vector<128x32xf32> -> vector<128x32xf32>
    %c1 = arith.constant 1 : index
    %c0_4 = arith.constant 0 : index
    %c0_5 = arith.constant 0 : index
    %4 = vector.load %arg1[%c1, %c0_4, %c0_5] : memref<4x128x32xbf16, #tpu.memory_space<vmem>>, vector<1x128x32xbf16>
    %5 = vector.shape_cast %4 : vector<1x128x32xbf16> to vector<128x32xbf16>
    %cst_6 = arith.constant dense<0.000000e+00> : vector<128x32xf32>
    %6 = tpu.matmul %5, %0, %cst_6 {dimension_numbers = #tpu.dot_dimension_numbers<[1], [0], [0], [1], [0, 0, 1, 1], [], []>} : vector<128x32xbf16>, vector<32x32xbf16>, vector<128x32xf32> -> vector<128x32xf32>
    %c2 = arith.constant 2 : index
    %c0_7 = arith.constant 0 : index
    %c0_8 = arith.constant 0 : index
    %7 = vector.load %arg1[%c2, %c0_7, %c0_8] : memref<4x128x32xbf16, #tpu.memory_space<vmem>>, vector<1x128x32xbf16>
    %8 = vector.shape_cast %7 : vector<1x128x32xbf16> to vector<128x32xbf16>
    %cst_9 = arith.constant dense<0.000000e+00> : vector<128x32xf32>
    %9 = tpu.matmul %8, %0, %cst_9 {dimension_numbers = #tpu.dot_dimension_numbers<[1], [0], [0], [1], [0, 0, 1, 1], [], []>} : vector<128x32xbf16>, vector<32x32xbf16>, vector<128x32xf32> -> vector<128x32xf32>
    %c3 = arith.constant 3 : index
    %c0_10 = arith.constant 0 : index
    %c0_11 = arith.constant 0 : index
    %10 = vector.load %arg1[%c3, %c0_10, %c0_11] : memref<4x128x32xbf16, #tpu.memory_space<vmem>>, vector<1x128x32xbf16>
    %11 = vector.shape_cast %10 : vector<1x128x32xbf16> to vector<128x32xbf16>
    %cst_12 = arith.constant dense<0.000000e+00> : vector<128x32xf32>
    %12 = tpu.matmul %11, %0, %cst_12 {dimension_numbers = #tpu.dot_dimension_numbers<[1], [0], [0], [1], [0, 0, 1, 1], [], []>} : vector<128x32xbf16>, vector<32x32xbf16>, vector<128x32xf32> -> vector<128x32xf32>
    %13 = arith.maximumf %3, %6 : vector<128x32xf32>
    %14 = arith.maximumf %9, %12 : vector<128x32xf32>
    %15 = arith.maximumf %13, %14 : vector<128x32xf32>
    %c0_13 = arith.constant 0 : index
    %c0_14 = arith.constant 0 : index
    %16 = vector.load %arg3[%c0_13, %c0_14] : memref<1x32xf32, #tpu.memory_space<vmem>>, vector<1x32xf32>
    %17 = vector.broadcast %16 : vector<1x32xf32> to vector<128x32xf32>
    %18 = arith.addf %15, %17 : vector<128x32xf32>
    %cst_15 = arith.constant 0.000000e+00 : f32
    %19 = vector.broadcast %cst_15 : f32 to vector<128x32xf32>
    %20 = arith.maximumf %18, %19 : vector<128x32xf32>
    %21 = arith.truncf %20 : vector<128x32xf32> to vector<128x32xbf16>
    %c0_16 = arith.constant 0 : index
    %c0_17 = arith.constant 0 : index
    %22 = vector.load %arg4[%c0_16, %c0_17] : memref<128x32xbf16, #tpu.memory_space<vmem>>, vector<128x32xbf16>
    tpu.vector_store %arg4[%c0_16, %c0_17], %21 {strides = array<i32>} : memref<128x32xbf16, #tpu.memory_space<vmem>>, vector<128x32xbf16>,
    return
  }
  func.func @transform_0(%arg0: i32) -> (i32, i32, i32) {
    %c0_i32 = arith.constant 0 : i32
    %c0_i32_0 = arith.constant 0 : i32
    %c0_i32_1 = arith.constant 0 : i32
    return %c0_i32, %arg0, %c0_i32_0 : i32, i32, i32
  }
  func.func @transform_1(%arg0: i32) -> (i32, i32) {
    %c0_i32 = arith.constant 0 : i32
    %c0_i32_0 = arith.constant 0 : i32
    %c0_i32_1 = arith.constant 0 : i32
    return %c0_i32, %c0_i32_0 : i32, i32
  }
  func.func @transform_2(%arg0: i32) -> (i32, i32) {
    %c0_i32 = arith.constant 0 : i32
    %c0_i32_0 = arith.constant 0 : i32
    %c0_i32_1 = arith.constant 0 : i32
    return %c0_i32, %c0_i32_0 : i32, i32
  }
  func.func @transform_3(%arg0: i32) -> (i32, i32) {
    %c0_i32 = arith.constant 0 : i32
    %c0_i32_0 = arith.constant 0 : i32
    return %arg0, %c0_i32 : i32, i32
  }
}

module attributes {stable_mosaic.version = 11 : i64} {
  func.func @_conv_bias_relu_pool_kernel(%arg0: i32, %arg1: memref<4x32x800xbf16, #tpu.memory_space<vmem>>, %arg2: memref<800x64xbf16, #tpu.memory_space<vmem>>, %arg3: memref<1x64xf32, #tpu.memory_space<vmem>>, %arg4: memref<32x64xbf16, #tpu.memory_space<vmem>>) attributes {dimension_semantics = [#tpu.dimension_semantics<parallel>], iteration_bounds = array<i64: 1>, scalar_prefetch = 0 : i64, scratch_operands = 0 : i64, tpu.core_type = #tpu.core_type<tc>, window_params = [{transform_indices = @transform_0, window_bounds = array<i64: 4, 32, 800>}, {pipeline_mode = #tpu.pipeline_mode<synchronous>, transform_indices = @transform_1, window_bounds = array<i64: 800, 64>}, {pipeline_mode = #tpu.pipeline_mode<synchronous>, transform_indices = @transform_2, window_bounds = array<i64: 1, 64>}, {transform_indices = @transform_3, window_bounds = array<i64: 32, 64>}]} {
    %c0 = arith.constant 0 : index
    %c0_0 = arith.constant 0 : index
    %0 = vector.load %arg2[%c0, %c0_0] : memref<800x64xbf16, #tpu.memory_space<vmem>>, vector<800x64xbf16>
    %c0_1 = arith.constant 0 : index
    %c0_2 = arith.constant 0 : index
    %c0_3 = arith.constant 0 : index
    %1 = vector.load %arg1[%c0_1, %c0_2, %c0_3] : memref<4x32x800xbf16, #tpu.memory_space<vmem>>, vector<1x32x800xbf16>
    %2 = vector.shape_cast %1 : vector<1x32x800xbf16> to vector<32x800xbf16>
    %cst = arith.constant dense<0.000000e+00> : vector<32x64xf32>
    %3 = tpu.matmul %2, %0, %cst {dimension_numbers = #tpu.dot_dimension_numbers<[1], [0], [0], [1], [0, 0, 1, 1], [], []>} : vector<32x800xbf16>, vector<800x64xbf16>, vector<32x64xf32> -> vector<32x64xf32>
    %c1 = arith.constant 1 : index
    %c0_4 = arith.constant 0 : index
    %c0_5 = arith.constant 0 : index
    %4 = vector.load %arg1[%c1, %c0_4, %c0_5] : memref<4x32x800xbf16, #tpu.memory_space<vmem>>, vector<1x32x800xbf16>
    %5 = vector.shape_cast %4 : vector<1x32x800xbf16> to vector<32x800xbf16>
    %cst_6 = arith.constant dense<0.000000e+00> : vector<32x64xf32>
    %6 = tpu.matmul %5, %0, %cst_6 {dimension_numbers = #tpu.dot_dimension_numbers<[1], [0], [0], [1], [0, 0, 1, 1], [], []>} : vector<32x800xbf16>, vector<800x64xbf16>, vector<32x64xf32> -> vector<32x64xf32>
    %c2 = arith.constant 2 : index
    %c0_7 = arith.constant 0 : index
    %c0_8 = arith.constant 0 : index
    %7 = vector.load %arg1[%c2, %c0_7, %c0_8] : memref<4x32x800xbf16, #tpu.memory_space<vmem>>, vector<1x32x800xbf16>
    %8 = vector.shape_cast %7 : vector<1x32x800xbf16> to vector<32x800xbf16>
    %cst_9 = arith.constant dense<0.000000e+00> : vector<32x64xf32>
    %9 = tpu.matmul %8, %0, %cst_9 {dimension_numbers = #tpu.dot_dimension_numbers<[1], [0], [0], [1], [0, 0, 1, 1], [], []>} : vector<32x800xbf16>, vector<800x64xbf16>, vector<32x64xf32> -> vector<32x64xf32>
    %c3 = arith.constant 3 : index
    %c0_10 = arith.constant 0 : index
    %c0_11 = arith.constant 0 : index
    %10 = vector.load %arg1[%c3, %c0_10, %c0_11] : memref<4x32x800xbf16, #tpu.memory_space<vmem>>, vector<1x32x800xbf16>
    %11 = vector.shape_cast %10 : vector<1x32x800xbf16> to vector<32x800xbf16>
    %cst_12 = arith.constant dense<0.000000e+00> : vector<32x64xf32>
    %12 = tpu.matmul %11, %0, %cst_12 {dimension_numbers = #tpu.dot_dimension_numbers<[1], [0], [0], [1], [0, 0, 1, 1], [], []>} : vector<32x800xbf16>, vector<800x64xbf16>, vector<32x64xf32> -> vector<32x64xf32>
    %13 = arith.maximumf %3, %6 : vector<32x64xf32>
    %14 = arith.maximumf %9, %12 : vector<32x64xf32>
    %15 = arith.maximumf %13, %14 : vector<32x64xf32>
    %c0_13 = arith.constant 0 : index
    %c0_14 = arith.constant 0 : index
    %16 = vector.load %arg3[%c0_13, %c0_14] : memref<1x64xf32, #tpu.memory_space<vmem>>, vector<1x64xf32>
    %17 = vector.broadcast %16 : vector<1x64xf32> to vector<32x64xf32>
    %18 = arith.addf %15, %17 : vector<32x64xf32>
    %cst_15 = arith.constant 0.000000e+00 : f32
    %19 = vector.broadcast %cst_15 : f32 to vector<32x64xf32>
    %20 = arith.maximumf %18, %19 : vector<32x64xf32>
    %21 = arith.truncf %20 : vector<32x64xf32> to vector<32x64xbf16>
    %c0_16 = arith.constant 0 : index
    %c0_17 = arith.constant 0 : index
    %22 = vector.load %arg4[%c0_16, %c0_17] : memref<32x64xbf16, #tpu.memory_space<vmem>>, vector<32x64xbf16>
    tpu.vector_store %arg4[%c0_16, %c0_17], %21 {strides = array<i32>} : memref<32x64xbf16, #tpu.memory_space<vmem>>, vector<32x64xbf16>,
    return
  }
  func.func @transform_0(%arg0: i32) -> (i32, i32, i32) {
    %c0_i32 = arith.constant 0 : i32
    %c0_i32_0 = arith.constant 0 : i32
    %c0_i32_1 = arith.constant 0 : i32
    return %c0_i32, %arg0, %c0_i32_0 : i32, i32, i32
  }
  func.func @transform_1(%arg0: i32) -> (i32, i32) {
    %c0_i32 = arith.constant 0 : i32
    %c0_i32_0 = arith.constant 0 : i32
    %c0_i32_1 = arith.constant 0 : i32
    return %c0_i32, %c0_i32_0 : i32, i32
  }
  func.func @transform_2(%arg0: i32) -> (i32, i32) {
    %c0_i32 = arith.constant 0 : i32
    %c0_i32_0 = arith.constant 0 : i32
    %c0_i32_1 = arith.constant 0 : i32
    return %c0_i32, %c0_i32_0 : i32, i32
  }
  func.func @transform_3(%arg0: i32) -> (i32, i32) {
    %c0_i32 = arith.constant 0 : i32
    %c0_i32_0 = arith.constant 0 : i32
    return %arg0, %c0_i32 : i32, i32
  }
}

module attributes {stable_mosaic.version = 11 : i64} {
  func.func @_matmul_bias_kernel(%arg0: i32, %arg1: memref<8x1024xbf16, #tpu.memory_space<vmem>>, %arg2: memref<1024x128xbf16, #tpu.memory_space<vmem>>, %arg3: memref<1x128xf32, #tpu.memory_space<vmem>>, %arg4: memref<8x128xf32, #tpu.memory_space<vmem>>) attributes {dimension_semantics = [#tpu.dimension_semantics<parallel>], iteration_bounds = array<i64: 1>, scalar_prefetch = 0 : i64, scratch_operands = 0 : i64, tpu.core_type = #tpu.core_type<tc>, window_params = [{transform_indices = @transform_0, window_bounds = array<i64: 8, 1024>}, {pipeline_mode = #tpu.pipeline_mode<synchronous>, transform_indices = @transform_1, window_bounds = array<i64: 1024, 128>}, {pipeline_mode = #tpu.pipeline_mode<synchronous>, transform_indices = @transform_2, window_bounds = array<i64: 1, 128>}, {transform_indices = @transform_3, window_bounds = array<i64: 8, 128>}]} {
    %c0 = arith.constant 0 : index
    %c0_0 = arith.constant 0 : index
    %0 = vector.load %arg1[%c0, %c0_0] : memref<8x1024xbf16, #tpu.memory_space<vmem>>, vector<8x1024xbf16>
    %c0_1 = arith.constant 0 : index
    %c0_2 = arith.constant 0 : index
    %1 = vector.load %arg2[%c0_1, %c0_2] : memref<1024x128xbf16, #tpu.memory_space<vmem>>, vector<1024x128xbf16>
    %cst = arith.constant dense<0.000000e+00> : vector<8x128xf32>
    %2 = tpu.matmul %0, %1, %cst {dimension_numbers = #tpu.dot_dimension_numbers<[1], [0], [0], [1], [0, 0, 1, 1], [], []>} : vector<8x1024xbf16>, vector<1024x128xbf16>, vector<8x128xf32> -> vector<8x128xf32>
    %c0_3 = arith.constant 0 : index
    %c0_4 = arith.constant 0 : index
    %3 = vector.load %arg3[%c0_3, %c0_4] : memref<1x128xf32, #tpu.memory_space<vmem>>, vector<1x128xf32>
    %4 = vector.broadcast %3 : vector<1x128xf32> to vector<8x128xf32>
    %5 = arith.addf %2, %4 : vector<8x128xf32>
    %c0_5 = arith.constant 0 : index
    %c0_6 = arith.constant 0 : index
    %6 = vector.load %arg4[%c0_5, %c0_6] : memref<8x128xf32, #tpu.memory_space<vmem>>, vector<8x128xf32>
    tpu.vector_store %arg4[%c0_5, %c0_6], %5 {strides = array<i32>} : memref<8x128xf32, #tpu.memory_space<vmem>>, vector<8x128xf32>,
    return
  }
  func.func @transform_0(%arg0: i32) -> (i32, i32) {
    %c0_i32 = arith.constant 0 : i32
    %c0_i32_0 = arith.constant 0 : i32
    return %arg0, %c0_i32 : i32, i32
  }
  func.func @transform_1(%arg0: i32) -> (i32, i32) {
    %c0_i32 = arith.constant 0 : i32
    %c0_i32_0 = arith.constant 0 : i32
    %c0_i32_1 = arith.constant 0 : i32
    return %c0_i32, %c0_i32_0 : i32, i32
  }
  func.func @transform_2(%arg0: i32) -> (i32, i32) {
    %c0_i32 = arith.constant 0 : i32
    %c0_i32_0 = arith.constant 0 : i32
    %c0_i32_1 = arith.constant 0 : i32
    return %c0_i32, %c0_i32_0 : i32, i32
  }
  func.func @transform_3(%arg0: i32) -> (i32, i32) {
    %c0_i32 = arith.constant 0 : i32
    %c0_i32_0 = arith.constant 0 : i32
    return %arg0, %c0_i32 : i32, i32
  }
}

module attributes {stable_mosaic.version = 11 : i64} {
  func.func @_matmul_bias_kernel(%arg0: i32, %arg1: memref<8x1024xbf16, #tpu.memory_space<vmem>>, %arg2: memref<1024x1024xbf16, #tpu.memory_space<vmem>>, %arg3: memref<1x1024xf32, #tpu.memory_space<vmem>>, %arg4: memref<8x1024xbf16, #tpu.memory_space<vmem>>) attributes {dimension_semantics = [#tpu.dimension_semantics<parallel>], iteration_bounds = array<i64: 1>, scalar_prefetch = 0 : i64, scratch_operands = 0 : i64, tpu.core_type = #tpu.core_type<tc>, window_params = [{transform_indices = @transform_0, window_bounds = array<i64: 8, 1024>}, {pipeline_mode = #tpu.pipeline_mode<synchronous>, transform_indices = @transform_1, window_bounds = array<i64: 1024, 1024>}, {pipeline_mode = #tpu.pipeline_mode<synchronous>, transform_indices = @transform_2, window_bounds = array<i64: 1, 1024>}, {transform_indices = @transform_3, window_bounds = array<i64: 8, 1024>}]} {
    %c0 = arith.constant 0 : index
    %c0_0 = arith.constant 0 : index
    %0 = vector.load %arg1[%c0, %c0_0] : memref<8x1024xbf16, #tpu.memory_space<vmem>>, vector<8x1024xbf16>
    %c0_1 = arith.constant 0 : index
    %c0_2 = arith.constant 0 : index
    %1 = vector.load %arg2[%c0_1, %c0_2] : memref<1024x1024xbf16, #tpu.memory_space<vmem>>, vector<1024x1024xbf16>
    %cst = arith.constant dense<0.000000e+00> : vector<8x1024xf32>
    %2 = tpu.matmul %0, %1, %cst {dimension_numbers = #tpu.dot_dimension_numbers<[1], [0], [0], [1], [0, 0, 1, 1], [], []>} : vector<8x1024xbf16>, vector<1024x1024xbf16>, vector<8x1024xf32> -> vector<8x1024xf32>
    %c0_3 = arith.constant 0 : index
    %c0_4 = arith.constant 0 : index
    %3 = vector.load %arg3[%c0_3, %c0_4] : memref<1x1024xf32, #tpu.memory_space<vmem>>, vector<1x1024xf32>
    %4 = vector.broadcast %3 : vector<1x1024xf32> to vector<8x1024xf32>
    %5 = arith.addf %2, %4 : vector<8x1024xf32>
    %6 = arith.truncf %5 : vector<8x1024xf32> to vector<8x1024xbf16>
    %c0_5 = arith.constant 0 : index
    %c0_6 = arith.constant 0 : index
    %7 = vector.load %arg4[%c0_5, %c0_6] : memref<8x1024xbf16, #tpu.memory_space<vmem>>, vector<8x1024xbf16>
    tpu.vector_store %arg4[%c0_5, %c0_6], %6 {strides = array<i32>} : memref<8x1024xbf16, #tpu.memory_space<vmem>>, vector<8x1024xbf16>,
    return
  }
  func.func @transform_0(%arg0: i32) -> (i32, i32) {
    %c0_i32 = arith.constant 0 : i32
    %c0_i32_0 = arith.constant 0 : i32
    return %arg0, %c0_i32 : i32, i32
  }
  func.func @transform_1(%arg0: i32) -> (i32, i32) {
    %c0_i32 = arith.constant 0 : i32
    %c0_i32_0 = arith.constant 0 : i32
    %c0_i32_1 = arith.constant 0 : i32
    return %c0_i32, %c0_i32_0 : i32, i32
  }
  func.func @transform_2(%arg0: i32) -> (i32, i32) {
    %c0_i32 = arith.constant 0 : i32
    %c0_i32_0 = arith.constant 0 : i32
    %c0_i32_1 = arith.constant 0 : i32
    return %c0_i32, %c0_i32_0 : i32, i32
  }
  func.func @transform_3(%arg0: i32) -> (i32, i32) {
    %c0_i32 = arith.constant 0 : i32
    %c0_i32_0 = arith.constant 0 : i32
    return %arg0, %c0_i32 : i32, i32
  }
}

</mosaic_0001>

<llo_original>
// kernel: convnet_forward.4
$region0: #{convnet_forward.4}
  #allocation0 [shape = 'u32[]', space=smem, size = 0x4, offset = 0x4, fixed_abs, tag = 'smem constant byte address 0x4 - core index']
  #allocation1 [shape = 'u32[144,128]{1,0:T(1,128)}', space=vmem, size = 0x12000, scoped, tag = 'internal scratch']
  %s0 = inlined_call_operand.vmem [shape: bf16[4,128,32], index: 0, kind: input, shape index: {}]
  %s1 = inlined_call_operand.hbm [shape: bf16[32,32], index: 1, kind: input, shape index: {}]
  %s2 = inlined_call_operand.hbm [shape: f32[1,32], index: 2, kind: input, shape index: {}]
  %s3 = inlined_call_operand.vmem [shape: bf16[128,32], index: 3, kind: output, shape index: {}]
  %s4 = sld [smem:[#allocation0]]
  $region30: #{convnet_forward.4} parent=0
    _
  %s6 = ssub.s32 1, %s4
  %s7 = scalar_select 0, %s6, %s4
  $region1: #{convnet_forward.4} parent=0
    #allocation2 [shape = 'u8[8192]{0}', space=vmem, size = 0x2000, scoped, tag = 'input window, operand 1, single buffered']
    #allocation3 [shape = 's32[1]{0}', space=sflag, size = 0x4, scoped, tag = 'scoped memory for convnet_forward.4']
    #allocation4 [shape = 'u8[512]{0}', space=vmem, size = 0x400, scoped, tag = 'input window, operand 2, single buffered']
    #allocation5 [shape = 's32[1]{0}', space=sflag, size = 0x4, scoped, tag = 'scoped memory for convnet_forward.4']
    %8 = vsyncpa [#allocation3], 0
    %9 = vsyncpa [#allocation5], 0
    // Predicated region
    $region2: #{convnet_forward.4} parent=1 // pred_check
      _
    $region3: #{convnet_forward.4} parent=1 // pred_check_branch
      %11 = sbr.rel (0) target = $region5
    $region4: #{convnet_forward.4} parent=1 // pred_region
      _
    $region5: #{convnet_forward.4} parent=1 // pred_fallthru
      _
    // Predicated region
    $region6: #{convnet_forward.4} parent=1 // pred_check
      _
    $region7: #{convnet_forward.4} parent=1 // pred_check_branch
      %13 = sbr.rel (0) target = $region9
    $region8: #{convnet_forward.4} parent=1 // pred_region
      %s15 = ssub.s32 256, 256
      %16 = vsyncadd [#allocation3], %s15
      %s17 = sshll.u32 [#allocation2], 4
      %s18 = int_to_ptr.vmem [resolvable:$true] %s17
      %23 = dma.hbm_to_vmem [thread:$0]  %s1, 256, %s18, [#allocation3], 64, 64, 4
    $region9: #{convnet_forward.4} parent=1 // pred_fallthru
      _
    // Predicated region
    $region10: #{convnet_forward.4} parent=1 // pred_check
      _
    $region11: #{convnet_forward.4} parent=1 // pred_check_branch
      %25 = sbr.rel (0) target = $region13
    $region12: #{convnet_forward.4} parent=1 // pred_region
      %s27 = ssub.s32 16, 16
      %28 = vsyncadd [#allocation5], %s27
      %s30 = sshll.u32 [#allocation4], 4
      %s31 = int_to_ptr.vmem [resolvable:$true] %s30
      %33 = dma.hbm_to_vmem [thread:$0]  %s2, 16, %s31, [#allocation5]
    $region13: #{convnet_forward.4} parent=1 // pred_fallthru
      _
    // Predicated region
    $region14: #{convnet_forward.4} parent=1 // pred_check
      _
    $region15: #{convnet_forward.4} parent=1 // pred_check_branch
      %35 = sbr.rel (0) target = $region17
    $region16: #{convnet_forward.4} parent=1 // pred_region
      %36 = dma.done [#allocation3], 256
    $region17: #{convnet_forward.4} parent=1 // pred_fallthru
      _
    // Predicated region
    $region18: #{convnet_forward.4} parent=1 // pred_check
      _
    $region19: #{convnet_forward.4} parent=1 // pred_check_branch
      %38 = sbr.rel (0) target = $region21
    $region20: #{convnet_forward.4} parent=1 // pred_region
      %39 = dma.done [#allocation5], 16
    $region21: #{convnet_forward.4} parent=1 // pred_fallthru
      _
    %v41 = vld [vmem:[#allocation2] sm:$0xf]
    %v42 = vld [vmem:[#allocation2 + $0x4] sm:$0xf]
    %v43 = vld [vmem:[#allocation2 + $0x8] sm:$0xf]
    %v44 = vld [vmem:[#allocation2 + $0xc] sm:$0xf]
    %v45 = vld [vmem:[%s0] sm:$0xf]
    %v46 = vld [vmem:[%s0 + $0x4] sm:$0xf]
    %v47 = vld [vmem:[%s0 + $0x8] sm:$0xf]
    %v48 = vld [vmem:[%s0 + $0xc] sm:$0xf]
    %v49 = vld [vmem:[%s0 + $0x10] sm:$0xf]
    %v50 = vld [vmem:[%s0 + $0x14] sm:$0xf]
    %v51 = vld [vmem:[%s0 + $0x18] sm:$0xf]
    %v52 = vld [vmem:[%s0 + $0x1c] sm:$0xf]
    %v53 = vld [vmem:[%s0 + $0x20] sm:$0xf]
    %v54 = vld [vmem:[%s0 + $0x24] sm:$0xf]
    %v55 = vld [vmem:[%s0 + $0x28] sm:$0xf]
    %v56 = vld [vmem:[%s0 + $0x2c] sm:$0xf]
    %v57 = vld [vmem:[%s0 + $0x30] sm:$0xf]
    %v58 = vld [vmem:[%s0 + $0x34] sm:$0xf]
    %v59 = vld [vmem:[%s0 + $0x38] sm:$0xf]
    %v60 = vld [vmem:[%s0 + $0x3c] sm:$0xf]
    %v77 = vunpack.c.l.b16 %v45
    %v78 = vunpack.c.l.b16 %v46
    %v79 = vunpack.c.l.b16 %v47
    %v80 = vunpack.c.l.b16 %v48
    %v81 = vunpack.c.l.b16 %v49
    %v82 = vunpack.c.l.b16 %v50
    %v83 = vunpack.c.l.b16 %v51
    %v84 = vunpack.c.l.b16 %v52
    %v85 = vunpack.c.l.b16 %v53
    %v86 = vunpack.c.l.b16 %v54
    %v87 = vunpack.c.l.b16 %v55
    %v88 = vunpack.c.l.b16 %v56
    %v89 = vunpack.c.l.b16 %v57
    %v90 = vunpack.c.l.b16 %v58
    %v91 = vunpack.c.l.b16 %v59
    %v92 = vunpack.c.l.b16 %v60
    %v93 = vpack.c.b16 %v78, %v77
    %v94 = vpack.c.b16 %v80, %v79
    %v95 = vpack.c.b16 %v82, %v81
    %v96 = vpack.c.b16 %v84, %v83
    %v97 = vpack.c.b16 %v86, %v85
    %v98 = vpack.c.b16 %v88, %v87
    %v99 = vpack.c.b16 %v90, %v89
    %v100 = vpack.c.b16 %v92, %v91
    %v105 = vunpack.c.l.b16 %v41
    %v106 = vunpack.c.l.b16 %v42
    %v107 = vunpack.c.l.b16 %v43
    %v108 = vunpack.c.l.b16 %v44
    %v109 = vpack.c.b16 %v106, %v105
    %v110 = vpack.c.b16 %v108, %v107
    %vm113 = vcmask 261120
    %v115 = vsel %vm113, %v93, 0
    %v118 = vsel %vm113, %v94, 0
    %v121 = vsel %vm113, %v95, 0
    %v124 = vsel %vm113, %v96, 0
    %v127 = vsel %vm113, %v97, 0
    %v130 = vsel %vm113, %v98, 0
    %v133 = vsel %vm113, %v99, 0
    %v136 = vsel %vm113, %v100, 0
    %138 = vmatprep.subr.bf16.mxu0 0
    %139 = vmatpush1.bf16.msra.mxu0 %v109
    %140 = vmatprep.subr.bf16.mxu0 0
    %141 = vmatpush1.bf16.msra.mxu0 %v110
    %142 = vmatprep.subr.bf16.mxu0 0
    %143 = vmatpush1.bf16.msra.mxu0 0
    %144 = vmatprep.subr.bf16.mxu0 0
    %145 = vmatpush1.bf16.msra.mxu0 0
    %146 = vmatprep.subr.bf16.mxu0 0
    %147 = vmatpush1.bf16.msra.mxu0 0
    %148 = vmatprep.subr.bf16.mxu0 0
    %149 = vmatpush1.bf16.msra.mxu0 0
    %150 = vmatprep.subr.bf16.mxu0 0
    %151 = vmatpush1.bf16.msra.mxu0 0
    %152 = vmatprep.subr.bf16.mxu0 0
    %153 = vmatpush1.bf16.msra.mxu0 0
    %154 = vmatprep.subr.bf16.mxu0 0
    %155 = vmatpush1.bf16.msra.mxu0 0
    %156 = vmatprep.subr.bf16.mxu0 0
    %157 = vmatpush1.bf16.msra.mxu0 0
    %158 = vmatprep.subr.bf16.mxu0 0
    %159 = vmatpush1.bf16.msra.mxu0 0
    %160 = vmatprep.subr.bf16.mxu0 0
    %161 = vmatpush1.bf16.msra.mxu0 0
    %162 = vmatprep.subr.bf16.mxu0 0
    %163 = vmatpush1.bf16.msra.mxu0 0
    %164 = vmatprep.subr.bf16.mxu0 0
    %165 = vmatpush1.bf16.msra.mxu0 0
    %166 = vmatprep.subr.bf16.mxu0 0
    %167 = vmatpush1.bf16.msra.mxu0 0
    %168 = vmatprep.subr.bf16.mxu0 0
    %169 = vmatpush1.bf16.msra.mxu0 0
    %170 = vmatprep.mubr.bf16.mxu0 0
    %171 = vmatmul.mubr.bf16.gmra.mrb[0].mxu0 %v115
    %v172 = vpop.f32.mrb[0].mxu0
    %v173 = vadd.f32 0.0, %v172
    %v174 = vpop.f32.mrb[0].mxu0
    %v175 = vpop.f32.mrb[0].mxu0
    %v176 = vadd.f32 0.0, %v175
    %v177 = vpop.f32.mrb[0].mxu0
    %178 = vmatprep.mubr.bf16.mxu0 0
    %179 = vmatmul.mubr.bf16.gmra.mrb[0].mxu0 %v118
    %v180 = vpop.f32.mrb[0].mxu0
    %v181 = vadd.f32 0.0, %v180
    %v182 = vpop.f32.mrb[0].mxu0
    %v183 = vpop.f32.mrb[0].mxu0
    %v184 = vadd.f32 0.0, %v183
    %v185 = vpop.f32.mrb[0].mxu0
    %186 = vmatprep.mubr.bf16.mxu0 0
    %187 = vmatmul.mubr.bf16.gmra.mrb[0].mxu0 %v121
    %v188 = vpop.f32.mrb[0].mxu0
    %v189 = vadd.f32 0.0, %v188
    %v190 = vpop.f32.mrb[0].mxu0
    %v191 = vpop.f32.mrb[0].mxu0
    %v192 = vadd.f32 0.0, %v191
    %v193 = vpop.f32.mrb[0].mxu0
    %194 = vmatprep.mubr.bf16.mxu0 0
    %195 = vmatmul.mubr.bf16.gmra.mrb[0].mxu0 %v124
    %v196 = vpop.f32.mrb[0].mxu0
    %v197 = vadd.f32 0.0, %v196
    %v198 = vpop.f32.mrb[0].mxu0
    %v199 = vpop.f32.mrb[0].mxu0
    %v200 = vadd.f32 0.0, %v199
    %v201 = vpop.f32.mrb[0].mxu0
    %202 = vmatprep.mubr.bf16.mxu0 0
    %203 = vmatmul.mubr.bf16.gmra.mrb[0].mxu0 %v127
    %v204 = vpop.f32.mrb[0].mxu0
    %v205 = vadd.f32 0.0, %v204
    %v206 = vpop.f32.mrb[0].mxu0
    %v207 = vpop.f32.mrb[0].mxu0
    %v208 = vadd.f32 0.0, %v207
    %v209 = vpop.f32.mrb[0].mxu0
    %210 = vmatprep.mubr.bf16.mxu0 0
    %211 = vmatmul.mubr.bf16.gmra.mrb[0].mxu0 %v130
    %v212 = vpop.f32.mrb[0].mxu0
    %v213 = vadd.f32 0.0, %v212
    %v214 = vpop.f32.mrb[0].mxu0
    %v215 = vpop.f32.mrb[0].mxu0
    %v216 = vadd.f32 0.0, %v215
    %v217 = vpop.f32.mrb[0].mxu0
    %218 = vmatprep.mubr.bf16.mxu0 0
    %219 = vmatmul.mubr.bf16.gmra.mrb[0].mxu0 %v133
    %v220 = vpop.f32.mrb[0].mxu0
    %v221 = vadd.f32 0.0, %v220
    %v222 = vpop.f32.mrb[0].mxu0
    %v223 = vpop.f32.mrb[0].mxu0
    %v224 = vadd.f32 0.0, %v223
    %v225 = vpop.f32.mrb[0].mxu0
    %226 = vmatprep.mubr.bf16.mxu0 0
    %227 = vmatmul.mubr.bf16.gmra.mrb[0].mxu0 %v136
    %v228 = vpop.f32.mrb[0].mxu0
    %v229 = vadd.f32 0.0, %v228
    %v230 = vpop.f32.mrb[0].mxu0
    %v231 = vpop.f32.mrb[0].mxu0
    %v232 = vadd.f32 0.0, %v231
    %v233 = vpop.f32.mrb[0].mxu0
    %234 = vdwg.mxu0
    %s235 = scalar_lea.vmem %s0, 64
    %v236 = vld [vmem:[%s235] sm:$0xf]
    %v237 = vld [vmem:[%s235 + $0x4] sm:$0xf]
    %v238 = vld [vmem:[%s235 + $0x8] sm:$0xf]
    %v239 = vld [vmem:[%s235 + $0xc] sm:$0xf]
    %v240 = vld [vmem:[%s235 + $0x10] sm:$0xf]
    %v241 = vld [vmem:[%s235 + $0x14] sm:$0xf]
    %v242 = vld [vmem:[%s235 + $0x18] sm:$0xf]
    %v243 = vld [vmem:[%s235 + $0x1c] sm:$0xf]
    %v244 = vld [vmem:[%s235 + $0x20] sm:$0xf]
    %v245 = vld [vmem:[%s235 + $0x24] sm:$0xf]
    %v246 = vld [vmem:[%s235 + $0x28] sm:$0xf]
    %v247 = vld [vmem:[%s235 + $0x2c] sm:$0xf]
    %v248 = vld [vmem:[%s235 + $0x30] sm:$0xf]
    %v249 = vld [vmem:[%s235 + $0x34] sm:$0xf]
    %v250 = vld [vmem:[%s235 + $0x38] sm:$0xf]
    %v251 = vld [vmem:[%s235 + $0x3c] sm:$0xf]
    %v268 = vunpack.c.l.b16 %v236
    %v269 = vunpack.c.l.b16 %v237
    %v270 = vunpack.c.l.b16 %v238
    %v271 = vunpack.c.l.b16 %v239
    %v272 = vunpack.c.l.b16 %v240
    %v273 = vunpack.c.l.b16 %v241
    %v274 = vunpack.c.l.b16 %v242
    %v275 = vunpack.c.l.b16 %v243
    %v276 = vunpack.c.l.b16 %v244
    %v277 = vunpack.c.l.b16 %v245
    %v278 = vunpack.c.l.b16 %v246
    %v279 = vunpack.c.l.b16 %v247
    %v280 = vunpack.c.l.b16 %v248
    %v281 = vunpack.c.l.b16 %v249
    %v282 = vunpack.c.l.b16 %v250
    %v283 = vunpack.c.l.b16 %v251
    %v284 = vpack.c.b16 %v269, %v268
    %v285 = vpack.c.b16 %v271, %v270
    %v286 = vpack.c.b16 %v273, %v272
    %v287 = vpack.c.b16 %v275, %v274
    %v288 = vpack.c.b16 %v277, %v276
    %v289 = vpack.c.b16 %v279, %v278
    %v290 = vpack.c.b16 %v281, %v280
    %v291 = vpack.c.b16 %v283, %v282
    %v293 = vsel %vm113, %v284, 0
    %v296 = vsel %vm113, %v285, 0
    %v299 = vsel %vm113, %v286, 0
    %v302 = vsel %vm113, %v287, 0
    %v305 = vsel %vm113, %v288, 0
    %v308 = vsel %vm113, %v289, 0
    %v311 = vsel %vm113, %v290, 0
    %v314 = vsel %vm113, %v291, 0
    %316 = vmatprep.subr.bf16.mxu0 0
    %317 = vmatpush1.bf16.msra.mxu0 %v109
    %318 = vmatprep.subr.bf16.mxu0 0
    %319 = vmatpush1.bf16.msra.mxu0 %v110
    %320 = vmatprep.subr.bf16.mxu0 0
    %321 = vmatpush1.bf16.msra.mxu0 0
    %322 = vmatprep.subr.bf16.mxu0 0
    %323 = vmatpush1.bf16.msra.mxu0 0
    %324 = vmatprep.subr.bf16.mxu0 0
    %325 = vmatpush1.bf16.msra.mxu0 0
    %326 = vmatprep.subr.bf16.mxu0 0
    %327 = vmatpush1.bf16.msra.mxu0 0
    %328 = vmatprep.subr.bf16.mxu0 0
    %329 = vmatpush1.bf16.msra.mxu0 0
    %330 = vmatprep.subr.bf16.mxu0 0
    %331 = vmatpush1.bf16.msra.mxu0 0
    %332 = vmatprep.subr.bf16.mxu0 0
    %333 = vmatpush1.bf16.msra.mxu0 0
    %334 = vmatprep.subr.bf16.mxu0 0
    %335 = vmatpush1.bf16.msra.mxu0 0
    %336 = vmatprep.subr.bf16.mxu0 0
    %337 = vmatpush1.bf16.msra.mxu0 0
    %338 = vmatprep.subr.bf16.mxu0 0
    %339 = vmatpush1.bf16.msra.mxu0 0
    %340 = vmatprep.subr.bf16.mxu0 0
    %341 = vmatpush1.bf16.msra.mxu0 0
    %342 = vmatprep.subr.bf16.mxu0 0
    %343 = vmatpush1.bf16.msra.mxu0 0
    %344 = vmatprep.subr.bf16.mxu0 0
    %345 = vmatpush1.bf16.msra.mxu0 0
    %346 = vmatprep.subr.bf16.mxu0 0
    %347 = vmatpush1.bf16.msra.mxu0 0
    %348 = vmatprep.mubr.bf16.mxu0 0
    %349 = vmatmul.mubr.bf16.gmra.mrb[0].mxu0 %v293
    %v350 = vpop.f32.mrb[0].mxu0
    %v351 = vadd.f32 0.0, %v350
    %v352 = vpop.f32.mrb[0].mxu0
    %v353 = vpop.f32.mrb[0].mxu0
    %v354 = vadd.f32 0.0, %v353
    %v355 = vpop.f32.mrb[0].mxu0
    %356 = vmatprep.mubr.bf16.mxu0 0
    %357 = vmatmul.mubr.bf16.gmra.mrb[0].mxu0 %v296
    %v358 = vpop.f32.mrb[0].mxu0
    %v359 = vadd.f32 0.0, %v358
    %v360 = vpop.f32.mrb[0].mxu0
    %v361 = vpop.f32.mrb[0].mxu0
    %v362 = vadd.f32 0.0, %v361
    %v363 = vpop.f32.mrb[0].mxu0
    %364 = vmatprep.mubr.bf16.mxu0 0
    %365 = vmatmul.mubr.bf16.gmra.mrb[0].mxu0 %v299
    %v366 = vpop.f32.mrb[0].mxu0
    %v367 = vadd.f32 0.0, %v366
    %v368 = vpop.f32.mrb[0].mxu0
    %v369 = vpop.f32.mrb[0].mxu0
    %v370 = vadd.f32 0.0, %v369
    %v371 = vpop.f32.mrb[0].mxu0
    %372 = vmatprep.mubr.bf16.mxu0 0
    %373 = vmatmul.mubr.bf16.gmra.mrb[0].mxu0 %v302
    %v374 = vpop.f32.mrb[0].mxu0
    %v375 = vadd.f32 0.0, %v374
    %v376 = vpop.f32.mrb[0].mxu0
    %v377 = vpop.f32.mrb[0].mxu0
    %v378 = vadd.f32 0.0, %v377
    %v379 = vpop.f32.mrb[0].mxu0
    %380 = vmatprep.mubr.bf16.mxu0 0
    %381 = vmatmul.mubr.bf16.gmra.mrb[0].mxu0 %v305
    %v382 = vpop.f32.mrb[0].mxu0
    %v383 = vadd.f32 0.0, %v382
    %v384 = vpop.f32.mrb[0].mxu0
    %v385 = vpop.f32.mrb[0].mxu0
    %v386 = vadd.f32 0.0, %v385
    %v387 = vpop.f32.mrb[0].mxu0
    %388 = vmatprep.mubr.bf16.mxu0 0
    %389 = vmatmul.mubr.bf16.gmra.mrb[0].mxu0 %v308
    %v390 = vpop.f32.mrb[0].mxu0
    %v391 = vadd.f32 0.0, %v390
    %v392 = vpop.f32.mrb[0].mxu0
    %v393 = vpop.f32.mrb[0].mxu0
    %v394 = vadd.f32 0.0, %v393
    %v395 = vpop.f32.mrb[0].mxu0
    %396 = vmatprep.mubr.bf16.mxu0 0
    %397 = vmatmul.mubr.bf16.gmra.mrb[0].mxu0 %v311
    %v398 = vpop.f32.mrb[0].mxu0
    %v399 = vadd.f32 0.0, %v398
    %v400 = vpop.f32.mrb[0].mxu0
    %v401 = vpop.f32.mrb[0].mxu0
    %v402 = vadd.f32 0.0, %v401
    %v403 = vpop.f32.mrb[0].mxu0
    %404 = vmatprep.mubr.bf16.mxu0 0
    %405 = vmatmul.mubr.bf16.gmra.mrb[0].mxu0 %v314
    %v406 = vpop.f32.mrb[0].mxu0
    %v407 = vadd.f32 0.0, %v406
    %v408 = vpop.f32.mrb[0].mxu0
    %v409 = vpop.f32.mrb[0].mxu0
    %v410 = vadd.f32 0.0, %v409
    %v411 = vpop.f32.mrb[0].mxu0
    %412 = vdwg.mxu0
    %s413 = scalar_lea.vmem %s0, 128
    %v414 = vld [vmem:[%s413] sm:$0xf]
    %v415 = vld [vmem:[%s413 + $0x4] sm:$0xf]
    %v416 = vld [vmem:[%s413 + $0x8] sm:$0xf]
    %v417 = vld [vmem:[%s413 + $0xc] sm:$0xf]
    %v418 = vld [vmem:[%s413 + $0x10] sm:$0xf]
    %v419 = vld [vmem:[%s413 + $0x14] sm:$0xf]
    %v420 = vld [vmem:[%s413 + $0x18] sm:$0xf]
    %v421 = vld [vmem:[%s413 + $0x1c] sm:$0xf]
    %v422 = vld [vmem:[%s413 + $0x20] sm:$0xf]
    %v423 = vld [vmem:[%s413 + $0x24] sm:$0xf]
    %v424 = vld [vmem:[%s413 + $0x28] sm:$0xf]
    %v425 = vld [vmem:[%s413 + $0x2c] sm:$0xf]
    %v426 = vld [vmem:[%s413 + $0x30] sm:$0xf]
    %v427 = vld [vmem:[%s413 + $0x34] sm:$0xf]
    %v428 = vld [vmem:[%s413 + $0x38] sm:$0xf]
    %v429 = vld [vmem:[%s413 + $0x3c] sm:$0xf]
    %v446 = vunpack.c.l.b16 %v414
    %v447 = vunpack.c.l.b16 %v415
    %v448 = vunpack.c.l.b16 %v416
    %v449 = vunpack.c.l.b16 %v417
    %v450 = vunpack.c.l.b16 %v418
    %v451 = vunpack.c.l.b16 %v419
    %v452 = vunpack.c.l.b16 %v420
    %v453 = vunpack.c.l.b16 %v421
    %v454 = vunpack.c.l.b16 %v422
    %v455 = vunpack.c.l.b16 %v423
    %v456 = vunpack.c.l.b16 %v424
    %v457 = vunpack.c.l.b16 %v425
    %v458 = vunpack.c.l.b16 %v426
    %v459 = vunpack.c.l.b16 %v427
    %v460 = vunpack.c.l.b16 %v428
    %v461 = vunpack.c.l.b16 %v429
    %v462 = vpack.c.b16 %v447, %v446
    %v463 = vpack.c.b16 %v449, %v448
    %v464 = vpack.c.b16 %v451, %v450
    %v465 = vpack.c.b16 %v453, %v452
    %v466 = vpack.c.b16 %v455, %v454
    %v467 = vpack.c.b16 %v457, %v456
    %v468 = vpack.c.b16 %v459, %v458
    %v469 = vpack.c.b16 %v461, %v460
    %v471 = vsel %vm113, %v462, 0
    %v474 = vsel %vm113, %v463, 0
    %v477 = vsel %vm113, %v464, 0
    %v480 = vsel %vm113, %v465, 0
    %v483 = vsel %vm113, %v466, 0
    %v486 = vsel %vm113, %v467, 0
    %v489 = vsel %vm113, %v468, 0
    %v492 = vsel %vm113, %v469, 0
    %494 = vmatprep.subr.bf16.mxu0 0
    %495 = vmatpush1.bf16.msra.mxu0 %v109
    %496 = vmatprep.subr.bf16.mxu0 0
    %497 = vmatpush1.bf16.msra.mxu0 %v110
    %498 = vmatprep.subr.bf16.mxu0 0
    %499 = vmatpush1.bf16.msra.mxu0 0
    %500 = vmatprep.subr.bf16.mxu0 0
    %501 = vmatpush1.bf16.msra.mxu0 0
    %502 = vmatprep.subr.bf16.mxu0 0
    %503 = vmatpush1.bf16.msra.mxu0 0
    %504 = vmatprep.subr.bf16.mxu0 0
    %505 = vmatpush1.bf16.msra.mxu0 0
    %506 = vmatprep.subr.bf16.mxu0 0
    %507 = vmatpush1.bf16.msra.mxu0 0
    %508 = vmatprep.subr.bf16.mxu0 0
    %509 = vmatpush1.bf16.msra.mxu0 0
    %510 = vmatprep.subr.bf16.mxu0 0
    %511 = vmatpush1.bf16.msra.mxu0 0
    %512 = vmatprep.subr.bf16.mxu0 0
    %513 = vmatpush1.bf16.msra.mxu0 0
    %514 = vmatprep.subr.bf16.mxu0 0
    %515 = vmatpush1.bf16.msra.mxu0 0
    %516 = vmatprep.subr.bf16.mxu0 0
    %517 = vmatpush1.bf16.msra.mxu0 0
    %518 = vmatprep.subr.bf16.mxu0 0
    %519 = vmatpush1.bf16.msra.mxu0 0
    %520 = vmatprep.subr.bf16.mxu0 0
    %521 = vmatpush1.bf16.msra.mxu0 0
    %522 = vmatprep.subr.bf16.mxu0 0
    %523 = vmatpush1.bf16.msra.mxu0 0
    %524 = vmatprep.subr.bf16.mxu0 0
    %525 = vmatpush1.bf16.msra.mxu0 0
    %526 = vmatprep.mubr.bf16.mxu0 0
    %527 = vmatmul.mubr.bf16.gmra.mrb[0].mxu0 %v471
    %v528 = vpop.f32.mrb[0].mxu0
    %v529 = vadd.f32 0.0, %v528
    %v530 = vpop.f32.mrb[0].mxu0
    %v531 = vpop.f32.mrb[0].mxu0
    %v532 = vadd.f32 0.0, %v531
    %v533 = vpop.f32.mrb[0].mxu0
    %534 = vmatprep.mubr.bf16.mxu0 0
    %535 = vmatmul.mubr.bf16.gmra.mrb[0].mxu0 %v474
    %v536 = vpop.f32.mrb[0].mxu0
    %v537 = vadd.f32 0.0, %v536
    %v538 = vpop.f32.mrb[0].mxu0
    %v539 = vpop.f32.mrb[0].mxu0
    %v540 = vadd.f32 0.0, %v539
    %v541 = vpop.f32.mrb[0].mxu0
    %542 = vmatprep.mubr.bf16.mxu0 0
    %543 = vmatmul.mubr.bf16.gmra.mrb[0].mxu0 %v477
    %v544 = vpop.f32.mrb[0].mxu0
    %v545 = vadd.f32 0.0, %v544
    %v546 = vpop.f32.mrb[0].mxu0
    %v547 = vpop.f32.mrb[0].mxu0
    %v548 = vadd.f32 0.0, %v547
    %v549 = vpop.f32.mrb[0].mxu0
    %550 = vmatprep.mubr.bf16.mxu0 0
    %551 = vmatmul.mubr.bf16.gmra.mrb[0].mxu0 %v480
    %v552 = vpop.f32.mrb[0].mxu0
    %v553 = vadd.f32 0.0, %v552
    %v554 = vpop.f32.mrb[0].mxu0
    %v555 = vpop.f32.mrb[0].mxu0
    %v556 = vadd.f32 0.0, %v555
    %v557 = vpop.f32.mrb[0].mxu0
    %558 = vmatprep.mubr.bf16.mxu0 0
    %559 = vmatmul.mubr.bf16.gmra.mrb[0].mxu0 %v483
    %v560 = vpop.f32.mrb[0].mxu0
    %v561 = vadd.f32 0.0, %v560
    %v562 = vpop.f32.mrb[0].mxu0
    %v563 = vpop.f32.mrb[0].mxu0
    %v564 = vadd.f32 0.0, %v563
    %v565 = vpop.f32.mrb[0].mxu0
    %566 = vmatprep.mubr.bf16.mxu0 0
    %567 = vmatmul.mubr.bf16.gmra.mrb[0].mxu0 %v486
    %v568 = vpop.f32.mrb[0].mxu0
    %v569 = vadd.f32 0.0, %v568
    %v570 = vpop.f32.mrb[0].mxu0
    %v571 = vpop.f32.mrb[0].mxu0
    %v572 = vadd.f32 0.0, %v571
    %v573 = vpop.f32.mrb[0].mxu0
    %574 = vmatprep.mubr.bf16.mxu0 0
    %575 = vmatmul.mubr.bf16.gmra.mrb[0].mxu0 %v489
    %v576 = vpop.f32.mrb[0].mxu0
    %v577 = vadd.f32 0.0, %v576
    %v578 = vpop.f32.mrb[0].mxu0
    %v579 = vpop.f32.mrb[0].mxu0
    %v580 = vadd.f32 0.0, %v579
    %v581 = vpop.f32.mrb[0].mxu0
    %582 = vmatprep.mubr.bf16.mxu0 0
    %583 = vmatmul.mubr.bf16.gmra.mrb[0].mxu0 %v492
    %v584 = vpop.f32.mrb[0].mxu0
    %v585 = vadd.f32 0.0, %v584
    %v586 = vpop.f32.mrb[0].mxu0
    %v587 = vpop.f32.mrb[0].mxu0
    %v588 = vadd.f32 0.0, %v587
    %v589 = vpop.f32.mrb[0].mxu0
    %590 = vdwg.mxu0
    %s591 = scalar_lea.vmem %s0, 192
    %v592 = vld [vmem:[%s591] sm:$0xf]
    %v593 = vld [vmem:[%s591 + $0x4] sm:$0xf]
    %v594 = vld [vmem:[%s591 + $0x8] sm:$0xf]
    %v595 = vld [vmem:[%s591 + $0xc] sm:$0xf]
    %v596 = vld [vmem:[%s591 + $0x10] sm:$0xf]
    %v597 = vld [vmem:[%s591 + $0x14] sm:$0xf]
    %v598 = vld [vmem:[%s591 + $0x18] sm:$0xf]
    %v599 = vld [vmem:[%s591 + $0x1c] sm:$0xf]
    %v600 = vld [vmem:[%s591 + $0x20] sm:$0xf]
    %v601 = vld [vmem:[%s591 + $0x24] sm:$0xf]
    %v602 = vld [vmem:[%s591 + $0x28] sm:$0xf]
    %v603 = vld [vmem:[%s591 + $0x2c] sm:$0xf]
    %v604 = vld [vmem:[%s591 + $0x30] sm:$0xf]
    %v605 = vld [vmem:[%s591 + $0x34] sm:$0xf]
    %v606 = vld [vmem:[%s591 + $0x38] sm:$0xf]
    %v607 = vld [vmem:[%s591 + $0x3c] sm:$0xf]
    %v624 = vunpack.c.l.b16 %v592
    %v625 = vunpack.c.l.b16 %v593
    %v626 = vunpack.c.l.b16 %v594
    %v627 = vunpack.c.l.b16 %v595
    %v628 = vunpack.c.l.b16 %v596
    %v629 = vunpack.c.l.b16 %v597
    %v630 = vunpack.c.l.b16 %v598
    %v631 = vunpack.c.l.b16 %v599
    %v632 = vunpack.c.l.b16 %v600
    %v633 = vunpack.c.l.b16 %v601
    %v634 = vunpack.c.l.b16 %v602
    %v635 = vunpack.c.l.b16 %v603
    %v636 = vunpack.c.l.b16 %v604
    %v637 = vunpack.c.l.b16 %v605
    %v638 = vunpack.c.l.b16 %v606
    %v639 = vunpack.c.l.b16 %v607
    %v640 = vpack.c.b16 %v625, %v624
    %v641 = vpack.c.b16 %v627, %v626
    %v642 = vpack.c.b16 %v629, %v628
    %v643 = vpack.c.b16 %v631, %v630
    %v644 = vpack.c.b16 %v633, %v632
    %v645 = vpack.c.b16 %v635, %v634
    %v646 = vpack.c.b16 %v637, %v636
    %v647 = vpack.c.b16 %v639, %v638
    %v649 = vsel %vm113, %v640, 0
    %v652 = vsel %vm113, %v641, 0
    %v655 = vsel %vm113, %v642, 0
    %v658 = vsel %vm113, %v643, 0
    %v661 = vsel %vm113, %v644, 0
    %v664 = vsel %vm113, %v645, 0
    %v667 = vsel %vm113, %v646, 0
    %v670 = vsel %vm113, %v647, 0
    %672 = vmatprep.subr.bf16.mxu0 0
    %673 = vmatpush1.bf16.msra.mxu0 %v109
    %674 = vmatprep.subr.bf16.mxu0 0
    %675 = vmatpush1.bf16.msra.mxu0 %v110
    %676 = vmatprep.subr.bf16.mxu0 0
    %677 = vmatpush1.bf16.msra.mxu0 0
    %678 = vmatprep.subr.bf16.mxu0 0
    %679 = vmatpush1.bf16.msra.mxu0 0
    %680 = vmatprep.subr.bf16.mxu0 0
    %681 = vmatpush1.bf16.msra.mxu0 0
    %682 = vmatprep.subr.bf16.mxu0 0
    %683 = vmatpush1.bf16.msra.mxu0 0
    %684 = vmatprep.subr.bf16.mxu0 0
    %685 = vmatpush1.bf16.msra.mxu0 0
    %686 = vmatprep.subr.bf16.mxu0 0
    %687 = vmatpush1.bf16.msra.mxu0 0
    %688 = vmatprep.subr.bf16.mxu0 0
    %689 = vmatpush1.bf16.msra.mxu0 0
    %690 = vmatprep.subr.bf16.mxu0 0
    %691 = vmatpush1.bf16.msra.mxu0 0
    %692 = vmatprep.subr.bf16.mxu0 0
    %693 = vmatpush1.bf16.msra.mxu0 0
    %694 = vmatprep.subr.bf16.mxu0 0
    %695 = vmatpush1.bf16.msra.mxu0 0
    %696 = vmatprep.subr.bf16.mxu0 0
    %697 = vmatpush1.bf16.msra.mxu0 0
    %698 = vmatprep.subr.bf16.mxu0 0
    %699 = vmatpush1.bf16.msra.mxu0 0
    %700 = vmatprep.subr.bf16.mxu0 0
    %701 = vmatpush1.bf16.msra.mxu0 0
    %702 = vmatprep.subr.bf16.mxu0 0
    %703 = vmatpush1.bf16.msra.mxu0 0
    %704 = vmatprep.mubr.bf16.mxu0 0
    %705 = vmatmul.mubr.bf16.gmra.mrb[0].mxu0 %v649
    %v706 = vpop.f32.mrb[0].mxu0
    %v707 = vadd.f32 0.0, %v706
    %v708 = vpop.f32.mrb[0].mxu0
    %v709 = vpop.f32.mrb[0].mxu0
    %v710 = vadd.f32 0.0, %v709
    %v711 = vpop.f32.mrb[0].mxu0
    %712 = vmatprep.mubr.bf16.mxu0 0
    %713 = vmatmul.mubr.bf16.gmra.mrb[0].mxu0 %v652
    %v714 = vpop.f32.mrb[0].mxu0
    %v715 = vadd.f32 0.0, %v714
    %v716 = vpop.f32.mrb[0].mxu0
    %v717 = vpop.f32.mrb[0].mxu0
    %v718 = vadd.f32 0.0, %v717
    %v719 = vpop.f32.mrb[0].mxu0
    %720 = vmatprep.mubr.bf16.mxu0 0
    %721 = vmatmul.mubr.bf16.gmra.mrb[0].mxu0 %v655
    %v722 = vpop.f32.mrb[0].mxu0
    %v723 = vadd.f32 0.0, %v722
    %v724 = vpop.f32.mrb[0].mxu0
    %v725 = vpop.f32.mrb[0].mxu0
    %v726 = vadd.f32 0.0, %v725
    %v727 = vpop.f32.mrb[0].mxu0
    %728 = vmatprep.mubr.bf16.mxu0 0
    %729 = vmatmul.mubr.bf16.gmra.mrb[0].mxu0 %v658
    %v730 = vpop.f32.mrb[0].mxu0
    %v731 = vadd.f32 0.0, %v730
    %v732 = vpop.f32.mrb[0].mxu0
    %v733 = vpop.f32.mrb[0].mxu0
    %v734 = vadd.f32 0.0, %v733
    %v735 = vpop.f32.mrb[0].mxu0
    %736 = vmatprep.mubr.bf16.mxu0 0
    %737 = vmatmul.mubr.bf16.gmra.mrb[0].mxu0 %v661
    %v738 = vpop.f32.mrb[0].mxu0
    %v739 = vadd.f32 0.0, %v738
    %v740 = vpop.f32.mrb[0].mxu0
    %v741 = vpop.f32.mrb[0].mxu0
    %v742 = vadd.f32 0.0, %v741
    %v743 = vpop.f32.mrb[0].mxu0
    %744 = vmatprep.mubr.bf16.mxu0 0
    %745 = vmatmul.mubr.bf16.gmra.mrb[0].mxu0 %v664
    %v746 = vpop.f32.mrb[0].mxu0
    %v747 = vadd.f32 0.0, %v746
    %v748 = vpop.f32.mrb[0].mxu0
    %v749 = vpop.f32.mrb[0].mxu0
    %v750 = vadd.f32 0.0, %v749
    %v751 = vpop.f32.mrb[0].mxu0
    %752 = vmatprep.mubr.bf16.mxu0 0
    %753 = vmatmul.mubr.bf16.gmra.mrb[0].mxu0 %v667
    %v754 = vpop.f32.mrb[0].mxu0
    %v755 = vadd.f32 0.0, %v754
    %v756 = vpop.f32.mrb[0].mxu0
    %v757 = vpop.f32.mrb[0].mxu0
    %v758 = vadd.f32 0.0, %v757
    %v759 = vpop.f32.mrb[0].mxu0
    %760 = vmatprep.mubr.bf16.mxu0 0
    %761 = vmatmul.mubr.bf16.gmra.mrb[0].mxu0 %v670
    %v762 = vpop.f32.mrb[0].mxu0
    %v763 = vadd.f32 0.0, %v762
    %v764 = vpop.f32.mrb[0].mxu0
    %v765 = vpop.f32.mrb[0].mxu0
    %v766 = vadd.f32 0.0, %v765
    %v767 = vpop.f32.mrb[0].mxu0
    %768 = vdwg.mxu0
    %v769 = vmax.f32 %v173, %v351
    %v770 = vmax.f32 %v176, %v354
    %v771 = vmax.f32 %v181, %v359
    %v772 = vmax.f32 %v184, %v362
    %v773 = vmax.f32 %v189, %v367
    %v774 = vmax.f32 %v192, %v370
    %v775 = vmax.f32 %v197, %v375
    %v776 = vmax.f32 %v200, %v378
    %v777 = vmax.f32 %v205, %v383
    %v778 = vmax.f32 %v208, %v386
    %v779 = vmax.f32 %v213, %v391
    %v780 = vmax.f32 %v216, %v394
    %v781 = vmax.f32 %v221, %v399
    %v782 = vmax.f32 %v224, %v402
    %v783 = vmax.f32 %v229, %v407
    %v784 = vmax.f32 %v232, %v410
    %v785 = vmax.f32 %v529, %v707
    %v786 = vmax.f32 %v532, %v710
    %v787 = vmax.f32 %v537, %v715
    %v788 = vmax.f32 %v540, %v718
    %v789 = vmax.f32 %v545, %v723
    %v790 = vmax.f32 %v548, %v726
    %v791 = vmax.f32 %v553, %v731
    %v792 = vmax.f32 %v556, %v734
    %v793 = vmax.f32 %v561, %v739
    %v794 = vmax.f32 %v564, %v742
    %v795 = vmax.f32 %v569, %v747
    %v796 = vmax.f32 %v572, %v750
    %v797 = vmax.f32 %v577, %v755
    %v798 = vmax.f32 %v580, %v758
    %v799 = vmax.f32 %v585, %v763
    %v800 = vmax.f32 %v588, %v766
    %v801 = vmax.f32 %v769, %v785
    %v802 = vmax.f32 %v770, %v786
    %v803 = vmax.f32 %v771, %v787
    %v804 = vmax.f32 %v772, %v788
    %v805 = vmax.f32 %v773, %v789
    %v806 = vmax.f32 %v774, %v790
    %v807 = vmax.f32 %v775, %v791
    %v808 = vmax.f32 %v776, %v792
    %v809 = vmax.f32 %v777, %v793
    %v810 = vmax.f32 %v778, %v794
    %v811 = vmax.f32 %v779, %v795
    %v812 = vmax.f32 %v780, %v796
    %v813 = vmax.f32 %v781, %v797
    %v814 = vmax.f32 %v782, %v798
    %v815 = vmax.f32 %v783, %v799
    %v816 = vmax.f32 %v784, %v800
    %v817 = vld [vmem:[#allocation4] sm:$0x1]
    %v819 = vlaneseq
    %v820 = vshrl.u32 %v819, 7
    %v821 = vsub.s32 0, %v820
    %v822 = vrot.slane %v817, %v821
    %v824 = vadd.f32 %v801, %v822
    %v825 = vadd.f32 %v802, %v822
    %v826 = vadd.f32 %v803, %v822
    %v827 = vadd.f32 %v804, %v822
    %v828 = vadd.f32 %v805, %v822
    %v829 = vadd.f32 %v806, %v822
    %v830 = vadd.f32 %v807, %v822
    %v831 = vadd.f32 %v808, %v822
    %v832 = vadd.f32 %v809, %v822
    %v833 = vadd.f32 %v810, %v822
    %v834 = vadd.f32 %v811, %v822
    %v835 = vadd.f32 %v812, %v822
    %v836 = vadd.f32 %v813, %v822
    %v837 = vadd.f32 %v814, %v822
    %v838 = vadd.f32 %v815, %v822
    %v839 = vadd.f32 %v816, %v822
    %v840 = vmax.f32 %v824, 0.0
    %v841 = vmax.f32 %v825, 0.0
    %v842 = vmax.f32 %v826, 0.0
    %v843 = vmax.f32 %v827, 0.0
    %v844 = vmax.f32 %v828, 0.0
    %v845 = vmax.f32 %v829, 0.0
    %v846 = vmax.f32 %v830, 0.0
    %v847 = vmax.f32 %v831, 0.0
    %v848 = vmax.f32 %v832, 0.0
    %v849 = vmax.f32 %v833, 0.0
    %v850 = vmax.f32 %v834, 0.0
    %v851 = vmax.f32 %v835, 0.0
    %v852 = vmax.f32 %v836, 0.0
    %v853 = vmax.f32 %v837, 0.0
    %v854 = vmax.f32 %v838, 0.0
    %v855 = vmax.f32 %v839, 0.0
    %v856 = vpack.c.bf16 %v841, %v840
    %v857 = vpack.c.bf16 %v843, %v842
    %v858 = vpack.c.bf16 %v845, %v844
    %v859 = vpack.c.bf16 %v847, %v846
    %v860 = vpack.c.bf16 %v849, %v848
    %v861 = vpack.c.bf16 %v851, %v850
    %v862 = vpack.c.bf16 %v853, %v852
    %v863 = vpack.c.bf16 %v855, %v854
    %v872 = vunpack.c.l.b16 %v856
    %v873 = vunpack.c.h.b16 %v856
    %v874 = vunpack.c.l.b16 %v857
    %v875 = vunpack.c.h.b16 %v857
    %v876 = vunpack.c.l.b16 %v858
    %v877 = vunpack.c.h.b16 %v858
    %v878 = vunpack.c.l.b16 %v859
    %v879 = vunpack.c.h.b16 %v859
    %v880 = vunpack.c.l.b16 %v860
    %v881 = vunpack.c.h.b16 %v860
    %v882 = vunpack.c.l.b16 %v861
    %v883 = vunpack.c.h.b16 %v861
    %v884 = vunpack.c.l.b16 %v862
    %v885 = vunpack.c.h.b16 %v862
    %v886 = vunpack.c.l.b16 %v863
    %v887 = vunpack.c.h.b16 %v863
    %v888 = vpack.c.b16 %v872, %v872
    %v889 = vpack.c.b16 %v873, %v873
    %v890 = vpack.c.b16 %v874, %v874
    %v891 = vpack.c.b16 %v875, %v875
    %v892 = vpack.c.b16 %v876, %v876
    %v893 = vpack.c.b16 %v877, %v877
    %v894 = vpack.c.b16 %v878, %v878
    %v895 = vpack.c.b16 %v879, %v879
    %v896 = vpack.c.b16 %v880, %v880
    %v897 = vpack.c.b16 %v881, %v881
    %v898 = vpack.c.b16 %v882, %v882
    %v899 = vpack.c.b16 %v883, %v883
    %v900 = vpack.c.b16 %v884, %v884
    %v901 = vpack.c.b16 %v885, %v885
    %v902 = vpack.c.b16 %v886, %v886
    %v903 = vpack.c.b16 %v887, %v887
    %vm920 = vcmask 257024
    %921 = vst.msk [vmem:[%s3] sm:$0xf] %vm920, %v888
    %922 = vst.msk [vmem:[%s3 + $0x4] sm:$0xf] %vm920, %v889
    %923 = vst.msk [vmem:[%s3 + $0x8] sm:$0xf] %vm920, %v890
    %924 = vst.msk [vmem:[%s3 + $0xc] sm:$0xf] %vm920, %v891
    %925 = vst.msk [vmem:[%s3 + $0x10] sm:$0xf] %vm920, %v892
    %926 = vst.msk [vmem:[%s3 + $0x14] sm:$0xf] %vm920, %v893
    %927 = vst.msk [vmem:[%s3 + $0x18] sm:$0xf] %vm920, %v894
    %928 = vst.msk [vmem:[%s3 + $0x1c] sm:$0xf] %vm920, %v895
    %929 = vst.msk [vmem:[%s3 + $0x20] sm:$0xf] %vm920, %v896
    %930 = vst.msk [vmem:[%s3 + $0x24] sm:$0xf] %vm920, %v897
    %931 = vst.msk [vmem:[%s3 + $0x28] sm:$0xf] %vm920, %v898
    %932 = vst.msk [vmem:[%s3 + $0x2c] sm:$0xf] %vm920, %v899
    %933 = vst.msk [vmem:[%s3 + $0x30] sm:$0xf] %vm920, %v900
    %934 = vst.msk [vmem:[%s3 + $0x34] sm:$0xf] %vm920, %v901
    %935 = vst.msk [vmem:[%s3 + $0x38] sm:$0xf] %vm920, %v902
    %936 = vst.msk [vmem:[%s3 + $0x3c] sm:$0xf] %vm920, %v903
    // Predicated region
    $region22: #{convnet_forward.4} parent=1 // pred_check
      _
    $region23: #{convnet_forward.4} parent=1 // pred_check_branch
      %938 = sbr.rel (0) target = $region25
    $region24: #{convnet_forward.4} parent=1 // pred_region
      _
    $region25: #{convnet_forward.4} parent=1 // pred_fallthru
      _
    // Predicated region
    $region26: #{convnet_forward.4} parent=1 // pred_check
      _
    $region27: #{convnet_forward.4} parent=1 // pred_check_branch
      %940 = sbr.rel (0) target = $region29
    $region28: #{convnet_forward.4} parent=1 // pred_region
      _
    $region29: #{convnet_forward.4} parent=1 // pred_fallthru
      _
    %941 = vsyncpa [#allocation3], 1
    %942 = vsyncpa [#allocation5], 1

// kernel: convnet_forward.7
$region0: #{convnet_forward.7}
  #allocation0 [shape = 'u32[]', space=smem, size = 0x4, offset = 0x4, fixed_abs, tag = 'smem constant byte address 0x4 - core index']
  #allocation1 [shape = 'u32[144,128]{1,0:T(1,128)}', space=vmem, size = 0x12000, scoped, tag = 'internal scratch']
  %s0 = inlined_call_operand.vmem [shape: bf16[8,1024], index: 0, kind: input, shape index: {}]
  %s1 = inlined_call_operand.vmem [shape: bf16[1024,128], index: 1, kind: input, shape index: {}]
  %s2 = inlined_call_operand.vmem [shape: f32[1,128], index: 2, kind: input, shape index: {}]
  %s3 = inlined_call_operand.vmem [shape: f32[8,128], index: 3, kind: output, shape index: {}]
  %s4 = sld [smem:[#allocation0]]
  $region22: #{convnet_forward.7} parent=0
    _
  %s6 = ssub.s32 1, %s4
  %s7 = scalar_select 0, %s6, %s4
  // Predicated region
  $region2: #{convnet_forward.7} parent=0 // pred_check
    _
  $region3: #{convnet_forward.7} parent=0 // pred_check_branch
    %9 = sbr.rel (0) target = $region5
  $region4: #{convnet_forward.7} parent=0 // pred_region
    _
  $region5: #{convnet_forward.7} parent=0 // pred_fallthru
    _
  // Predicated region
  $region6: #{convnet_forward.7} parent=0 // pred_check
    _
  $region7: #{convnet_forward.7} parent=0 // pred_check_branch
    %11 = sbr.rel (0) target = $region9
  $region8: #{convnet_forward.7} parent=0 // pred_region
    _
  $region9: #{convnet_forward.7} parent=0 // pred_fallthru
    _
  // Predicated region
  $region10: #{convnet_forward.7} parent=0 // pred_check
    _
  $region11: #{convnet_forward.7} parent=0 // pred_check_branch
    %13 = sbr.rel (0) target = $region13
  $region12: #{convnet_forward.7} parent=0 // pred_region
    _
  $region13: #{convnet_forward.7} parent=0 // pred_fallthru
    _
  %v15 = vld [vmem:[%s0] sm:$0xff]
  %v16 = vld [vmem:[%s0 + $0x8] sm:$0xff]
  %v17 = vld [vmem:[%s0 + $0x10] sm:$0xff]
  %v18 = vld [vmem:[%s0 + $0x18] sm:$0xff]
  %v19 = vld [vmem:[%s1] sm:$0xf]
  %v20 = vld [vmem:[%s1 + $0x4] sm:$0xf]
  %v21 = vld [vmem:[%s1 + $0x8] sm:$0xf]
  %v22 = vld [vmem:[%s1 + $0xc] sm:$0xf]
  %v23 = vld [vmem:[%s1 + $0x10] sm:$0xf]
  %v24 = vld [vmem:[%s1 + $0x14] sm:$0xf]
  %v25 = vld [vmem:[%s1 + $0x18] sm:$0xf]
  %v26 = vld [vmem:[%s1 + $0x1c] sm:$0xf]
  %v27 = vld [vmem:[%s1 + $0x20] sm:$0xf]
  %v28 = vld [vmem:[%s1 + $0x24] sm:$0xf]
  %v29 = vld [vmem:[%s1 + $0x28] sm:$0xf]
  %v30 = vld [vmem:[%s1 + $0x2c] sm:$0xf]
  %v31 = vld [vmem:[%s1 + $0x30] sm:$0xf]
  %v32 = vld [vmem:[%s1 + $0x34] sm:$0xf]
  %v33 = vld [vmem:[%s1 + $0x38] sm:$0xf]
  %v34 = vld [vmem:[%s1 + $0x3c] sm:$0xf]
  %v35 = vld [vmem:[%s1 + $0x40] sm:$0xf]
  %v36 = vld [vmem:[%s1 + $0x44] sm:$0xf]
  %v37 = vld [vmem:[%s1 + $0x48] sm:$0xf]
  %v38 = vld [vmem:[%s1 + $0x4c] sm:$0xf]
  %v39 = vld [vmem:[%s1 + $0x50] sm:$0xf]
  %v40 = vld [vmem:[%s1 + $0x54] sm:$0xf]
  %v41 = vld [vmem:[%s1 + $0x58] sm:$0xf]
  %v42 = vld [vmem:[%s1 + $0x5c] sm:$0xf]
  %v43 = vld [vmem:[%s1 + $0x60] sm:$0xf]
  %v44 = vld [vmem:[%s1 + $0x64] sm:$0xf]
  %v45 = vld [vmem:[%s1 + $0x68] sm:$0xf]
  %v46 = vld [vmem:[%s1 + $0x6c] sm:$0xf]
  %v47 = vld [vmem:[%s1 + $0x70] sm:$0xf]
  %v48 = vld [vmem:[%s1 + $0x74] sm:$0xf]
  %v49 = vld [vmem:[%s1 + $0x78] sm:$0xf]
  %v50 = vld [vmem:[%s1 + $0x7c] sm:$0xf]
  %v51 = vld [vmem:[%s1 + $0x80] sm:$0xf]
  %v52 = vld [vmem:[%s1 + $0x84] sm:$0xf]
  %v53 = vld [vmem:[%s1 + $0x88] sm:$0xf]
  %v54 = vld [vmem:[%s1 + $0x8c] sm:$0xf]
  %v55 = vld [vmem:[%s1 + $0x90] sm:$0xf]
  %v56 = vld [vmem:[%s1 + $0x94] sm:$0xf]
  %v57 = vld [vmem:[%s1 + $0x98] sm:$0xf]
  %v58 = vld [vmem:[%s1 + $0x9c] sm:$0xf]
  %v59 = vld [vmem:[%s1 + $0xa0] sm:$0xf]
  %v60 = vld [vmem:[%s1 + $0xa4] sm:$0xf]
  %v61 = vld [vmem:[%s1 + $0xa8] sm:$0xf]
  %v62 = vld [vmem:[%s1 + $0xac] sm:$0xf]
  %v63 = vld [vmem:[%s1 + $0xb0] sm:$0xf]
  %v64 = vld [vmem:[%s1 + $0xb4] sm:$0xf]
  %v65 = vld [vmem:[%s1 + $0xb8] sm:$0xf]
  %v66 = vld [vmem:[%s1 + $0xbc] sm:$0xf]
  %v67 = vld [vmem:[%s1 + $0xc0] sm:$0xf]
  %v68 = vld [vmem:[%s1 + $0xc4] sm:$0xf]
  %v69 = vld [vmem:[%s1 + $0xc8] sm:$0xf]
  %v70 = vld [vmem:[%s1 + $0xcc] sm:$0xf]
  %v71 = vld [vmem:[%s1 + $0xd0] sm:$0xf]
  %v72 = vld [vmem:[%s1 + $0xd4] sm:$0xf]
  %v73 = vld [vmem:[%s1 + $0xd8] sm:$0xf]
  %v74 = vld [vmem:[%s1 + $0xdc] sm:$0xf]
  %v75 = vld [vmem:[%s1 + $0xe0] sm:$0xf]
  %v76 = vld [vmem:[%s1 + $0xe4] sm:$0xf]
  %v77 = vld [vmem:[%s1 + $0xe8] sm:$0xf]
  %v78 = vld [vmem:[%s1 + $0xec] sm:$0xf]
  %v79 = vld [vmem:[%s1 + $0xf0] sm:$0xf]
  %v80 = vld [vmem:[%s1 + $0xf4] sm:$0xf]
  %v81 = vld [vmem:[%s1 + $0xf8] sm:$0xf]
  %v82 = vld [vmem:[%s1 + $0xfc] sm:$0xf]
  %v83 = vld [vmem:[%s1 + $0x100] sm:$0xf]
  %v84 = vld [vmem:[%s1 + $0x104] sm:$0xf]
  %v85 = vld [vmem:[%s1 + $0x108] sm:$0xf]
  %v86 = vld [vmem:[%s1 + $0x10c] sm:$0xf]
  %v87 = vld [vmem:[%s1 + $0x110] sm:$0xf]
  %v88 = vld [vmem:[%s1 + $0x114] sm:$0xf]
  %v89 = vld [vmem:[%s1 + $0x118] sm:$0xf]
  %v90 = vld [vmem:[%s1 + $0x11c] sm:$0xf]
  %v91 = vld [vmem:[%s1 + $0x120] sm:$0xf]
  %v92 = vld [vmem:[%s1 + $0x124] sm:$0xf]
  %v93 = vld [vmem:[%s1 + $0x128] sm:$0xf]
  %v94 = vld [vmem:[%s1 + $0x12c] sm:$0xf]
  %v95 = vld [vmem:[%s1 + $0x130] sm:$0xf]
  %v96 = vld [vmem:[%s1 + $0x134] sm:$0xf]
  %v97 = vld [vmem:[%s1 + $0x138] sm:$0xf]
  %v98 = vld [vmem:[%s1 + $0x13c] sm:$0xf]
  %v99 = vld [vmem:[%s1 + $0x140] sm:$0xf]
  %v100 = vld [vmem:[%s1 + $0x144] sm:$0xf]
  %v101 = vld [vmem:[%s1 + $0x148] sm:$0xf]
  %v102 = vld [vmem:[%s1 + $0x14c] sm:$0xf]
  %v103 = vld [vmem:[%s1 + $0x150] sm:$0xf]
  %v104 = vld [vmem:[%s1 + $0x154] sm:$0xf]
  %v105 = vld [vmem:[%s1 + $0x158] sm:$0xf]
  %v106 = vld [vmem:[%s1 + $0x15c] sm:$0xf]
  %v107 = vld [vmem:[%s1 + $0x160] sm:$0xf]
  %v108 = vld [vmem:[%s1 + $0x164] sm:$0xf]
  %v109 = vld [vmem:[%s1 + $0x168] sm:$0xf]
  %v110 = vld [vmem:[%s1 + $0x16c] sm:$0xf]
  %v111 = vld [vmem:[%s1 + $0x170] sm:$0xf]
  %v112 = vld [vmem:[%s1 + $0x174] sm:$0xf]
  %v113 = vld [vmem:[%s1 + $0x178] sm:$0xf]
  %v114 = vld [vmem:[%s1 + $0x17c] sm:$0xf]
  %v115 = vld [vmem:[%s1 + $0x180] sm:$0xf]
  %v116 = vld [vmem:[%s1 + $0x184] sm:$0xf]
  %v117 = vld [vmem:[%s1 + $0x188] sm:$0xf]
  %v118 = vld [vmem:[%s1 + $0x18c] sm:$0xf]
  %v119 = vld [vmem:[%s1 + $0x190] sm:$0xf]
  %v120 = vld [vmem:[%s1 + $0x194] sm:$0xf]
  %v121 = vld [vmem:[%s1 + $0x198] sm:$0xf]
  %v122 = vld [vmem:[%s1 + $0x19c] sm:$0xf]
  %v123 = vld [vmem:[%s1 + $0x1a0] sm:$0xf]
  %v124 = vld [vmem:[%s1 + $0x1a4] sm:$0xf]
  %v125 = vld [vmem:[%s1 + $0x1a8] sm:$0xf]
  %v126 = vld [vmem:[%s1 + $0x1ac] sm:$0xf]
  %v127 = vld [vmem:[%s1 + $0x1b0] sm:$0xf]
  %v128 = vld [vmem:[%s1 + $0x1b4] sm:$0xf]
  %v129 = vld [vmem:[%s1 + $0x1b8] sm:$0xf]
  %v130 = vld [vmem:[%s1 + $0x1bc] sm:$0xf]
  %v131 = vld [vmem:[%s1 + $0x1c0] sm:$0xf]
  %v132 = vld [vmem:[%s1 + $0x1c4] sm:$0xf]
  %v133 = vld [vmem:[%s1 + $0x1c8] sm:$0xf]
  %v134 = vld [vmem:[%s1 + $0x1cc] sm:$0xf]
  %v135 = vld [vmem:[%s1 + $0x1d0] sm:$0xf]
  %v136 = vld [vmem:[%s1 + $0x1d4] sm:$0xf]
  %v137 = vld [vmem:[%s1 + $0x1d8] sm:$0xf]
  %v138 = vld [vmem:[%s1 + $0x1dc] sm:$0xf]
  %v139 = vld [vmem:[%s1 + $0x1e0] sm:$0xf]
  %v140 = vld [vmem:[%s1 + $0x1e4] sm:$0xf]
  %v141 = vld [vmem:[%s1 + $0x1e8] sm:$0xf]
  %v142 = vld [vmem:[%s1 + $0x1ec] sm:$0xf]
  %v143 = vld [vmem:[%s1 + $0x1f0] sm:$0xf]
  %v144 = vld [vmem:[%s1 + $0x1f4] sm:$0xf]
  %v145 = vld [vmem:[%s1 + $0x1f8] sm:$0xf]
  %v146 = vld [vmem:[%s1 + $0x1fc] sm:$0xf]
  %v147 = vld [vmem:[%s2] sm:$0x1]
  %v149 = vlaneseq
  %v150 = vshrl.u32 %v149, 7
  %v151 = vsub.s32 0, %v150
  %v152 = vrot.slane %v147, %v151
  %v158 = vunpack.c.l.b16 %v15
  %v159 = vunpack.c.h.b16 %v15
  %v160 = vunpack.c.l.b16 %v16
  %v161 = vunpack.c.h.b16 %v16
  %v162 = vunpack.c.l.b16 %v17
  %v163 = vunpack.c.h.b16 %v17
  %v164 = vunpack.c.l.b16 %v18
  %v165 = vunpack.c.h.b16 %v18
  %v166 = vpack.c.b16 %v158, %v158
  %v167 = vpack.c.b16 %v159, %v159
  %v168 = vpack.c.b16 %v160, %v160
  %v169 = vpack.c.b16 %v161, %v161
  %v170 = vpack.c.b16 %v162, %v162
  %v171 = vpack.c.b16 %v163, %v163
  %v172 = vpack.c.b16 %v164, %v164
  %v173 = vpack.c.b16 %v165, %v165
  %v310 = vunpack.c.l.b16 %v19
  %v311 = vunpack.c.l.b16 %v20
  %v312 = vunpack.c.l.b16 %v21
  %v313 = vunpack.c.l.b16 %v22
  %v314 = vunpack.c.l.b16 %v23
  %v315 = vunpack.c.l.b16 %v24
  %v316 = vunpack.c.l.b16 %v25
  %v317 = vunpack.c.l.b16 %v26
  %v318 = vunpack.c.l.b16 %v27
  %v319 = vunpack.c.l.b16 %v28
  %v320 = vunpack.c.l.b16 %v29
  %v321 = vunpack.c.l.b16 %v30
  %v322 = vunpack.c.l.b16 %v31
  %v323 = vunpack.c.l.b16 %v32
  %v324 = vunpack.c.l.b16 %v33
  %v325 = vunpack.c.l.b16 %v34
  %v326 = vunpack.c.l.b16 %v35
  %v327 = vunpack.c.l.b16 %v36
  %v328 = vunpack.c.l.b16 %v37
  %v329 = vunpack.c.l.b16 %v38
  %v330 = vunpack.c.l.b16 %v39
  %v331 = vunpack.c.l.b16 %v40
  %v332 = vunpack.c.l.b16 %v41
  %v333 = vunpack.c.l.b16 %v42
  %v334 = vunpack.c.l.b16 %v43
  %v335 = vunpack.c.l.b16 %v44
  %v336 = vunpack.c.l.b16 %v45
  %v337 = vunpack.c.l.b16 %v46
  %v338 = vunpack.c.l.b16 %v47
  %v339 = vunpack.c.l.b16 %v48
  %v340 = vunpack.c.l.b16 %v49
  %v341 = vunpack.c.l.b16 %v50
  %v342 = vunpack.c.l.b16 %v51
  %v343 = vunpack.c.l.b16 %v52
  %v344 = vunpack.c.l.b16 %v53
  %v345 = vunpack.c.l.b16 %v54
  %v346 = vunpack.c.l.b16 %v55
  %v347 = vunpack.c.l.b16 %v56
  %v348 = vunpack.c.l.b16 %v57
  %v349 = vunpack.c.l.b16 %v58
  %v350 = vunpack.c.l.b16 %v59
  %v351 = vunpack.c.l.b16 %v60
  %v352 = vunpack.c.l.b16 %v61
  %v353 = vunpack.c.l.b16 %v62
  %v354 = vunpack.c.l.b16 %v63
  %v355 = vunpack.c.l.b16 %v64
  %v356 = vunpack.c.l.b16 %v65
  %v357 = vunpack.c.l.b16 %v66
  %v358 = vunpack.c.l.b16 %v67
  %v359 = vunpack.c.l.b16 %v68
  %v360 = vunpack.c.l.b16 %v69
  %v361 = vunpack.c.l.b16 %v70
  %v362 = vunpack.c.l.b16 %v71
  %v363 = vunpack.c.l.b16 %v72
  %v364 = vunpack.c.l.b16 %v73
  %v365 = vunpack.c.l.b16 %v74
  %v366 = vunpack.c.l.b16 %v75
  %v367 = vunpack.c.l.b16 %v76
  %v368 = vunpack.c.l.b16 %v77
  %v369 = vunpack.c.l.b16 %v78
  %v370 = vunpack.c.l.b16 %v79
  %v371 = vunpack.c.l.b16 %v80
  %v372 = vunpack.c.l.b16 %v81
  %v373 = vunpack.c.l.b16 %v82
  %v374 = vunpack.c.l.b16 %v83
  %v375 = vunpack.c.l.b16 %v84
  %v376 = vunpack.c.l.b16 %v85
  %v377 = vunpack.c.l.b16 %v86
  %v378 = vunpack.c.l.b16 %v87
  %v379 = vunpack.c.l.b16 %v88
  %v380 = vunpack.c.l.b16 %v89
  %v381 = vunpack.c.l.b16 %v90
  %v382 = vunpack.c.l.b16 %v91
  %v383 = vunpack.c.l.b16 %v92
  %v384 = vunpack.c.l.b16 %v93
  %v385 = vunpack.c.l.b16 %v94
  %v386 = vunpack.c.l.b16 %v95
  %v387 = vunpack.c.l.b16 %v96
  %v388 = vunpack.c.l.b16 %v97
  %v389 = vunpack.c.l.b16 %v98
  %v390 = vunpack.c.l.b16 %v99
  %v391 = vunpack.c.l.b16 %v100
  %v392 = vunpack.c.l.b16 %v101
  %v393 = vunpack.c.l.b16 %v102
  %v394 = vunpack.c.l.b16 %v103
  %v395 = vunpack.c.l.b16 %v104
  %v396 = vunpack.c.l.b16 %v105
  %v397 = vunpack.c.l.b16 %v106
  %v398 = vunpack.c.l.b16 %v107
  %v399 = vunpack.c.l.b16 %v108
  %v400 = vunpack.c.l.b16 %v109
  %v401 = vunpack.c.l.b16 %v110
  %v402 = vunpack.c.l.b16 %v111
  %v403 = vunpack.c.l.b16 %v112
  %v404 = vunpack.c.l.b16 %v113
  %v405 = vunpack.c.l.b16 %v114
  %v406 = vunpack.c.l.b16 %v115
  %v407 = vunpack.c.l.b16 %v116
  %v408 = vunpack.c.l.b16 %v117
  %v409 = vunpack.c.l.b16 %v118
  %v410 = vunpack.c.l.b16 %v119
  %v411 = vunpack.c.l.b16 %v120
  %v412 = vunpack.c.l.b16 %v121
  %v413 = vunpack.c.l.b16 %v122
  %v414 = vunpack.c.l.b16 %v123
  %v415 = vunpack.c.l.b16 %v124
  %v416 = vunpack.c.l.b16 %v125
  %v417 = vunpack.c.l.b16 %v126
  %v418 = vunpack.c.l.b16 %v127
  %v419 = vunpack.c.l.b16 %v128
  %v420 = vunpack.c.l.b16 %v129
  %v421 = vunpack.c.l.b16 %v130
  %v422 = vunpack.c.l.b16 %v131
  %v423 = vunpack.c.l.b16 %v132
  %v424 = vunpack.c.l.b16 %v133
  %v425 = vunpack.c.l.b16 %v134
  %v426 = vunpack.c.l.b16 %v135
  %v427 = vunpack.c.l.b16 %v136
  %v428 = vunpack.c.l.b16 %v137
  %v429 = vunpack.c.l.b16 %v138
  %v430 = vunpack.c.l.b16 %v139
  %v431 = vunpack.c.l.b16 %v140
  %v432 = vunpack.c.l.b16 %v141
  %v433 = vunpack.c.l.b16 %v142
  %v434 = vunpack.c.l.b16 %v143
  %v435 = vunpack.c.l.b16 %v144
  %v436 = vunpack.c.l.b16 %v145
  %v437 = vunpack.c.l.b16 %v146
  %v438 = vpack.c.b16 %v311, %v310
  %v439 = vpack.c.b16 %v313, %v312
  %v440 = vpack.c.b16 %v315, %v314
  %v441 = vpack.c.b16 %v317, %v316
  %v442 = vpack.c.b16 %v319, %v318
  %v443 = vpack.c.b16 %v321, %v320
  %v444 = vpack.c.b16 %v323, %v322
  %v445 = vpack.c.b16 %v325, %v324
  %v446 = vpack.c.b16 %v327, %v326
  %v447 = vpack.c.b16 %v329, %v328
  %v448 = vpack.c.b16 %v331, %v330
  %v449 = vpack.c.b16 %v333, %v332
  %v450 = vpack.c.b16 %v335, %v334
  %v451 = vpack.c.b16 %v337, %v336
  %v452 = vpack.c.b16 %v339, %v338
  %v453 = vpack.c.b16 %v341, %v340
  %v454 = vpack.c.b16 %v343, %v342
  %v455 = vpack.c.b16 %v345, %v344
  %v456 = vpack.c.b16 %v347, %v346
  %v457 = vpack.c.b16 %v349, %v348
  %v458 = vpack.c.b16 %v351, %v350
  %v459 = vpack.c.b16 %v353, %v352
  %v460 = vpack.c.b16 %v355, %v354
  %v461 = vpack.c.b16 %v357, %v356
  %v462 = vpack.c.b16 %v359, %v358
  %v463 = vpack.c.b16 %v361, %v360
  %v464 = vpack.c.b16 %v363, %v362
  %v465 = vpack.c.b16 %v365, %v364
  %v466 = vpack.c.b16 %v367, %v366
  %v467 = vpack.c.b16 %v369, %v368
  %v468 = vpack.c.b16 %v371, %v370
  %v469 = vpack.c.b16 %v373, %v372
  %v470 = vpack.c.b16 %v375, %v374
  %v471 = vpack.c.b16 %v377, %v376
  %v472 = vpack.c.b16 %v379, %v378
  %v473 = vpack.c.b16 %v381, %v380
  %v474 = vpack.c.b16 %v383, %v382
  %v475 = vpack.c.b16 %v385, %v384
  %v476 = vpack.c.b16 %v387, %v386
  %v477 = vpack.c.b16 %v389, %v388
  %v478 = vpack.c.b16 %v391, %v390
  %v479 = vpack.c.b16 %v393, %v392
  %v480 = vpack.c.b16 %v395, %v394
  %v481 = vpack.c.b16 %v397, %v396
  %v482 = vpack.c.b16 %v399, %v398
  %v483 = vpack.c.b16 %v401, %v400
  %v484 = vpack.c.b16 %v403, %v402
  %v485 = vpack.c.b16 %v405, %v404
  %v486 = vpack.c.b16 %v407, %v406
  %v487 = vpack.c.b16 %v409, %v408
  %v488 = vpack.c.b16 %v411, %v410
  %v489 = vpack.c.b16 %v413, %v412
  %v490 = vpack.c.b16 %v415, %v414
  %v491 = vpack.c.b16 %v417, %v416
  %v492 = vpack.c.b16 %v419, %v418
  %v493 = vpack.c.b16 %v421, %v420
  %v494 = vpack.c.b16 %v423, %v422
  %v495 = vpack.c.b16 %v425, %v424
  %v496 = vpack.c.b16 %v427, %v426
  %v497 = vpack.c.b16 %v429, %v428
  %v498 = vpack.c.b16 %v431, %v430
  %v499 = vpack.c.b16 %v433, %v432
  %v500 = vpack.c.b16 %v435, %v434
  %v501 = vpack.c.b16 %v437, %v436
  %566 = vmatprep.subr.bf16.mxu0 0
  %567 = vmatpush1.bf16.msra.mxu0 %v438
  %568 = vmatprep.subr.bf16.mxu0 0
  %569 = vmatpush1.bf16.msra.mxu0 %v439
  %570 = vmatprep.subr.bf16.mxu0 0
  %571 = vmatpush1.bf16.msra.mxu0 %v440
  %572 = vmatprep.subr.bf16.mxu0 0
  %573 = vmatpush1.bf16.msra.mxu0 %v441
  %574 = vmatprep.subr.bf16.mxu0 0
  %575 = vmatpush1.bf16.msra.mxu0 %v442
  %576 = vmatprep.subr.bf16.mxu0 0
  %577 = vmatpush1.bf16.msra.mxu0 %v443
  %578 = vmatprep.subr.bf16.mxu0 0
  %579 = vmatpush1.bf16.msra.mxu0 %v444
  %580 = vmatprep.subr.bf16.mxu0 0
  %581 = vmatpush1.bf16.msra.mxu0 %v445
  %582 = vmatprep.subr.bf16.mxu0 0
  %583 = vmatpush1.bf16.msra.mxu0 %v446
  %584 = vmatprep.subr.bf16.mxu0 0
  %585 = vmatpush1.bf16.msra.mxu0 %v447
  %586 = vmatprep.subr.bf16.mxu0 0
  %587 = vmatpush1.bf16.msra.mxu0 %v448
  %588 = vmatprep.subr.bf16.mxu0 0
  %589 = vmatpush1.bf16.msra.mxu0 %v449
  %590 = vmatprep.subr.bf16.mxu0 0
  %591 = vmatpush1.bf16.msra.mxu0 %v450
  %592 = vmatprep.subr.bf16.mxu0 0
  %593 = vmatpush1.bf16.msra.mxu0 %v451
  %594 = vmatprep.subr.bf16.mxu0 0
  %595 = vmatpush1.bf16.msra.mxu0 %v452
  %596 = vmatprep.subr.bf16.mxu0 0
  %597 = vmatpush1.bf16.msra.mxu0 %v453
  %598 = vmatprep.mubr.bf16.mxu0 %v167
  %599 = vmatmul.mubr.bf16.gmra.mrb[0].mxu0 %v166
  %v600 = vpop.f32.mrb[0].mxu0
  %v601 = vadd.f32 %v152, %v600
  %v602 = vpop.f32.mrb[0].mxu0
  %v603 = vpop.f32.mrb[0].mxu0
  %v604 = vpop.f32.mrb[0].mxu0
  %605 = vdwg.mxu0
  %606 = vmatprep.subr.bf16.mxu0 0
  %607 = vmatpush1.bf16.msra.mxu0 %v454
  %608 = vmatprep.subr.bf16.mxu0 0
  %609 = vmatpush1.bf16.msra.mxu0 %v455
  %610 = vmatprep.subr.bf16.mxu0 0
  %611 = vmatpush1.bf16.msra.mxu0 %v456
  %612 = vmatprep.subr.bf16.mxu0 0
  %613 = vmatpush1.bf16.msra.mxu0 %v457
  %614 = vmatprep.subr.bf16.mxu0 0
  %615 = vmatpush1.bf16.msra.mxu0 %v458
  %616 = vmatprep.subr.bf16.mxu0 0
  %617 = vmatpush1.bf16.msra.mxu0 %v459
  %618 = vmatprep.subr.bf16.mxu0 0
  %619 = vmatpush1.bf16.msra.mxu0 %v460
  %620 = vmatprep.subr.bf16.mxu0 0
  %621 = vmatpush1.bf16.msra.mxu0 %v461
  %622 = vmatprep.subr.bf16.mxu0 0
  %623 = vmatpush1.bf16.msra.mxu0 %v462
  %624 = vmatprep.subr.bf16.mxu0 0
  %625 = vmatpush1.bf16.msra.mxu0 %v463
  %626 = vmatprep.subr.bf16.mxu0 0
  %627 = vmatpush1.bf16.msra.mxu0 %v464
  %628 = vmatprep.subr.bf16.mxu0 0
  %629 = vmatpush1.bf16.msra.mxu0 %v465
  %630 = vmatprep.subr.bf16.mxu0 0
  %631 = vmatpush1.bf16.msra.mxu0 %v466
  %632 = vmatprep.subr.bf16.mxu0 0
  %633 = vmatpush1.bf16.msra.mxu0 %v467
  %634 = vmatprep.subr.bf16.mxu0 0
  %635 = vmatpush1.bf16.msra.mxu0 %v468
  %636 = vmatprep.subr.bf16.mxu0 0
  %637 = vmatpush1.bf16.msra.mxu0 %v469
  %638 = vmatprep.mubr.bf16.mxu0 %v169
  %639 = vmatmul.mubr.bf16.gmra.mrb[0].mxu0 %v168
  %v640 = vpop.f32.mrb[0].mxu0
  %v641 = vadd.f32 %v601, %v640
  %v642 = vpop.f32.mrb[0].mxu0
  %v643 = vpop.f32.mrb[0].mxu0
  %v644 = vpop.f32.mrb[0].mxu0
  %645 = vdwg.mxu0
  %646 = vmatprep.subr.bf16.mxu0 0
  %647 = vmatpush1.bf16.msra.mxu0 %v470
  %648 = vmatprep.subr.bf16.mxu0 0
  %649 = vmatpush1.bf16.msra.mxu0 %v471
  %650 = vmatprep.subr.bf16.mxu0 0
  %651 = vmatpush1.bf16.msra.mxu0 %v472
  %652 = vmatprep.subr.bf16.mxu0 0
  %653 = vmatpush1.bf16.msra.mxu0 %v473
  %654 = vmatprep.subr.bf16.mxu0 0
  %655 = vmatpush1.bf16.msra.mxu0 %v474
  %656 = vmatprep.subr.bf16.mxu0 0
  %657 = vmatpush1.bf16.msra.mxu0 %v475
  %658 = vmatprep.subr.bf16.mxu0 0
  %659 = vmatpush1.bf16.msra.mxu0 %v476
  %660 = vmatprep.subr.bf16.mxu0 0
  %661 = vmatpush1.bf16.msra.mxu0 %v477
  %662 = vmatprep.subr.bf16.mxu0 0
  %663 = vmatpush1.bf16.msra.mxu0 %v478
  %664 = vmatprep.subr.bf16.mxu0 0
  %665 = vmatpush1.bf16.msra.mxu0 %v479
  %666 = vmatprep.subr.bf16.mxu0 0
  %667 = vmatpush1.bf16.msra.mxu0 %v480
  %668 = vmatprep.subr.bf16.mxu0 0
  %669 = vmatpush1.bf16.msra.mxu0 %v481
  %670 = vmatprep.subr.bf16.mxu0 0
  %671 = vmatpush1.bf16.msra.mxu0 %v482
  %672 = vmatprep.subr.bf16.mxu0 0
  %673 = vmatpush1.bf16.msra.mxu0 %v483
  %674 = vmatprep.subr.bf16.mxu0 0
  %675 = vmatpush1.bf16.msra.mxu0 %v484
  %676 = vmatprep.subr.bf16.mxu0 0
  %677 = vmatpush1.bf16.msra.mxu0 %v485
  %678 = vmatprep.mubr.bf16.mxu0 %v171
  %679 = vmatmul.mubr.bf16.gmra.mrb[0].mxu0 %v170
  %v680 = vpop.f32.mrb[0].mxu0
  %v681 = vadd.f32 %v641, %v680
  %v682 = vpop.f32.mrb[0].mxu0
  %v683 = vpop.f32.mrb[0].mxu0
  %v684 = vpop.f32.mrb[0].mxu0
  %685 = vdwg.mxu0
  %686 = vmatprep.subr.bf16.mxu0 0
  %687 = vmatpush1.bf16.msra.mxu0 %v486
  %688 = vmatprep.subr.bf16.mxu0 0
  %689 = vmatpush1.bf16.msra.mxu0 %v487
  %690 = vmatprep.subr.bf16.mxu0 0
  %691 = vmatpush1.bf16.msra.mxu0 %v488
  %692 = vmatprep.subr.bf16.mxu0 0
  %693 = vmatpush1.bf16.msra.mxu0 %v489
  %694 = vmatprep.subr.bf16.mxu0 0
  %695 = vmatpush1.bf16.msra.mxu0 %v490
  %696 = vmatprep.subr.bf16.mxu0 0
  %697 = vmatpush1.bf16.msra.mxu0 %v491
  %698 = vmatprep.subr.bf16.mxu0 0
  %699 = vmatpush1.bf16.msra.mxu0 %v492
  %700 = vmatprep.subr.bf16.mxu0 0
  %701 = vmatpush1.bf16.msra.mxu0 %v493
  %702 = vmatprep.subr.bf16.mxu0 0
  %703 = vmatpush1.bf16.msra.mxu0 %v494
  %704 = vmatprep.subr.bf16.mxu0 0
  %705 = vmatpush1.bf16.msra.mxu0 %v495
  %706 = vmatprep.subr.bf16.mxu0 0
  %707 = vmatpush1.bf16.msra.mxu0 %v496
  %708 = vmatprep.subr.bf16.mxu0 0
  %709 = vmatpush1.bf16.msra.mxu0 %v497
  %710 = vmatprep.subr.bf16.mxu0 0
  %711 = vmatpush1.bf16.msra.mxu0 %v498
  %712 = vmatprep.subr.bf16.mxu0 0
  %713 = vmatpush1.bf16.msra.mxu0 %v499
  %714 = vmatprep.subr.bf16.mxu0 0
  %715 = vmatpush1.bf16.msra.mxu0 %v500
  %716 = vmatprep.subr.bf16.mxu0 0
  %717 = vmatpush1.bf16.msra.mxu0 %v501
  %718 = vmatprep.mubr.bf16.mxu0 %v173
  %719 = vmatmul.mubr.bf16.gmra.mrb[0].mxu0 %v172
  %v720 = vpop.f32.mrb[0].mxu0
  %v721 = vadd.f32 %v681, %v720
  %v722 = vpop.f32.mrb[0].mxu0
  %v723 = vpop.f32.mrb[0].mxu0
  %v724 = vpop.f32.mrb[0].mxu0
  %725 = vdwg.mxu0
  %726 = vst [vmem:[%s3] sm:$0xff] %v721
  // Predicated region
  $region14: #{convnet_forward.7} parent=0 // pred_check
    _
  $region15: #{convnet_forward.7} parent=0 // pred_check_branch
    %728 = sbr.rel (0) target = $region17
  $region16: #{convnet_forward.7} parent=0 // pred_region
    _
  $region17: #{convnet_forward.7} parent=0 // pred_fallthru
    _
  // Predicated region
  $region18: #{convnet_forward.7} parent=0 // pred_check
    _
  $region19: #{convnet_forward.7} parent=0 // pred_check_branch
    %730 = sbr.rel (0) target = $region21
  $region20: #{convnet_forward.7} parent=0 // pred_region
    _
  $region21: #{convnet_forward.7} parent=0 // pred_fallthru
    _

// kernel: convnet_forward.5
$region0: #{convnet_forward.5}
  #allocation0 [shape = 'u32[]', space=smem, size = 0x4, offset = 0x4, fixed_abs, tag = 'smem constant byte address 0x4 - core index']
  #allocation1 [shape = 'u32[144,128]{1,0:T(1,128)}', space=vmem, size = 0x12000, scoped, tag = 'internal scratch']
  %s0 = inlined_call_operand.vmem [shape: bf16[4,32,800], index: 0, kind: input, shape index: {}]
  %s1 = inlined_call_operand.vmem [shape: bf16[800,64], index: 1, kind: input, shape index: {}]
  %s2 = inlined_call_operand.vmem [shape: f32[1,64], index: 2, kind: input, shape index: {}]
  %s3 = inlined_call_operand.vmem [shape: bf16[32,64], index: 3, kind: output, shape index: {}]
  %s4 = sld [smem:[#allocation0]]
  $region22: #{convnet_forward.5} parent=0
    _
  %s6 = ssub.s32 1, %s4
  %s7 = scalar_select 0, %s6, %s4
  // Predicated region
  $region2: #{convnet_forward.5} parent=0 // pred_check
    _
  $region3: #{convnet_forward.5} parent=0 // pred_check_branch
    %9 = sbr.rel (0) target = $region5
  $region4: #{convnet_forward.5} parent=0 // pred_region
    _
  $region5: #{convnet_forward.5} parent=0 // pred_fallthru
    _
  // Predicated region
  $region6: #{convnet_forward.5} parent=0 // pred_check
    _
  $region7: #{convnet_forward.5} parent=0 // pred_check_branch
    %11 = sbr.rel (0) target = $region9
  $region8: #{convnet_forward.5} parent=0 // pred_region
    _
  $region9: #{convnet_forward.5} parent=0 // pred_fallthru
    _
  // Predicated region
  $region10: #{convnet_forward.5} parent=0 // pred_check
    _
  $region11: #{convnet_forward.5} parent=0 // pred_check_branch
    %13 = sbr.rel (0) target = $region13
  $region12: #{convnet_forward.5} parent=0 // pred_region
    _
  $region13: #{convnet_forward.5} parent=0 // pred_fallthru
    _
  %v15 = vld [vmem:[%s1] sm:$0xf]
  %v16 = vld [vmem:[%s1 + $0x4] sm:$0xf]
  %v17 = vld [vmem:[%s1 + $0x8] sm:$0xf]
  %v18 = vld [vmem:[%s1 + $0xc] sm:$0xf]
  %v19 = vld [vmem:[%s1 + $0x10] sm:$0xf]
  %v20 = vld [vmem:[%s1 + $0x14] sm:$0xf]
  %v21 = vld [vmem:[%s1 + $0x18] sm:$0xf]
  %v22 = vld [vmem:[%s1 + $0x1c] sm:$0xf]
  %v23 = vld [vmem:[%s1 + $0x20] sm:$0xf]
  %v24 = vld [vmem:[%s1 + $0x24] sm:$0xf]
  %v25 = vld [vmem:[%s1 + $0x28] sm:$0xf]
  %v26 = vld [vmem:[%s1 + $0x2c] sm:$0xf]
  %v27 = vld [vmem:[%s1 + $0x30] sm:$0xf]
  %v28 = vld [vmem:[%s1 + $0x34] sm:$0xf]
  %v29 = vld [vmem:[%s1 + $0x38] sm:$0xf]
  %v30 = vld [vmem:[%s1 + $0x3c] sm:$0xf]
  %v31 = vld [vmem:[%s1 + $0x40] sm:$0xf]
  %v32 = vld [vmem:[%s1 + $0x44] sm:$0xf]
  %v33 = vld [vmem:[%s1 + $0x48] sm:$0xf]
  %v34 = vld [vmem:[%s1 + $0x4c] sm:$0xf]
  %v35 = vld [vmem:[%s1 + $0x50] sm:$0xf]
  %v36 = vld [vmem:[%s1 + $0x54] sm:$0xf]
  %v37 = vld [vmem:[%s1 + $0x58] sm:$0xf]
  %v38 = vld [vmem:[%s1 + $0x5c] sm:$0xf]
  %v39 = vld [vmem:[%s1 + $0x60] sm:$0xf]
  %v40 = vld [vmem:[%s1 + $0x64] sm:$0xf]
  %v41 = vld [vmem:[%s1 + $0x68] sm:$0xf]
  %v42 = vld [vmem:[%s1 + $0x6c] sm:$0xf]
  %v43 = vld [vmem:[%s1 + $0x70] sm:$0xf]
  %v44 = vld [vmem:[%s1 + $0x74] sm:$0xf]
  %v45 = vld [vmem:[%s1 + $0x78] sm:$0xf]
  %v46 = vld [vmem:[%s1 + $0x7c] sm:$0xf]
  %v47 = vld [vmem:[%s1 + $0x80] sm:$0xf]
  %v48 = vld [vmem:[%s1 + $0x84] sm:$0xf]
  %v49 = vld [vmem:[%s1 + $0x88] sm:$0xf]
  %v50 = vld [vmem:[%s1 + $0x8c] sm:$0xf]
  %v51 = vld [vmem:[%s1 + $0x90] sm:$0xf]
  %v52 = vld [vmem:[%s1 + $0x94] sm:$0xf]
  %v53 = vld [vmem:[%s1 + $0x98] sm:$0xf]
  %v54 = vld [vmem:[%s1 + $0x9c] sm:$0xf]
  %v55 = vld [vmem:[%s1 + $0xa0] sm:$0xf]
  %v56 = vld [vmem:[%s1 + $0xa4] sm:$0xf]
  %v57 = vld [vmem:[%s1 + $0xa8] sm:$0xf]
  %v58 = vld [vmem:[%s1 + $0xac] sm:$0xf]
  %v59 = vld [vmem:[%s1 + $0xb0] sm:$0xf]
  %v60 = vld [vmem:[%s1 + $0xb4] sm:$0xf]
  %v61 = vld [vmem:[%s1 + $0xb8] sm:$0xf]
  %v62 = vld [vmem:[%s1 + $0xbc] sm:$0xf]
  %v63 = vld [vmem:[%s1 + $0xc0] sm:$0xf]
  %v64 = vld [vmem:[%s1 + $0xc4] sm:$0xf]
  %v65 = vld [vmem:[%s1 + $0xc8] sm:$0xf]
  %v66 = vld [vmem:[%s1 + $0xcc] sm:$0xf]
  %v67 = vld [vmem:[%s1 + $0xd0] sm:$0xf]
  %v68 = vld [vmem:[%s1 + $0xd4] sm:$0xf]
  %v69 = vld [vmem:[%s1 + $0xd8] sm:$0xf]
  %v70 = vld [vmem:[%s1 + $0xdc] sm:$0xf]
  %v71 = vld [vmem:[%s1 + $0xe0] sm:$0xf]
  %v72 = vld [vmem:[%s1 + $0xe4] sm:$0xf]
  %v73 = vld [vmem:[%s1 + $0xe8] sm:$0xf]
  %v74 = vld [vmem:[%s1 + $0xec] sm:$0xf]
  %v75 = vld [vmem:[%s1 + $0xf0] sm:$0xf]
  %v76 = vld [vmem:[%s1 + $0xf4] sm:$0xf]
  %v77 = vld [vmem:[%s1 + $0xf8] sm:$0xf]
  %v78 = vld [vmem:[%s1 + $0xfc] sm:$0xf]
  %v79 = vld [vmem:[%s1 + $0x100] sm:$0xf]
  %v80 = vld [vmem:[%s1 + $0x104] sm:$0xf]
  %v81 = vld [vmem:[%s1 + $0x108] sm:$0xf]
  %v82 = vld [vmem:[%s1 + $0x10c] sm:$0xf]
  %v83 = vld [vmem:[%s1 + $0x110] sm:$0xf]
  %v84 = vld [vmem:[%s1 + $0x114] sm:$0xf]
  %v85 = vld [vmem:[%s1 + $0x118] sm:$0xf]
  %v86 = vld [vmem:[%s1 + $0x11c] sm:$0xf]
  %v87 = vld [vmem:[%s1 + $0x120] sm:$0xf]
  %v88 = vld [vmem:[%s1 + $0x124] sm:$0xf]
  %v89 = vld [vmem:[%s1 + $0x128] sm:$0xf]
  %v90 = vld [vmem:[%s1 + $0x12c] sm:$0xf]
  %v91 = vld [vmem:[%s1 + $0x130] sm:$0xf]
  %v92 = vld [vmem:[%s1 + $0x134] sm:$0xf]
  %v93 = vld [vmem:[%s1 + $0x138] sm:$0xf]
  %v94 = vld [vmem:[%s1 + $0x13c] sm:$0xf]
  %v95 = vld [vmem:[%s1 + $0x140] sm:$0xf]
  %v96 = vld [vmem:[%s1 + $0x144] sm:$0xf]
  %v97 = vld [vmem:[%s1 + $0x148] sm:$0xf]
  %v98 = vld [vmem:[%s1 + $0x14c] sm:$0xf]
  %v99 = vld [vmem:[%s1 + $0x150] sm:$0xf]
  %v100 = vld [vmem:[%s1 + $0x154] sm:$0xf]
  %v101 = vld [vmem:[%s1 + $0x158] sm:$0xf]
  %v102 = vld [vmem:[%s1 + $0x15c] sm:$0xf]
  %v103 = vld [vmem:[%s1 + $0x160] sm:$0xf]
  %v104 = vld [vmem:[%s1 + $0x164] sm:$0xf]
  %v105 = vld [vmem:[%s1 + $0x168] sm:$0xf]
  %v106 = vld [vmem:[%s1 + $0x16c] sm:$0xf]
  %v107 = vld [vmem:[%s1 + $0x170] sm:$0xf]
  %v108 = vld [vmem:[%s1 + $0x174] sm:$0xf]
  %v109 = vld [vmem:[%s1 + $0x178] sm:$0xf]
  %v110 = vld [vmem:[%s1 + $0x17c] sm:$0xf]
  %v111 = vld [vmem:[%s1 + $0x180] sm:$0xf]
  %v112 = vld [vmem:[%s1 + $0x184] sm:$0xf]
  %v113 = vld [vmem:[%s1 + $0x188] sm:$0xf]
  %v114 = vld [vmem:[%s1 + $0x18c] sm:$0xf]
  %v115 = vld [vmem:[%s0] sm:$0xff]
  %v116 = vld [vmem:[%s0 + $0x8] sm:$0xff]
  %v117 = vld [vmem:[%s0 + $0x10] sm:$0xff]
  %v118 = vld [vmem:[%s0 + $0x18] sm:$0xf]
  %v119 = vld [vmem:[%s0 + $0x1c] sm:$0xff]
  %v120 = vld [vmem:[%s0 + $0x24] sm:$0xff]
  %v121 = vld [vmem:[%s0 + $0x2c] sm:$0xff]
  %v122 = vld [vmem:[%s0 + $0x34] sm:$0xf]
  %v123 = vld [vmem:[%s0 + $0x38] sm:$0xff]
  %v124 = vld [vmem:[%s0 + $0x40] sm:$0xff]
  %v125 = vld [vmem:[%s0 + $0x48] sm:$0xff]
  %v126 = vld [vmem:[%s0 + $0x50] sm:$0xf]
  %v127 = vld [vmem:[%s0 + $0x54] sm:$0xff]
  %v128 = vld [vmem:[%s0 + $0x5c] sm:$0xff]
  %v129 = vld [vmem:[%s0 + $0x64] sm:$0xff]
  %v130 = vld [vmem:[%s0 + $0x6c] sm:$0xf]
  %v147 = vunpack.c.l.b16 %v115
  %v148 = vunpack.c.h.b16 %v115
  %v149 = vunpack.c.l.b16 %v116
  %v150 = vunpack.c.h.b16 %v116
  %v151 = vunpack.c.l.b16 %v117
  %v152 = vunpack.c.h.b16 %v117
  %v153 = vunpack.c.l.b16 %v118
  %v154 = vunpack.c.l.b16 %v119
  %v155 = vunpack.c.h.b16 %v119
  %v156 = vunpack.c.l.b16 %v120
  %v157 = vunpack.c.h.b16 %v120
  %v158 = vunpack.c.l.b16 %v121
  %v159 = vunpack.c.h.b16 %v121
  %v160 = vunpack.c.l.b16 %v122
  %v161 = vunpack.c.l.b16 %v123
  %v162 = vunpack.c.h.b16 %v123
  %v163 = vunpack.c.l.b16 %v124
  %v164 = vunpack.c.h.b16 %v124
  %v165 = vunpack.c.l.b16 %v125
  %v166 = vunpack.c.h.b16 %v125
  %v167 = vunpack.c.l.b16 %v126
  %v168 = vunpack.c.l.b16 %v127
  %v169 = vunpack.c.h.b16 %v127
  %v170 = vunpack.c.l.b16 %v128
  %v171 = vunpack.c.h.b16 %v128
  %v172 = vunpack.c.l.b16 %v129
  %v173 = vunpack.c.h.b16 %v129
  %v174 = vunpack.c.l.b16 %v130
  %v175 = vpack.c.b16 %v154, %v147
  %v176 = vpack.c.b16 %v155, %v148
  %v177 = vpack.c.b16 %v156, %v149
  %v178 = vpack.c.b16 %v157, %v150
  %v179 = vpack.c.b16 %v158, %v151
  %v180 = vpack.c.b16 %v159, %v152
  %v181 = vpack.c.b16 %v160, %v153
  %v182 = vpack.c.b16 %v168, %v161
  %v183 = vpack.c.b16 %v169, %v162
  %v184 = vpack.c.b16 %v170, %v163
  %v185 = vpack.c.b16 %v171, %v164
  %v186 = vpack.c.b16 %v172, %v165
  %v187 = vpack.c.b16 %v173, %v166
  %v188 = vpack.c.b16 %v174, %v167
  %v301 = vunpack.c.l.b16 %v15
  %v302 = vunpack.c.l.b16 %v16
  %v303 = vunpack.c.l.b16 %v17
  %v304 = vunpack.c.l.b16 %v18
  %v305 = vunpack.c.l.b16 %v19
  %v306 = vunpack.c.l.b16 %v20
  %v307 = vunpack.c.l.b16 %v21
  %v308 = vunpack.c.l.b16 %v22
  %v309 = vunpack.c.l.b16 %v23
  %v310 = vunpack.c.l.b16 %v24
  %v311 = vunpack.c.l.b16 %v25
  %v312 = vunpack.c.l.b16 %v26
  %v313 = vunpack.c.l.b16 %v27
  %v314 = vunpack.c.l.b16 %v28
  %v315 = vunpack.c.l.b16 %v29
  %v316 = vunpack.c.l.b16 %v30
  %v317 = vunpack.c.l.b16 %v31
  %v318 = vunpack.c.l.b16 %v32
  %v319 = vunpack.c.l.b16 %v33
  %v320 = vunpack.c.l.b16 %v34
  %v321 = vunpack.c.l.b16 %v35
  %v322 = vunpack.c.l.b16 %v36
  %v323 = vunpack.c.l.b16 %v37
  %v324 = vunpack.c.l.b16 %v38
  %v325 = vunpack.c.l.b16 %v39
  %v326 = vunpack.c.l.b16 %v40
  %v327 = vunpack.c.l.b16 %v41
  %v328 = vunpack.c.l.b16 %v42
  %v329 = vunpack.c.l.b16 %v43
  %v330 = vunpack.c.l.b16 %v44
  %v331 = vunpack.c.l.b16 %v45
  %v332 = vunpack.c.l.b16 %v46
  %v333 = vunpack.c.l.b16 %v47
  %v334 = vunpack.c.l.b16 %v48
  %v335 = vunpack.c.l.b16 %v49
  %v336 = vunpack.c.l.b16 %v50
  %v337 = vunpack.c.l.b16 %v51
  %v338 = vunpack.c.l.b16 %v52
  %v339 = vunpack.c.l.b16 %v53
  %v340 = vunpack.c.l.b16 %v54
  %v341 = vunpack.c.l.b16 %v55
  %v342 = vunpack.c.l.b16 %v56
  %v343 = vunpack.c.l.b16 %v57
  %v344 = vunpack.c.l.b16 %v58
  %v345 = vunpack.c.l.b16 %v59
  %v346 = vunpack.c.l.b16 %v60
  %v347 = vunpack.c.l.b16 %v61
  %v348 = vunpack.c.l.b16 %v62
  %v349 = vunpack.c.l.b16 %v63
  %v350 = vunpack.c.l.b16 %v64
  %v351 = vunpack.c.l.b16 %v65
  %v352 = vunpack.c.l.b16 %v66
  %v353 = vunpack.c.l.b16 %v67
  %v354 = vunpack.c.l.b16 %v68
  %v355 = vunpack.c.l.b16 %v69
  %v356 = vunpack.c.l.b16 %v70
  %v357 = vunpack.c.l.b16 %v71
  %v358 = vunpack.c.l.b16 %v72
  %v359 = vunpack.c.l.b16 %v73
  %v360 = vunpack.c.l.b16 %v74
  %v361 = vunpack.c.l.b16 %v75
  %v362 = vunpack.c.l.b16 %v76
  %v363 = vunpack.c.l.b16 %v77
  %v364 = vunpack.c.l.b16 %v78
  %v365 = vunpack.c.l.b16 %v79
  %v366 = vunpack.c.l.b16 %v80
  %v367 = vunpack.c.l.b16 %v81
  %v368 = vunpack.c.l.b16 %v82
  %v369 = vunpack.c.l.b16 %v83
  %v370 = vunpack.c.l.b16 %v84
  %v371 = vunpack.c.l.b16 %v85
  %v372 = vunpack.c.l.b16 %v86
  %v373 = vunpack.c.l.b16 %v87
  %v374 = vunpack.c.l.b16 %v88
  %v375 = vunpack.c.l.b16 %v89
  %v376 = vunpack.c.l.b16 %v90
  %v377 = vunpack.c.l.b16 %v91
  %v378 = vunpack.c.l.b16 %v92
  %v379 = vunpack.c.l.b16 %v93
  %v380 = vunpack.c.l.b16 %v94
  %v381 = vunpack.c.l.b16 %v95
  %v382 = vunpack.c.l.b16 %v96
  %v383 = vunpack.c.l.b16 %v97
  %v384 = vunpack.c.l.b16 %v98
  %v385 = vunpack.c.l.b16 %v99
  %v386 = vunpack.c.l.b16 %v100
  %v387 = vunpack.c.l.b16 %v101
  %v388 = vunpack.c.l.b16 %v102
  %v389 = vunpack.c.l.b16 %v103
  %v390 = vunpack.c.l.b16 %v104
  %v391 = vunpack.c.l.b16 %v105
  %v392 = vunpack.c.l.b16 %v106
  %v393 = vunpack.c.l.b16 %v107
  %v394 = vunpack.c.l.b16 %v108
  %v395 = vunpack.c.l.b16 %v109
  %v396 = vunpack.c.l.b16 %v110
  %v397 = vunpack.c.l.b16 %v111
  %v398 = vunpack.c.l.b16 %v112
  %v399 = vunpack.c.l.b16 %v113
  %v400 = vunpack.c.l.b16 %v114
  %v401 = vpack.c.b16 %v302, %v301
  %v402 = vpack.c.b16 %v304, %v303
  %v403 = vpack.c.b16 %v306, %v305
  %v404 = vpack.c.b16 %v308, %v307
  %v405 = vpack.c.b16 %v310, %v309
  %v406 = vpack.c.b16 %v312, %v311
  %v407 = vpack.c.b16 %v314, %v313
  %v408 = vpack.c.b16 %v316, %v315
  %v409 = vpack.c.b16 %v318, %v317
  %v410 = vpack.c.b16 %v320, %v319
  %v411 = vpack.c.b16 %v322, %v321
  %v412 = vpack.c.b16 %v324, %v323
  %v413 = vpack.c.b16 %v326, %v325
  %v414 = vpack.c.b16 %v328, %v327
  %v415 = vpack.c.b16 %v330, %v329
  %v416 = vpack.c.b16 %v332, %v331
  %v417 = vpack.c.b16 %v334, %v333
  %v418 = vpack.c.b16 %v336, %v335
  %v419 = vpack.c.b16 %v338, %v337
  %v420 = vpack.c.b16 %v340, %v339
  %v421 = vpack.c.b16 %v342, %v341
  %v422 = vpack.c.b16 %v344, %v343
  %v423 = vpack.c.b16 %v346, %v345
  %v424 = vpack.c.b16 %v348, %v347
  %v425 = vpack.c.b16 %v350, %v349
  %v426 = vpack.c.b16 %v352, %v351
  %v427 = vpack.c.b16 %v354, %v353
  %v428 = vpack.c.b16 %v356, %v355
  %v429 = vpack.c.b16 %v358, %v357
  %v430 = vpack.c.b16 %v360, %v359
  %v431 = vpack.c.b16 %v362, %v361
  %v432 = vpack.c.b16 %v364, %v363
  %v433 = vpack.c.b16 %v366, %v365
  %v434 = vpack.c.b16 %v368, %v367
  %v435 = vpack.c.b16 %v370, %v369
  %v436 = vpack.c.b16 %v372, %v371
  %v437 = vpack.c.b16 %v374, %v373
  %v438 = vpack.c.b16 %v376, %v375
  %v439 = vpack.c.b16 %v378, %v377
  %v440 = vpack.c.b16 %v380, %v379
  %v441 = vpack.c.b16 %v382, %v381
  %v442 = vpack.c.b16 %v384, %v383
  %v443 = vpack.c.b16 %v386, %v385
  %v444 = vpack.c.b16 %v388, %v387
  %v445 = vpack.c.b16 %v390, %v389
  %v446 = vpack.c.b16 %v392, %v391
  %v447 = vpack.c.b16 %v394, %v393
  %v448 = vpack.c.b16 %v396, %v395
  %v449 = vpack.c.b16 %v398, %v397
  %v450 = vpack.c.b16 %v400, %v399
  %vm501 = vcmask 261120
  %v503 = vsel %vm501, %v181, 0
  %v506 = vsel %vm501, %v188, 0
  %508 = vmatprep.subr.bf16.mxu0 0
  %509 = vmatpush1.bf16.msra.mxu0 %v401
  %510 = vmatprep.subr.bf16.mxu0 0
  %511 = vmatpush1.bf16.msra.mxu0 %v402
  %512 = vmatprep.subr.bf16.mxu0 0
  %513 = vmatpush1.bf16.msra.mxu0 %v403
  %514 = vmatprep.subr.bf16.mxu0 0
  %515 = vmatpush1.bf16.msra.mxu0 %v404
  %516 = vmatprep.subr.bf16.mxu0 0
  %517 = vmatpush1.bf16.msra.mxu0 %v405
  %518 = vmatprep.subr.bf16.mxu0 0
  %519 = vmatpush1.bf16.msra.mxu0 %v406
  %520 = vmatprep.subr.bf16.mxu0 0
  %521 = vmatpush1.bf16.msra.mxu0 %v407
  %522 = vmatprep.subr.bf16.mxu0 0
  %523 = vmatpush1.bf16.msra.mxu0 %v408
  %524 = vmatprep.subr.bf16.mxu0 0
  %525 = vmatpush1.bf16.msra.mxu0 %v409
  %526 = vmatprep.subr.bf16.mxu0 0
  %527 = vmatpush1.bf16.msra.mxu0 %v410
  %528 = vmatprep.subr.bf16.mxu0 0
  %529 = vmatpush1.bf16.msra.mxu0 %v411
  %530 = vmatprep.subr.bf16.mxu0 0
  %531 = vmatpush1.bf16.msra.mxu0 %v412
  %532 = vmatprep.subr.bf16.mxu0 0
  %533 = vmatpush1.bf16.msra.mxu0 %v413
  %534 = vmatprep.subr.bf16.mxu0 0
  %535 = vmatpush1.bf16.msra.mxu0 %v414
  %536 = vmatprep.subr.bf16.mxu0 0
  %537 = vmatpush1.bf16.msra.mxu0 %v415
  %538 = vmatprep.subr.bf16.mxu0 0
  %539 = vmatpush1.bf16.msra.mxu0 %v416
  %540 = vmatprep.mubr.bf16.mxu0 %v176
  %541 = vmatmul.mubr.bf16.gmra.mrb[0].mxu0 %v175
  %v542 = vpop.f32.mrb[0].mxu0
  %v543 = vadd.f32 0.0, %v542
  %v544 = vpop.f32.mrb[0].mxu0
  %v545 = vpop.f32.mrb[0].mxu0
  %v546 = vadd.f32 0.0, %v545
  %v547 = vpop.f32.mrb[0].mxu0
  %548 = vmatprep.mubr.bf16.mxu0 %v183
  %549 = vmatmul.mubr.bf16.gmra.mrb[0].mxu0 %v182
  %v550 = vpop.f32.mrb[0].mxu0
  %v551 = vadd.f32 0.0, %v550
  %v552 = vpop.f32.mrb[0].mxu0
  %v553 = vpop.f32.mrb[0].mxu0
  %v554 = vadd.f32 0.0, %v553
  %v555 = vpop.f32.mrb[0].mxu0
  %556 = vdwg.mxu0
  %557 = vmatprep.subr.bf16.mxu0 0
  %558 = vmatpush1.bf16.msra.mxu0 %v417
  %559 = vmatprep.subr.bf16.mxu0 0
  %560 = vmatpush1.bf16.msra.mxu0 %v418
  %561 = vmatprep.subr.bf16.mxu0 0
  %562 = vmatpush1.bf16.msra.mxu0 %v419
  %563 = vmatprep.subr.bf16.mxu0 0
  %564 = vmatpush1.bf16.msra.mxu0 %v420
  %565 = vmatprep.subr.bf16.mxu0 0
  %566 = vmatpush1.bf16.msra.mxu0 %v421
  %567 = vmatprep.subr.bf16.mxu0 0
  %568 = vmatpush1.bf16.msra.mxu0 %v422
  %569 = vmatprep.subr.bf16.mxu0 0
  %570 = vmatpush1.bf16.msra.mxu0 %v423
  %571 = vmatprep.subr.bf16.mxu0 0
  %572 = vmatpush1.bf16.msra.mxu0 %v424
  %573 = vmatprep.subr.bf16.mxu0 0
  %574 = vmatpush1.bf16.msra.mxu0 %v425
  %575 = vmatprep.subr.bf16.mxu0 0
  %576 = vmatpush1.bf16.msra.mxu0 %v426
  %577 = vmatprep.subr.bf16.mxu0 0
  %578 = vmatpush1.bf16.msra.mxu0 %v427
  %579 = vmatprep.subr.bf16.mxu0 0
  %580 = vmatpush1.bf16.msra.mxu0 %v428
  %581 = vmatprep.subr.bf16.mxu0 0
  %582 = vmatpush1.bf16.msra.mxu0 %v429
  %583 = vmatprep.subr.bf16.mxu0 0
  %584 = vmatpush1.bf16.msra.mxu0 %v430
  %585 = vmatprep.subr.bf16.mxu0 0
  %586 = vmatpush1.bf16.msra.mxu0 %v431
  %587 = vmatprep.subr.bf16.mxu0 0
  %588 = vmatpush1.bf16.msra.mxu0 %v432
  %589 = vmatprep.mubr.bf16.mxu0 %v178
  %590 = vmatmul.mubr.bf16.gmra.mrb[0].mxu0 %v177
  %v591 = vpop.f32.mrb[0].mxu0
  %v592 = vadd.f32 %v543, %v591
  %v593 = vpop.f32.mrb[0].mxu0
  %v594 = vpop.f32.mrb[0].mxu0
  %v595 = vadd.f32 %v546, %v594
  %v596 = vpop.f32.mrb[0].mxu0
  %597 = vmatprep.mubr.bf16.mxu0 %v185
  %598 = vmatmul.mubr.bf16.gmra.mrb[0].mxu0 %v184
  %v599 = vpop.f32.mrb[0].mxu0
  %v600 = vadd.f32 %v551, %v599
  %v601 = vpop.f32.mrb[0].mxu0
  %v602 = vpop.f32.mrb[0].mxu0
  %v603 = vadd.f32 %v554, %v602
  %v604 = vpop.f32.mrb[0].mxu0
  %605 = vdwg.mxu0
  %606 = vmatprep.subr.bf16.mxu0 0
  %607 = vmatpush1.bf16.msra.mxu0 %v433
  %608 = vmatprep.subr.bf16.mxu0 0
  %609 = vmatpush1.bf16.msra.mxu0 %v434
  %610 = vmatprep.subr.bf16.mxu0 0
  %611 = vmatpush1.bf16.msra.mxu0 %v435
  %612 = vmatprep.subr.bf16.mxu0 0
  %613 = vmatpush1.bf16.msra.mxu0 %v436
  %614 = vmatprep.subr.bf16.mxu0 0
  %615 = vmatpush1.bf16.msra.mxu0 %v437
  %616 = vmatprep.subr.bf16.mxu0 0
  %617 = vmatpush1.bf16.msra.mxu0 %v438
  %618 = vmatprep.subr.bf16.mxu0 0
  %619 = vmatpush1.bf16.msra.mxu0 %v439
  %620 = vmatprep.subr.bf16.mxu0 0
  %621 = vmatpush1.bf16.msra.mxu0 %v440
  %622 = vmatprep.subr.bf16.mxu0 0
  %623 = vmatpush1.bf16.msra.mxu0 %v441
  %624 = vmatprep.subr.bf16.mxu0 0
  %625 = vmatpush1.bf16.msra.mxu0 %v442
  %626 = vmatprep.subr.bf16.mxu0 0
  %627 = vmatpush1.bf16.msra.mxu0 %v443
  %628 = vmatprep.subr.bf16.mxu0 0
  %629 = vmatpush1.bf16.msra.mxu0 %v444
  %630 = vmatprep.subr.bf16.mxu0 0
  %631 = vmatpush1.bf16.msra.mxu0 %v445
  %632 = vmatprep.subr.bf16.mxu0 0
  %633 = vmatpush1.bf16.msra.mxu0 %v446
  %634 = vmatprep.subr.bf16.mxu0 0
  %635 = vmatpush1.bf16.msra.mxu0 %v447
  %636 = vmatprep.subr.bf16.mxu0 0
  %637 = vmatpush1.bf16.msra.mxu0 %v448
  %638 = vmatprep.mubr.bf16.mxu0 %v180
  %639 = vmatmul.mubr.bf16.gmra.mrb[0].mxu0 %v179
  %v640 = vpop.f32.mrb[0].mxu0
  %v641 = vadd.f32 %v592, %v640
  %v642 = vpop.f32.mrb[0].mxu0
  %v643 = vpop.f32.mrb[0].mxu0
  %v644 = vadd.f32 %v595, %v643
  %v645 = vpop.f32.mrb[0].mxu0
  %646 = vmatprep.mubr.bf16.mxu0 %v187
  %647 = vmatmul.mubr.bf16.gmra.mrb[0].mxu0 %v186
  %v648 = vpop.f32.mrb[0].mxu0
  %v649 = vadd.f32 %v600, %v648
  %v650 = vpop.f32.mrb[0].mxu0
  %v651 = vpop.f32.mrb[0].mxu0
  %v652 = vadd.f32 %v603, %v651
  %v653 = vpop.f32.mrb[0].mxu0
  %654 = vdwg.mxu0
  %655 = vmatprep.subr.bf16.mxu0 0
  %656 = vmatpush1.bf16.msra.mxu0 %v449
  %657 = vmatprep.subr.bf16.mxu0 0
  %658 = vmatpush1.bf16.msra.mxu0 %v450
  %659 = vmatprep.subr.bf16.mxu0 0
  %660 = vmatpush1.bf16.msra.mxu0 0
  %661 = vmatprep.subr.bf16.mxu0 0
  %662 = vmatpush1.bf16.msra.mxu0 0
  %663 = vmatprep.subr.bf16.mxu0 0
  %664 = vmatpush1.bf16.msra.mxu0 0
  %665 = vmatprep.subr.bf16.mxu0 0
  %666 = vmatpush1.bf16.msra.mxu0 0
  %667 = vmatprep.subr.bf16.mxu0 0
  %668 = vmatpush1.bf16.msra.mxu0 0
  %669 = vmatprep.subr.bf16.mxu0 0
  %670 = vmatpush1.bf16.msra.mxu0 0
  %671 = vmatprep.subr.bf16.mxu0 0
  %672 = vmatpush1.bf16.msra.mxu0 0
  %673 = vmatprep.subr.bf16.mxu0 0
  %674 = vmatpush1.bf16.msra.mxu0 0
  %675 = vmatprep.subr.bf16.mxu0 0
  %676 = vmatpush1.bf16.msra.mxu0 0
  %677 = vmatprep.subr.bf16.mxu0 0
  %678 = vmatpush1.bf16.msra.mxu0 0
  %679 = vmatprep.subr.bf16.mxu0 0
  %680 = vmatpush1.bf16.msra.mxu0 0
  %681 = vmatprep.subr.bf16.mxu0 0
  %682 = vmatpush1.bf16.msra.mxu0 0
  %683 = vmatprep.subr.bf16.mxu0 0
  %684 = vmatpush1.bf16.msra.mxu0 0
  %685 = vmatprep.subr.bf16.mxu0 0
  %686 = vmatpush1.bf16.msra.mxu0 0
  %687 = vmatprep.mubr.bf16.mxu0 0
  %688 = vmatmul.mubr.bf16.gmra.mrb[0].mxu0 %v503
  %v689 = vpop.f32.mrb[0].mxu0
  %v690 = vadd.f32 %v641, %v689
  %v691 = vpop.f32.mrb[0].mxu0
  %v692 = vpop.f32.mrb[0].mxu0
  %v693 = vadd.f32 %v644, %v692
  %v694 = vpop.f32.mrb[0].mxu0
  %695 = vmatprep.mubr.bf16.mxu0 0
  %696 = vmatmul.mubr.bf16.gmra.mrb[0].mxu0 %v506
  %v697 = vpop.f32.mrb[0].mxu0
  %v698 = vadd.f32 %v649, %v697
  %v699 = vpop.f32.mrb[0].mxu0
  %v700 = vpop.f32.mrb[0].mxu0
  %v701 = vadd.f32 %v652, %v700
  %v702 = vpop.f32.mrb[0].mxu0
  %703 = vdwg.mxu0
  %s704 = scalar_lea.vmem %s0, 112
  %v705 = vld [vmem:[%s704] sm:$0xff]
  %v706 = vld [vmem:[%s704 + $0x8] sm:$0xff]
  %v707 = vld [vmem:[%s704 + $0x10] sm:$0xff]
  %v708 = vld [vmem:[%s704 + $0x18] sm:$0xf]
  %v709 = vld [vmem:[%s704 + $0x1c] sm:$0xff]
  %v710 = vld [vmem:[%s704 + $0x24] sm:$0xff]
  %v711 = vld [vmem:[%s704 + $0x2c] sm:$0xff]
  %v712 = vld [vmem:[%s704 + $0x34] sm:$0xf]
  %v713 = vld [vmem:[%s704 + $0x38] sm:$0xff]
  %v714 = vld [vmem:[%s704 + $0x40] sm:$0xff]
  %v715 = vld [vmem:[%s704 + $0x48] sm:$0xff]
  %v716 = vld [vmem:[%s704 + $0x50] sm:$0xf]
  %v717 = vld [vmem:[%s704 + $0x54] sm:$0xff]
  %v718 = vld [vmem:[%s704 + $0x5c] sm:$0xff]
  %v719 = vld [vmem:[%s704 + $0x64] sm:$0xff]
  %v720 = vld [vmem:[%s704 + $0x6c] sm:$0xf]
  %v737 = vunpack.c.l.b16 %v705
  %v738 = vunpack.c.h.b16 %v705
  %v739 = vunpack.c.l.b16 %v706
  %v740 = vunpack.c.h.b16 %v706
  %v741 = vunpack.c.l.b16 %v707
  %v742 = vunpack.c.h.b16 %v707
  %v743 = vunpack.c.l.b16 %v708
  %v744 = vunpack.c.l.b16 %v709
  %v745 = vunpack.c.h.b16 %v709
  %v746 = vunpack.c.l.b16 %v710
  %v747 = vunpack.c.h.b16 %v710
  %v748 = vunpack.c.l.b16 %v711
  %v749 = vunpack.c.h.b16 %v711
  %v750 = vunpack.c.l.b16 %v712
  %v751 = vunpack.c.l.b16 %v713
  %v752 = vunpack.c.h.b16 %v713
  %v753 = vunpack.c.l.b16 %v714
  %v754 = vunpack.c.h.b16 %v714
  %v755 = vunpack.c.l.b16 %v715
  %v756 = vunpack.c.h.b16 %v715
  %v757 = vunpack.c.l.b16 %v716
  %v758 = vunpack.c.l.b16 %v717
  %v759 = vunpack.c.h.b16 %v717
  %v760 = vunpack.c.l.b16 %v718
  %v761 = vunpack.c.h.b16 %v718
  %v762 = vunpack.c.l.b16 %v719
  %v763 = vunpack.c.h.b16 %v719
  %v764 = vunpack.c.l.b16 %v720
  %v765 = vpack.c.b16 %v744, %v737
  %v766 = vpack.c.b16 %v745, %v738
  %v767 = vpack.c.b16 %v746, %v739
  %v768 = vpack.c.b16 %v747, %v740
  %v769 = vpack.c.b16 %v748, %v741
  %v770 = vpack.c.b16 %v749, %v742
  %v771 = vpack.c.b16 %v750, %v743
  %v772 = vpack.c.b16 %v758, %v751
  %v773 = vpack.c.b16 %v759, %v752
  %v774 = vpack.c.b16 %v760, %v753
  %v775 = vpack.c.b16 %v761, %v754
  %v776 = vpack.c.b16 %v762, %v755
  %v777 = vpack.c.b16 %v763, %v756
  %v778 = vpack.c.b16 %v764, %v757
  %v792 = vsel %vm501, %v771, 0
  %v795 = vsel %vm501, %v778, 0
  %797 = vmatprep.subr.bf16.mxu0 0
  %798 = vmatpush1.bf16.msra.mxu0 %v401
  %799 = vmatprep.subr.bf16.mxu0 0
  %800 = vmatpush1.bf16.msra.mxu0 %v402
  %801 = vmatprep.subr.bf16.mxu0 0
  %802 = vmatpush1.bf16.msra.mxu0 %v403
  %803 = vmatprep.subr.bf16.mxu0 0
  %804 = vmatpush1.bf16.msra.mxu0 %v404
  %805 = vmatprep.subr.bf16.mxu0 0
  %806 = vmatpush1.bf16.msra.mxu0 %v405
  %807 = vmatprep.subr.bf16.mxu0 0
  %808 = vmatpush1.bf16.msra.mxu0 %v406
  %809 = vmatprep.subr.bf16.mxu0 0
  %810 = vmatpush1.bf16.msra.mxu0 %v407
  %811 = vmatprep.subr.bf16.mxu0 0
  %812 = vmatpush1.bf16.msra.mxu0 %v408
  %813 = vmatprep.subr.bf16.mxu0 0
  %814 = vmatpush1.bf16.msra.mxu0 %v409
  %815 = vmatprep.subr.bf16.mxu0 0
  %816 = vmatpush1.bf16.msra.mxu0 %v410
  %817 = vmatprep.subr.bf16.mxu0 0
  %818 = vmatpush1.bf16.msra.mxu0 %v411
  %819 = vmatprep.subr.bf16.mxu0 0
  %820 = vmatpush1.bf16.msra.mxu0 %v412
  %821 = vmatprep.subr.bf16.mxu0 0
  %822 = vmatpush1.bf16.msra.mxu0 %v413
  %823 = vmatprep.subr.bf16.mxu0 0
  %824 = vmatpush1.bf16.msra.mxu0 %v414
  %825 = vmatprep.subr.bf16.mxu0 0
  %826 = vmatpush1.bf16.msra.mxu0 %v415
  %827 = vmatprep.subr.bf16.mxu0 0
  %828 = vmatpush1.bf16.msra.mxu0 %v416
  %829 = vmatprep.mubr.bf16.mxu0 %v766
  %830 = vmatmul.mubr.bf16.gmra.mrb[0].mxu0 %v765
  %v831 = vpop.f32.mrb[0].mxu0
  %v832 = vadd.f32 0.0, %v831
  %v833 = vpop.f32.mrb[0].mxu0
  %v834 = vpop.f32.mrb[0].mxu0
  %v835 = vadd.f32 0.0, %v834
  %v836 = vpop.f32.mrb[0].mxu0
  %837 = vmatprep.mubr.bf16.mxu0 %v773
  %838 = vmatmul.mubr.bf16.gmra.mrb[0].mxu0 %v772
  %v839 = vpop.f32.mrb[0].mxu0
  %v840 = vadd.f32 0.0, %v839
  %v841 = vpop.f32.mrb[0].mxu0
  %v842 = vpop.f32.mrb[0].mxu0
  %v843 = vadd.f32 0.0, %v842
  %v844 = vpop.f32.mrb[0].mxu0
  %845 = vdwg.mxu0
  %846 = vmatprep.subr.bf16.mxu0 0
  %847 = vmatpush1.bf16.msra.mxu0 %v417
  %848 = vmatprep.subr.bf16.mxu0 0
  %849 = vmatpush1.bf16.msra.mxu0 %v418
  %850 = vmatprep.subr.bf16.mxu0 0
  %851 = vmatpush1.bf16.msra.mxu0 %v419
  %852 = vmatprep.subr.bf16.mxu0 0
  %853 = vmatpush1.bf16.msra.mxu0 %v420
  %854 = vmatprep.subr.bf16.mxu0 0
  %855 = vmatpush1.bf16.msra.mxu0 %v421
  %856 = vmatprep.subr.bf16.mxu0 0
  %857 = vmatpush1.bf16.msra.mxu0 %v422
  %858 = vmatprep.subr.bf16.mxu0 0
  %859 = vmatpush1.bf16.msra.mxu0 %v423
  %860 = vmatprep.subr.bf16.mxu0 0
  %861 = vmatpush1.bf16.msra.mxu0 %v424
  %862 = vmatprep.subr.bf16.mxu0 0
  %863 = vmatpush1.bf16.msra.mxu0 %v425
  %864 = vmatprep.subr.bf16.mxu0 0
  %865 = vmatpush1.bf16.msra.mxu0 %v426
  %866 = vmatprep.subr.bf16.mxu0 0
  %867 = vmatpush1.bf16.msra.mxu0 %v427
  %868 = vmatprep.subr.bf16.mxu0 0
  %869 = vmatpush1.bf16.msra.mxu0 %v428
  %870 = vmatprep.subr.bf16.mxu0 0
  %871 = vmatpush1.bf16.msra.mxu0 %v429
  %872 = vmatprep.subr.bf16.mxu0 0
  %873 = vmatpush1.bf16.msra.mxu0 %v430
  %874 = vmatprep.subr.bf16.mxu0 0
  %875 = vmatpush1.bf16.msra.mxu0 %v431
  %876 = vmatprep.subr.bf16.mxu0 0
  %877 = vmatpush1.bf16.msra.mxu0 %v432
  %878 = vmatprep.mubr.bf16.mxu0 %v768
  %879 = vmatmul.mubr.bf16.gmra.mrb[0].mxu0 %v767
  %v880 = vpop.f32.mrb[0].mxu0
  %v881 = vadd.f32 %v832, %v880
  %v882 = vpop.f32.mrb[0].mxu0
  %v883 = vpop.f32.mrb[0].mxu0
  %v884 = vadd.f32 %v835, %v883
  %v885 = vpop.f32.mrb[0].mxu0
  %886 = vmatprep.mubr.bf16.mxu0 %v775
  %887 = vmatmul.mubr.bf16.gmra.mrb[0].mxu0 %v774
  %v888 = vpop.f32.mrb[0].mxu0
  %v889 = vadd.f32 %v840, %v888
  %v890 = vpop.f32.mrb[0].mxu0
  %v891 = vpop.f32.mrb[0].mxu0
  %v892 = vadd.f32 %v843, %v891
  %v893 = vpop.f32.mrb[0].mxu0
  %894 = vdwg.mxu0
  %895 = vmatprep.subr.bf16.mxu0 0
  %896 = vmatpush1.bf16.msra.mxu0 %v433
  %897 = vmatprep.subr.bf16.mxu0 0
  %898 = vmatpush1.bf16.msra.mxu0 %v434
  %899 = vmatprep.subr.bf16.mxu0 0
  %900 = vmatpush1.bf16.msra.mxu0 %v435
  %901 = vmatprep.subr.bf16.mxu0 0
  %902 = vmatpush1.bf16.msra.mxu0 %v436
  %903 = vmatprep.subr.bf16.mxu0 0
  %904 = vmatpush1.bf16.msra.mxu0 %v437
  %905 = vmatprep.subr.bf16.mxu0 0
  %906 = vmatpush1.bf16.msra.mxu0 %v438
  %907 = vmatprep.subr.bf16.mxu0 0
  %908 = vmatpush1.bf16.msra.mxu0 %v439
  %909 = vmatprep.subr.bf16.mxu0 0
  %910 = vmatpush1.bf16.msra.mxu0 %v440
  %911 = vmatprep.subr.bf16.mxu0 0
  %912 = vmatpush1.bf16.msra.mxu0 %v441
  %913 = vmatprep.subr.bf16.mxu0 0
  %914 = vmatpush1.bf16.msra.mxu0 %v442
  %915 = vmatprep.subr.bf16.mxu0 0
  %916 = vmatpush1.bf16.msra.mxu0 %v443
  %917 = vmatprep.subr.bf16.mxu0 0
  %918 = vmatpush1.bf16.msra.mxu0 %v444
  %919 = vmatprep.subr.bf16.mxu0 0
  %920 = vmatpush1.bf16.msra.mxu0 %v445
  %921 = vmatprep.subr.bf16.mxu0 0
  %922 = vmatpush1.bf16.msra.mxu0 %v446
  %923 = vmatprep.subr.bf16.mxu0 0
  %924 = vmatpush1.bf16.msra.mxu0 %v447
  %925 = vmatprep.subr.bf16.mxu0 0
  %926 = vmatpush1.bf16.msra.mxu0 %v448
  %927 = vmatprep.mubr.bf16.mxu0 %v770
  %928 = vmatmul.mubr.bf16.gmra.mrb[0].mxu0 %v769
  %v929 = vpop.f32.mrb[0].mxu0
  %v930 = vadd.f32 %v881, %v929
  %v931 = vpop.f32.mrb[0].mxu0
  %v932 = vpop.f32.mrb[0].mxu0
  %v933 = vadd.f32 %v884, %v932
  %v934 = vpop.f32.mrb[0].mxu0
  %935 = vmatprep.mubr.bf16.mxu0 %v777
  %936 = vmatmul.mubr.bf16.gmra.mrb[0].mxu0 %v776
  %v937 = vpop.f32.mrb[0].mxu0
  %v938 = vadd.f32 %v889, %v937
  %v939 = vpop.f32.mrb[0].mxu0
  %v940 = vpop.f32.mrb[0].mxu0
  %v941 = vadd.f32 %v892, %v940
  %v942 = vpop.f32.mrb[0].mxu0
  %943 = vdwg.mxu0
  %944 = vmatprep.subr.bf16.mxu0 0
  %945 = vmatpush1.bf16.msra.mxu0 %v449
  %946 = vmatprep.subr.bf16.mxu0 0
  %947 = vmatpush1.bf16.msra.mxu0 %v450
  %948 = vmatprep.subr.bf16.mxu0 0
  %949 = vmatpush1.bf16.msra.mxu0 0
  %950 = vmatprep.subr.bf16.mxu0 0
  %951 = vmatpush1.bf16.msra.mxu0 0
  %952 = vmatprep.subr.bf16.mxu0 0
  %953 = vmatpush1.bf16.msra.mxu0 0
  %954 = vmatprep.subr.bf16.mxu0 0
  %955 = vmatpush1.bf16.msra.mxu0 0
  %956 = vmatprep.subr.bf16.mxu0 0
  %957 = vmatpush1.bf16.msra.mxu0 0
  %958 = vmatprep.subr.bf16.mxu0 0
  %959 = vmatpush1.bf16.msra.mxu0 0
  %960 = vmatprep.subr.bf16.mxu0 0
  %961 = vmatpush1.bf16.msra.mxu0 0
  %962 = vmatprep.subr.bf16.mxu0 0
  %963 = vmatpush1.bf16.msra.mxu0 0
  %964 = vmatprep.subr.bf16.mxu0 0
  %965 = vmatpush1.bf16.msra.mxu0 0
  %966 = vmatprep.subr.bf16.mxu0 0
  %967 = vmatpush1.bf16.msra.mxu0 0
  %968 = vmatprep.subr.bf16.mxu0 0
  %969 = vmatpush1.bf16.msra.mxu0 0
  %970 = vmatprep.subr.bf16.mxu0 0
  %971 = vmatpush1.bf16.msra.mxu0 0
  %972 = vmatprep.subr.bf16.mxu0 0
  %973 = vmatpush1.bf16.msra.mxu0 0
  %974 = vmatprep.subr.bf16.mxu0 0
  %975 = vmatpush1.bf16.msra.mxu0 0
  %976 = vmatprep.mubr.bf16.mxu0 0
  %977 = vmatmul.mubr.bf16.gmra.mrb[0].mxu0 %v792
  %v978 = vpop.f32.mrb[0].mxu0
  %v979 = vadd.f32 %v930, %v978
  %v980 = vpop.f32.mrb[0].mxu0
  %v981 = vpop.f32.mrb[0].mxu0
  %v982 = vadd.f32 %v933, %v981
  %v983 = vpop.f32.mrb[0].mxu0
  %984 = vmatprep.mubr.bf16.mxu0 0
  %985 = vmatmul.mubr.bf16.gmra.mrb[0].mxu0 %v795
  %v986 = vpop.f32.mrb[0].mxu0
  %v987 = vadd.f32 %v938, %v986
  %v988 = vpop.f32.mrb[0].mxu0
  %v989 = vpop.f32.mrb[0].mxu0
  %v990 = vadd.f32 %v941, %v989
  %v991 = vpop.f32.mrb[0].mxu0
  %992 = vdwg.mxu0
  %s993 = scalar_lea.vmem %s0, 224
  %v994 = vld [vmem:[%s993] sm:$0xff]
  %v995 = vld [vmem:[%s993 + $0x8] sm:$0xff]
  %v996 = vld [vmem:[%s993 + $0x10] sm:$0xff]
  %v997 = vld [vmem:[%s993 + $0x18] sm:$0xf]
  %v998 = vld [vmem:[%s993 + $0x1c] sm:$0xff]
  %v999 = vld [vmem:[%s993 + $0x24] sm:$0xff]
  %v1000 = vld [vmem:[%s993 + $0x2c] sm:$0xff]
  %v1001 = vld [vmem:[%s993 + $0x34] sm:$0xf]
  %v1002 = vld [vmem:[%s993 + $0x38] sm:$0xff]
  %v1003 = vld [vmem:[%s993 + $0x40] sm:$0xff]
  %v1004 = vld [vmem:[%s993 + $0x48] sm:$0xff]
  %v1005 = vld [vmem:[%s993 + $0x50] sm:$0xf]
  %v1006 = vld [vmem:[%s993 + $0x54] sm:$0xff]
  %v1007 = vld [vmem:[%s993 + $0x5c] sm:$0xff]
  %v1008 = vld [vmem:[%s993 + $0x64] sm:$0xff]
  %v1009 = vld [vmem:[%s993 + $0x6c] sm:$0xf]
  %v1026 = vunpack.c.l.b16 %v994
  %v1027 = vunpack.c.h.b16 %v994
  %v1028 = vunpack.c.l.b16 %v995
  %v1029 = vunpack.c.h.b16 %v995
  %v1030 = vunpack.c.l.b16 %v996
  %v1031 = vunpack.c.h.b16 %v996
  %v1032 = vunpack.c.l.b16 %v997
  %v1033 = vunpack.c.l.b16 %v998
  %v1034 = vunpack.c.h.b16 %v998
  %v1035 = vunpack.c.l.b16 %v999
  %v1036 = vunpack.c.h.b16 %v999
  %v1037 = vunpack.c.l.b16 %v1000
  %v1038 = vunpack.c.h.b16 %v1000
  %v1039 = vunpack.c.l.b16 %v1001
  %v1040 = vunpack.c.l.b16 %v1002
  %v1041 = vunpack.c.h.b16 %v1002
  %v1042 = vunpack.c.l.b16 %v1003
  %v1043 = vunpack.c.h.b16 %v1003
  %v1044 = vunpack.c.l.b16 %v1004
  %v1045 = vunpack.c.h.b16 %v1004
  %v1046 = vunpack.c.l.b16 %v1005
  %v1047 = vunpack.c.l.b16 %v1006
  %v1048 = vunpack.c.h.b16 %v1006
  %v1049 = vunpack.c.l.b16 %v1007
  %v1050 = vunpack.c.h.b16 %v1007
  %v1051 = vunpack.c.l.b16 %v1008
  %v1052 = vunpack.c.h.b16 %v1008
  %v1053 = vunpack.c.l.b16 %v1009
  %v1054 = vpack.c.b16 %v1033, %v1026
  %v1055 = vpack.c.b16 %v1034, %v1027
  %v1056 = vpack.c.b16 %v1035, %v1028
  %v1057 = vpack.c.b16 %v1036, %v1029
  %v1058 = vpack.c.b16 %v1037, %v1030
  %v1059 = vpack.c.b16 %v1038, %v1031
  %v1060 = vpack.c.b16 %v1039, %v1032
  %v1061 = vpack.c.b16 %v1047, %v1040
  %v1062 = vpack.c.b16 %v1048, %v1041
  %v1063 = vpack.c.b16 %v1049, %v1042
  %v1064 = vpack.c.b16 %v1050, %v1043
  %v1065 = vpack.c.b16 %v1051, %v1044
  %v1066 = vpack.c.b16 %v1052, %v1045
  %v1067 = vpack.c.b16 %v1053, %v1046
  %v1081 = vsel %vm501, %v1060, 0
  %v1084 = vsel %vm501, %v1067, 0
  %1086 = vmatprep.subr.bf16.mxu0 0
  %1087 = vmatpush1.bf16.msra.mxu0 %v401
  %1088 = vmatprep.subr.bf16.mxu0 0
  %1089 = vmatpush1.bf16.msra.mxu0 %v402
  %1090 = vmatprep.subr.bf16.mxu0 0
  %1091 = vmatpush1.bf16.msra.mxu0 %v403
  %1092 = vmatprep.subr.bf16.mxu0 0
  %1093 = vmatpush1.bf16.msra.mxu0 %v404
  %1094 = vmatprep.subr.bf16.mxu0 0
  %1095 = vmatpush1.bf16.msra.mxu0 %v405
  %1096 = vmatprep.subr.bf16.mxu0 0
  %1097 = vmatpush1.bf16.msra.mxu0 %v406
  %1098 = vmatprep.subr.bf16.mxu0 0
  %1099 = vmatpush1.bf16.msra.mxu0 %v407
  %1100 = vmatprep.subr.bf16.mxu0 0
  %1101 = vmatpush1.bf16.msra.mxu0 %v408
  %1102 = vmatprep.subr.bf16.mxu0 0
  %1103 = vmatpush1.bf16.msra.mxu0 %v409
  %1104 = vmatprep.subr.bf16.mxu0 0
  %1105 = vmatpush1.bf16.msra.mxu0 %v410
  %1106 = vmatprep.subr.bf16.mxu0 0
  %1107 = vmatpush1.bf16.msra.mxu0 %v411
  %1108 = vmatprep.subr.bf16.mxu0 0
  %1109 = vmatpush1.bf16.msra.mxu0 %v412
  %1110 = vmatprep.subr.bf16.mxu0 0
  %1111 = vmatpush1.bf16.msra.mxu0 %v413
  %1112 = vmatprep.subr.bf16.mxu0 0
  %1113 = vmatpush1.bf16.msra.mxu0 %v414
  %1114 = vmatprep.subr.bf16.mxu0 0
  %1115 = vmatpush1.bf16.msra.mxu0 %v415
  %1116 = vmatprep.subr.bf16.mxu0 0
  %1117 = vmatpush1.bf16.msra.mxu0 %v416
  %1118 = vmatprep.mubr.bf16.mxu0 %v1055
  %1119 = vmatmul.mubr.bf16.gmra.mrb[0].mxu0 %v1054
  %v1120 = vpop.f32.mrb[0].mxu0
  %v1121 = vadd.f32 0.0, %v1120
  %v1122 = vpop.f32.mrb[0].mxu0
  %v1123 = vpop.f32.mrb[0].mxu0
  %v1124 = vadd.f32 0.0, %v1123
  %v1125 = vpop.f32.mrb[0].mxu0
  %1126 = vmatprep.mubr.bf16.mxu0 %v1062
  %1127 = vmatmul.mubr.bf16.gmra.mrb[0].mxu0 %v1061
  %v1128 = vpop.f32.mrb[0].mxu0
  %v1129 = vadd.f32 0.0, %v1128
  %v1130 = vpop.f32.mrb[0].mxu0
  %v1131 = vpop.f32.mrb[0].mxu0
  %v1132 = vadd.f32 0.0, %v1131
  %v1133 = vpop.f32.mrb[0].mxu0
  %1134 = vdwg.mxu0
  %1135 = vmatprep.subr.bf16.mxu0 0
  %1136 = vmatpush1.bf16.msra.mxu0 %v417
  %1137 = vmatprep.subr.bf16.mxu0 0
  %1138 = vmatpush1.bf16.msra.mxu0 %v418
  %1139 = vmatprep.subr.bf16.mxu0 0
  %1140 = vmatpush1.bf16.msra.mxu0 %v419
  %1141 = vmatprep.subr.bf16.mxu0 0
  %1142 = vmatpush1.bf16.msra.mxu0 %v420
  %1143 = vmatprep.subr.bf16.mxu0 0
  %1144 = vmatpush1.bf16.msra.mxu0 %v421
  %1145 = vmatprep.subr.bf16.mxu0 0
  %1146 = vmatpush1.bf16.msra.mxu0 %v422
  %1147 = vmatprep.subr.bf16.mxu0 0
  %1148 = vmatpush1.bf16.msra.mxu0 %v423
  %1149 = vmatprep.subr.bf16.mxu0 0
  %1150 = vmatpush1.bf16.msra.mxu0 %v424
  %1151 = vmatprep.subr.bf16.mxu0 0
  %1152 = vmatpush1.bf16.msra.mxu0 %v425
  %1153 = vmatprep.subr.bf16.mxu0 0
  %1154 = vmatpush1.bf16.msra.mxu0 %v426
  %1155 = vmatprep.subr.bf16.mxu0 0
  %1156 = vmatpush1.bf16.msra.mxu0 %v427
  %1157 = vmatprep.subr.bf16.mxu0 0
  %1158 = vmatpush1.bf16.msra.mxu0 %v428
  %1159 = vmatprep.subr.bf16.mxu0 0
  %1160 = vmatpush1.bf16.msra.mxu0 %v429
  %1161 = vmatprep.subr.bf16.mxu0 0
  %1162 = vmatpush1.bf16.msra.mxu0 %v430
  %1163 = vmatprep.subr.bf16.mxu0 0
  %1164 = vmatpush1.bf16.msra.mxu0 %v431
  %1165 = vmatprep.subr.bf16.mxu0 0
  %1166 = vmatpush1.bf16.msra.mxu0 %v432
  %1167 = vmatprep.mubr.bf16.mxu0 %v1057
  %1168 = vmatmul.mubr.bf16.gmra.mrb[0].mxu0 %v1056
  %v1169 = vpop.f32.mrb[0].mxu0
  %v1170 = vadd.f32 %v1121, %v1169
  %v1171 = vpop.f32.mrb[0].mxu0
  %v1172 = vpop.f32.mrb[0].mxu0
  %v1173 = vadd.f32 %v1124, %v1172
  %v1174 = vpop.f32.mrb[0].mxu0
  %1175 = vmatprep.mubr.bf16.mxu0 %v1064
  %1176 = vmatmul.mubr.bf16.gmra.mrb[0].mxu0 %v1063
  %v1177 = vpop.f32.mrb[0].mxu0
  %v1178 = vadd.f32 %v1129, %v1177
  %v1179 = vpop.f32.mrb[0].mxu0
  %v1180 = vpop.f32.mrb[0].mxu0
  %v1181 = vadd.f32 %v1132, %v1180
  %v1182 = vpop.f32.mrb[0].mxu0
  %1183 = vdwg.mxu0
  %1184 = vmatprep.subr.bf16.mxu0 0
  %1185 = vmatpush1.bf16.msra.mxu0 %v433
  %1186 = vmatprep.subr.bf16.mxu0 0
  %1187 = vmatpush1.bf16.msra.mxu0 %v434
  %1188 = vmatprep.subr.bf16.mxu0 0
  %1189 = vmatpush1.bf16.msra.mxu0 %v435
  %1190 = vmatprep.subr.bf16.mxu0 0
  %1191 = vmatpush1.bf16.msra.mxu0 %v436
  %1192 = vmatprep.subr.bf16.mxu0 0
  %1193 = vmatpush1.bf16.msra.mxu0 %v437
  %1194 = vmatprep.subr.bf16.mxu0 0
  %1195 = vmatpush1.bf16.msra.mxu0 %v438
  %1196 = vmatprep.subr.bf16.mxu0 0
  %1197 = vmatpush1.bf16.msra.mxu0 %v439
  %1198 = vmatprep.subr.bf16.mxu0 0
  %1199 = vmatpush1.bf16.msra.mxu0 %v440
  %1200 = vmatprep.subr.bf16.mxu0 0
  %1201 = vmatpush1.bf16.msra.mxu0 %v441
  %1202 = vmatprep.subr.bf16.mxu0 0
  %1203 = vmatpush1.bf16.msra.mxu0 %v442
  %1204 = vmatprep.subr.bf16.mxu0 0
  %1205 = vmatpush1.bf16.msra.mxu0 %v443
  %1206 = vmatprep.subr.bf16.mxu0 0
  %1207 = vmatpush1.bf16.msra.mxu0 %v444
  %1208 = vmatprep.subr.bf16.mxu0 0
  %1209 = vmatpush1.bf16.msra.mxu0 %v445
  %1210 = vmatprep.subr.bf16.mxu0 0
  %1211 = vmatpush1.bf16.msra.mxu0 %v446
  %1212 = vmatprep.subr.bf16.mxu0 0
  %1213 = vmatpush1.bf16.msra.mxu0 %v447
  %1214 = vmatprep.subr.bf16.mxu0 0
  %1215 = vmatpush1.bf16.msra.mxu0 %v448
  %1216 = vmatprep.mubr.bf16.mxu0 %v1059
  %1217 = vmatmul.mubr.bf16.gmra.mrb[0].mxu0 %v1058
  %v1218 = vpop.f32.mrb[0].mxu0
  %v1219 = vadd.f32 %v1170, %v1218
  %v1220 = vpop.f32.mrb[0].mxu0
  %v1221 = vpop.f32.mrb[0].mxu0
  %v1222 = vadd.f32 %v1173, %v1221
  %v1223 = vpop.f32.mrb[0].mxu0
  %1224 = vmatprep.mubr.bf16.mxu0 %v1066
  %1225 = vmatmul.mubr.bf16.gmra.mrb[0].mxu0 %v1065
  %v1226 = vpop.f32.mrb[0].mxu0
  %v1227 = vadd.f32 %v1178, %v1226
  %v1228 = vpop.f32.mrb[0].mxu0
  %v1229 = vpop.f32.mrb[0].mxu0
  %v1230 = vadd.f32 %v1181, %v1229
  %v1231 = vpop.f32.mrb[0].mxu0
  %1232 = vdwg.mxu0
  %1233 = vmatprep.subr.bf16.mxu0 0
  %1234 = vmatpush1.bf16.msra.mxu0 %v449
  %1235 = vmatprep.subr.bf16.mxu0 0
  %1236 = vmatpush1.bf16.msra.mxu0 %v450
  %1237 = vmatprep.subr.bf16.mxu0 0
  %1238 = vmatpush1.bf16.msra.mxu0 0
  %1239 = vmatprep.subr.bf16.mxu0 0
  %1240 = vmatpush1.bf16.msra.mxu0 0
  %1241 = vmatprep.subr.bf16.mxu0 0
  %1242 = vmatpush1.bf16.msra.mxu0 0
  %1243 = vmatprep.subr.bf16.mxu0 0
  %1244 = vmatpush1.bf16.msra.mxu0 0
  %1245 = vmatprep.subr.bf16.mxu0 0
  %1246 = vmatpush1.bf16.msra.mxu0 0
  %1247 = vmatprep.subr.bf16.mxu0 0
  %1248 = vmatpush1.bf16.msra.mxu0 0
  %1249 = vmatprep.subr.bf16.mxu0 0
  %1250 = vmatpush1.bf16.msra.mxu0 0
  %1251 = vmatprep.subr.bf16.mxu0 0
  %1252 = vmatpush1.bf16.msra.mxu0 0
  %1253 = vmatprep.subr.bf16.mxu0 0
  %1254 = vmatpush1.bf16.msra.mxu0 0
  %1255 = vmatprep.subr.bf16.mxu0 0
  %1256 = vmatpush1.bf16.msra.mxu0 0
  %1257 = vmatprep.subr.bf16.mxu0 0
  %1258 = vmatpush1.bf16.msra.mxu0 0
  %1259 = vmatprep.subr.bf16.mxu0 0
  %1260 = vmatpush1.bf16.msra.mxu0 0
  %1261 = vmatprep.subr.bf16.mxu0 0
  %1262 = vmatpush1.bf16.msra.mxu0 0
  %1263 = vmatprep.subr.bf16.mxu0 0
  %1264 = vmatpush1.bf16.msra.mxu0 0
  %1265 = vmatprep.mubr.bf16.mxu0 0
  %1266 = vmatmul.mubr.bf16.gmra.mrb[0].mxu0 %v1081
  %v1267 = vpop.f32.mrb[0].mxu0
  %v1268 = vadd.f32 %v1219, %v1267
  %v1269 = vpop.f32.mrb[0].mxu0
  %v1270 = vpop.f32.mrb[0].mxu0
  %v1271 = vadd.f32 %v1222, %v1270
  %v1272 = vpop.f32.mrb[0].mxu0
  %1273 = vmatprep.mubr.bf16.mxu0 0
  %1274 = vmatmul.mubr.bf16.gmra.mrb[0].mxu0 %v1084
  %v1275 = vpop.f32.mrb[0].mxu0
  %v1276 = vadd.f32 %v1227, %v1275
  %v1277 = vpop.f32.mrb[0].mxu0
  %v1278 = vpop.f32.mrb[0].mxu0
  %v1279 = vadd.f32 %v1230, %v1278
  %v1280 = vpop.f32.mrb[0].mxu0
  %1281 = vdwg.mxu0
  %s1282 = scalar_lea.vmem %s0, 336
  %v1283 = vld [vmem:[%s1282] sm:$0xff]
  %v1284 = vld [vmem:[%s1282 + $0x8] sm:$0xff]
  %v1285 = vld [vmem:[%s1282 + $0x10] sm:$0xff]
  %v1286 = vld [vmem:[%s1282 + $0x18] sm:$0xf]
  %v1287 = vld [vmem:[%s1282 + $0x1c] sm:$0xff]
  %v1288 = vld [vmem:[%s1282 + $0x24] sm:$0xff]
  %v1289 = vld [vmem:[%s1282 + $0x2c] sm:$0xff]
  %v1290 = vld [vmem:[%s1282 + $0x34] sm:$0xf]
  %v1291 = vld [vmem:[%s1282 + $0x38] sm:$0xff]
  %v1292 = vld [vmem:[%s1282 + $0x40] sm:$0xff]
  %v1293 = vld [vmem:[%s1282 + $0x48] sm:$0xff]
  %v1294 = vld [vmem:[%s1282 + $0x50] sm:$0xf]
  %v1295 = vld [vmem:[%s1282 + $0x54] sm:$0xff]
  %v1296 = vld [vmem:[%s1282 + $0x5c] sm:$0xff]
  %v1297 = vld [vmem:[%s1282 + $0x64] sm:$0xff]
  %v1298 = vld [vmem:[%s1282 + $0x6c] sm:$0xf]
  %v1315 = vunpack.c.l.b16 %v1283
  %v1316 = vunpack.c.h.b16 %v1283
  %v1317 = vunpack.c.l.b16 %v1284
  %v1318 = vunpack.c.h.b16 %v1284
  %v1319 = vunpack.c.l.b16 %v1285
  %v1320 = vunpack.c.h.b16 %v1285
  %v1321 = vunpack.c.l.b16 %v1286
  %v1322 = vunpack.c.l.b16 %v1287
  %v1323 = vunpack.c.h.b16 %v1287
  %v1324 = vunpack.c.l.b16 %v1288
  %v1325 = vunpack.c.h.b16 %v1288
  %v1326 = vunpack.c.l.b16 %v1289
  %v1327 = vunpack.c.h.b16 %v1289
  %v1328 = vunpack.c.l.b16 %v1290
  %v1329 = vunpack.c.l.b16 %v1291
  %v1330 = vunpack.c.h.b16 %v1291
  %v1331 = vunpack.c.l.b16 %v1292
  %v1332 = vunpack.c.h.b16 %v1292
  %v1333 = vunpack.c.l.b16 %v1293
  %v1334 = vunpack.c.h.b16 %v1293
  %v1335 = vunpack.c.l.b16 %v1294
  %v1336 = vunpack.c.l.b16 %v1295
  %v1337 = vunpack.c.h.b16 %v1295
  %v1338 = vunpack.c.l.b16 %v1296
  %v1339 = vunpack.c.h.b16 %v1296
  %v1340 = vunpack.c.l.b16 %v1297
  %v1341 = vunpack.c.h.b16 %v1297
  %v1342 = vunpack.c.l.b16 %v1298
  %v1343 = vpack.c.b16 %v1322, %v1315
  %v1344 = vpack.c.b16 %v1323, %v1316
  %v1345 = vpack.c.b16 %v1324, %v1317
  %v1346 = vpack.c.b16 %v1325, %v1318
  %v1347 = vpack.c.b16 %v1326, %v1319
  %v1348 = vpack.c.b16 %v1327, %v1320
  %v1349 = vpack.c.b16 %v1328, %v1321
  %v1350 = vpack.c.b16 %v1336, %v1329
  %v1351 = vpack.c.b16 %v1337, %v1330
  %v1352 = vpack.c.b16 %v1338, %v1331
  %v1353 = vpack.c.b16 %v1339, %v1332
  %v1354 = vpack.c.b16 %v1340, %v1333
  %v1355 = vpack.c.b16 %v1341, %v1334
  %v1356 = vpack.c.b16 %v1342, %v1335
  %v1370 = vsel %vm501, %v1349, 0
  %v1373 = vsel %vm501, %v1356, 0
  %1375 = vmatprep.subr.bf16.mxu0 0
  %1376 = vmatpush1.bf16.msra.mxu0 %v401
  %1377 = vmatprep.subr.bf16.mxu0 0
  %1378 = vmatpush1.bf16.msra.mxu0 %v402
  %1379 = vmatprep.subr.bf16.mxu0 0
  %1380 = vmatpush1.bf16.msra.mxu0 %v403
  %1381 = vmatprep.subr.bf16.mxu0 0
  %1382 = vmatpush1.bf16.msra.mxu0 %v404
  %1383 = vmatprep.subr.bf16.mxu0 0
  %1384 = vmatpush1.bf16.msra.mxu0 %v405
  %1385 = vmatprep.subr.bf16.mxu0 0
  %1386 = vmatpush1.bf16.msra.mxu0 %v406
  %1387 = vmatprep.subr.bf16.mxu0 0
  %1388 = vmatpush1.bf16.msra.mxu0 %v407
  %1389 = vmatprep.subr.bf16.mxu0 0
  %1390 = vmatpush1.bf16.msra.mxu0 %v408
  %1391 = vmatprep.subr.bf16.mxu0 0
  %1392 = vmatpush1.bf16.msra.mxu0 %v409
  %1393 = vmatprep.subr.bf16.mxu0 0
  %1394 = vmatpush1.bf16.msra.mxu0 %v410
  %1395 = vmatprep.subr.bf16.mxu0 0
  %1396 = vmatpush1.bf16.msra.mxu0 %v411
  %1397 = vmatprep.subr.bf16.mxu0 0
  %1398 = vmatpush1.bf16.msra.mxu0 %v412
  %1399 = vmatprep.subr.bf16.mxu0 0
  %1400 = vmatpush1.bf16.msra.mxu0 %v413
  %1401 = vmatprep.subr.bf16.mxu0 0
  %1402 = vmatpush1.bf16.msra.mxu0 %v414
  %1403 = vmatprep.subr.bf16.mxu0 0
  %1404 = vmatpush1.bf16.msra.mxu0 %v415
  %1405 = vmatprep.subr.bf16.mxu0 0
  %1406 = vmatpush1.bf16.msra.mxu0 %v416
  %1407 = vmatprep.mubr.bf16.mxu0 %v1344
  %1408 = vmatmul.mubr.bf16.gmra.mrb[0].mxu0 %v1343
  %v1409 = vpop.f32.mrb[0].mxu0
  %v1410 = vadd.f32 0.0, %v1409
  %v1411 = vpop.f32.mrb[0].mxu0
  %v1412 = vpop.f32.mrb[0].mxu0
  %v1413 = vadd.f32 0.0, %v1412
  %v1414 = vpop.f32.mrb[0].mxu0
  %1415 = vmatprep.mubr.bf16.mxu0 %v1351
  %1416 = vmatmul.mubr.bf16.gmra.mrb[0].mxu0 %v1350
  %v1417 = vpop.f32.mrb[0].mxu0
  %v1418 = vadd.f32 0.0, %v1417
  %v1419 = vpop.f32.mrb[0].mxu0
  %v1420 = vpop.f32.mrb[0].mxu0
  %v1421 = vadd.f32 0.0, %v1420
  %v1422 = vpop.f32.mrb[0].mxu0
  %1423 = vdwg.mxu0
  %1424 = vmatprep.subr.bf16.mxu0 0
  %1425 = vmatpush1.bf16.msra.mxu0 %v417
  %1426 = vmatprep.subr.bf16.mxu0 0
  %1427 = vmatpush1.bf16.msra.mxu0 %v418
  %1428 = vmatprep.subr.bf16.mxu0 0
  %1429 = vmatpush1.bf16.msra.mxu0 %v419
  %1430 = vmatprep.subr.bf16.mxu0 0
  %1431 = vmatpush1.bf16.msra.mxu0 %v420
  %1432 = vmatprep.subr.bf16.mxu0 0
  %1433 = vmatpush1.bf16.msra.mxu0 %v421
  %1434 = vmatprep.subr.bf16.mxu0 0
  %1435 = vmatpush1.bf16.msra.mxu0 %v422
  %1436 = vmatprep.subr.bf16.mxu0 0
  %1437 = vmatpush1.bf16.msra.mxu0 %v423
  %1438 = vmatprep.subr.bf16.mxu0 0
  %1439 = vmatpush1.bf16.msra.mxu0 %v424
  %1440 = vmatprep.subr.bf16.mxu0 0
  %1441 = vmatpush1.bf16.msra.mxu0 %v425
  %1442 = vmatprep.subr.bf16.mxu0 0
  %1443 = vmatpush1.bf16.msra.mxu0 %v426
  %1444 = vmatprep.subr.bf16.mxu0 0
  %1445 = vmatpush1.bf16.msra.mxu0 %v427
  %1446 = vmatprep.subr.bf16.mxu0 0
  %1447 = vmatpush1.bf16.msra.mxu0 %v428
  %1448 = vmatprep.subr.bf16.mxu0 0
  %1449 = vmatpush1.bf16.msra.mxu0 %v429
  %1450 = vmatprep.subr.bf16.mxu0 0
  %1451 = vmatpush1.bf16.msra.mxu0 %v430
  %1452 = vmatprep.subr.bf16.mxu0 0
  %1453 = vmatpush1.bf16.msra.mxu0 %v431
  %1454 = vmatprep.subr.bf16.mxu0 0
  %1455 = vmatpush1.bf16.msra.mxu0 %v432
  %1456 = vmatprep.mubr.bf16.mxu0 %v1346
  %1457 = vmatmul.mubr.bf16.gmra.mrb[0].mxu0 %v1345
  %v1458 = vpop.f32.mrb[0].mxu0
  %v1459 = vadd.f32 %v1410, %v1458
  %v1460 = vpop.f32.mrb[0].mxu0
  %v1461 = vpop.f32.mrb[0].mxu0
  %v1462 = vadd.f32 %v1413, %v1461
  %v1463 = vpop.f32.mrb[0].mxu0
  %1464 = vmatprep.mubr.bf16.mxu0 %v1353
  %1465 = vmatmul.mubr.bf16.gmra.mrb[0].mxu0 %v1352
  %v1466 = vpop.f32.mrb[0].mxu0
  %v1467 = vadd.f32 %v1418, %v1466
  %v1468 = vpop.f32.mrb[0].mxu0
  %v1469 = vpop.f32.mrb[0].mxu0
  %v1470 = vadd.f32 %v1421, %v1469
  %v1471 = vpop.f32.mrb[0].mxu0
  %1472 = vdwg.mxu0
  %1473 = vmatprep.subr.bf16.mxu0 0
  %1474 = vmatpush1.bf16.msra.mxu0 %v433
  %1475 = vmatprep.subr.bf16.mxu0 0
  %1476 = vmatpush1.bf16.msra.mxu0 %v434
  %1477 = vmatprep.subr.bf16.mxu0 0
  %1478 = vmatpush1.bf16.msra.mxu0 %v435
  %1479 = vmatprep.subr.bf16.mxu0 0
  %1480 = vmatpush1.bf16.msra.mxu0 %v436
  %1481 = vmatprep.subr.bf16.mxu0 0
  %1482 = vmatpush1.bf16.msra.mxu0 %v437
  %1483 = vmatprep.subr.bf16.mxu0 0
  %1484 = vmatpush1.bf16.msra.mxu0 %v438
  %1485 = vmatprep.subr.bf16.mxu0 0
  %1486 = vmatpush1.bf16.msra.mxu0 %v439
  %1487 = vmatprep.subr.bf16.mxu0 0
  %1488 = vmatpush1.bf16.msra.mxu0 %v440
  %1489 = vmatprep.subr.bf16.mxu0 0
  %1490 = vmatpush1.bf16.msra.mxu0 %v441
  %1491 = vmatprep.subr.bf16.mxu0 0
  %1492 = vmatpush1.bf16.msra.mxu0 %v442
  %1493 = vmatprep.subr.bf16.mxu0 0
  %1494 = vmatpush1.bf16.msra.mxu0 %v443
  %1495 = vmatprep.subr.bf16.mxu0 0
  %1496 = vmatpush1.bf16.msra.mxu0 %v444
  %1497 = vmatprep.subr.bf16.mxu0 0
  %1498 = vmatpush1.bf16.msra.mxu0 %v445
  %1499 = vmatprep.subr.bf16.mxu0 0
  %1500 = vmatpush1.bf16.msra.mxu0 %v446
  %1501 = vmatprep.subr.bf16.mxu0 0
  %1502 = vmatpush1.bf16.msra.mxu0 %v447
  %1503 = vmatprep.subr.bf16.mxu0 0
  %1504 = vmatpush1.bf16.msra.mxu0 %v448
  %1505 = vmatprep.mubr.bf16.mxu0 %v1348
  %1506 = vmatmul.mubr.bf16.gmra.mrb[0].mxu0 %v1347
  %v1507 = vpop.f32.mrb[0].mxu0
  %v1508 = vadd.f32 %v1459, %v1507
  %v1509 = vpop.f32.mrb[0].mxu0
  %v1510 = vpop.f32.mrb[0].mxu0
  %v1511 = vadd.f32 %v1462, %v1510
  %v1512 = vpop.f32.mrb[0].mxu0
  %1513 = vmatprep.mubr.bf16.mxu0 %v1355
  %1514 = vmatmul.mubr.bf16.gmra.mrb[0].mxu0 %v1354
  %v1515 = vpop.f32.mrb[0].mxu0
  %v1516 = vadd.f32 %v1467, %v1515
  %v1517 = vpop.f32.mrb[0].mxu0
  %v1518 = vpop.f32.mrb[0].mxu0
  %v1519 = vadd.f32 %v1470, %v1518
  %v1520 = vpop.f32.mrb[0].mxu0
  %1521 = vdwg.mxu0
  %1522 = vmatprep.subr.bf16.mxu0 0
  %1523 = vmatpush1.bf16.msra.mxu0 %v449
  %1524 = vmatprep.subr.bf16.mxu0 0
  %1525 = vmatpush1.bf16.msra.mxu0 %v450
  %1526 = vmatprep.subr.bf16.mxu0 0
  %1527 = vmatpush1.bf16.msra.mxu0 0
  %1528 = vmatprep.subr.bf16.mxu0 0
  %1529 = vmatpush1.bf16.msra.mxu0 0
  %1530 = vmatprep.subr.bf16.mxu0 0
  %1531 = vmatpush1.bf16.msra.mxu0 0
  %1532 = vmatprep.subr.bf16.mxu0 0
  %1533 = vmatpush1.bf16.msra.mxu0 0
  %1534 = vmatprep.subr.bf16.mxu0 0
  %1535 = vmatpush1.bf16.msra.mxu0 0
  %1536 = vmatprep.subr.bf16.mxu0 0
  %1537 = vmatpush1.bf16.msra.mxu0 0
  %1538 = vmatprep.subr.bf16.mxu0 0
  %1539 = vmatpush1.bf16.msra.mxu0 0
  %1540 = vmatprep.subr.bf16.mxu0 0
  %1541 = vmatpush1.bf16.msra.mxu0 0
  %1542 = vmatprep.subr.bf16.mxu0 0
  %1543 = vmatpush1.bf16.msra.mxu0 0
  %1544 = vmatprep.subr.bf16.mxu0 0
  %1545 = vmatpush1.bf16.msra.mxu0 0
  %1546 = vmatprep.subr.bf16.mxu0 0
  %1547 = vmatpush1.bf16.msra.mxu0 0
  %1548 = vmatprep.subr.bf16.mxu0 0
  %1549 = vmatpush1.bf16.msra.mxu0 0
  %1550 = vmatprep.subr.bf16.mxu0 0
  %1551 = vmatpush1.bf16.msra.mxu0 0
  %1552 = vmatprep.subr.bf16.mxu0 0
  %1553 = vmatpush1.bf16.msra.mxu0 0
  %1554 = vmatprep.mubr.bf16.mxu0 0
  %1555 = vmatmul.mubr.bf16.gmra.mrb[0].mxu0 %v1370
  %v1556 = vpop.f32.mrb[0].mxu0
  %v1557 = vadd.f32 %v1508, %v1556
  %v1558 = vpop.f32.mrb[0].mxu0
  %v1559 = vpop.f32.mrb[0].mxu0
  %v1560 = vadd.f32 %v1511, %v1559
  %v1561 = vpop.f32.mrb[0].mxu0
  %1562 = vmatprep.mubr.bf16.mxu0 0
  %1563 = vmatmul.mubr.bf16.gmra.mrb[0].mxu0 %v1373
  %v1564 = vpop.f32.mrb[0].mxu0
  %v1565 = vadd.f32 %v1516, %v1564
  %v1566 = vpop.f32.mrb[0].mxu0
  %v1567 = vpop.f32.mrb[0].mxu0
  %v1568 = vadd.f32 %v1519, %v1567
  %v1569 = vpop.f32.mrb[0].mxu0
  %1570 = vdwg.mxu0
  %v1571 = vmax.f32 %v690, %v979
  %v1572 = vmax.f32 %v693, %v982
  %v1573 = vmax.f32 %v698, %v987
  %v1574 = vmax.f32 %v701, %v990
  %v1575 = vmax.f32 %v1268, %v1557
  %v1576 = vmax.f32 %v1271, %v1560
  %v1577 = vmax.f32 %v1276, %v1565
  %v1578 = vmax.f32 %v1279, %v1568
  %v1579 = vmax.f32 %v1571, %v1575
  %v1580 = vmax.f32 %v1572, %v1576
  %v1581 = vmax.f32 %v1573, %v1577
  %v1582 = vmax.f32 %v1574, %v1578
  %v1583 = vld [vmem:[%s2] sm:$0x1]
  %v1585 = vlaneseq
  %v1586 = vshrl.u32 %v1585, 7
  %v1587 = vsub.s32 0, %v1586
  %v1588 = vrot.slane %v1583, %v1587
  %v1590 = vadd.f32 %v1579, %v1588
  %v1591 = vadd.f32 %v1580, %v1588
  %v1592 = vadd.f32 %v1581, %v1588
  %v1593 = vadd.f32 %v1582, %v1588
  %v1594 = vmax.f32 %v1590, 0.0
  %v1595 = vmax.f32 %v1591, 0.0
  %v1596 = vmax.f32 %v1592, 0.0
  %v1597 = vmax.f32 %v1593, 0.0
  %v1598 = vpack.c.bf16 %v1595, %v1594
  %v1599 = vpack.c.bf16 %v1597, %v1596
  %v1602 = vunpack.c.l.b16 %v1598
  %v1603 = vunpack.c.h.b16 %v1598
  %v1604 = vunpack.c.l.b16 %v1599
  %v1605 = vunpack.c.h.b16 %v1599
  %v1606 = vpack.c.b16 %v1602, %v1602
  %v1607 = vpack.c.b16 %v1603, %v1603
  %v1608 = vpack.c.b16 %v1604, %v1604
  %v1609 = vpack.c.b16 %v1605, %v1605
  %vm1614 = vcmask 519168
  %1615 = vst.msk [vmem:[%s3] sm:$0xf] %vm1614, %v1606
  %1616 = vst.msk [vmem:[%s3 + $0x4] sm:$0xf] %vm1614, %v1607
  %1617 = vst.msk [vmem:[%s3 + $0x8] sm:$0xf] %vm1614, %v1608
  %1618 = vst.msk [vmem:[%s3 + $0xc] sm:$0xf] %vm1614, %v1609
  // Predicated region
  $region14: #{convnet_forward.5} parent=0 // pred_check
    _
  $region15: #{convnet_forward.5} parent=0 // pred_check_branch
    %1620 = sbr.rel (0) target = $region17
  $region16: #{convnet_forward.5} parent=0 // pred_region
    _
  $region17: #{convnet_forward.5} parent=0 // pred_fallthru
    _
  // Predicated region
  $region18: #{convnet_forward.5} parent=0 // pred_check
    _
  $region19: #{convnet_forward.5} parent=0 // pred_check_branch
    %1622 = sbr.rel (0) target = $region21
  $region20: #{convnet_forward.5} parent=0 // pred_region
    _
  $region21: #{convnet_forward.5} parent=0 // pred_fallthru
    _

// kernel: convnet_forward.6
$region0: #{convnet_forward.6}
  #allocation0 [shape = 'u32[]', space=smem, size = 0x4, offset = 0x4, fixed_abs, tag = 'smem constant byte address 0x4 - core index']
  #allocation1 [shape = 'u32[144,128]{1,0:T(1,128)}', space=vmem, size = 0x12000, scoped, tag = 'internal scratch']
  %s0 = inlined_call_operand.vmem [shape: bf16[8,1024], index: 0, kind: input, shape index: {}]
  %s1 = inlined_call_operand.vmem [shape: bf16[1024,1024], index: 1, kind: input, shape index: {}]
  %s2 = inlined_call_operand.vmem [shape: f32[1,1024], index: 2, kind: input, shape index: {}]
  %s3 = inlined_call_operand.vmem [shape: bf16[8,1024], index: 3, kind: output, shape index: {}]
  %s4 = sld [smem:[#allocation0]]
  $region22: #{convnet_forward.6} parent=0
    _
  %s6 = ssub.s32 1, %s4
  %s7 = scalar_select 0, %s6, %s4
  // Predicated region
  $region2: #{convnet_forward.6} parent=0 // pred_check
    _
  $region3: #{convnet_forward.6} parent=0 // pred_check_branch
    %9 = sbr.rel (0) target = $region5
  $region4: #{convnet_forward.6} parent=0 // pred_region
    _
  $region5: #{convnet_forward.6} parent=0 // pred_fallthru
    _
  // Predicated region
  $region6: #{convnet_forward.6} parent=0 // pred_check
    _
  $region7: #{convnet_forward.6} parent=0 // pred_check_branch
    %11 = sbr.rel (0) target = $region9
  $region8: #{convnet_forward.6} parent=0 // pred_region
    _
  $region9: #{convnet_forward.6} parent=0 // pred_fallthru
    _
  // Predicated region
  $region10: #{convnet_forward.6} parent=0 // pred_check
    _
  $region11: #{convnet_forward.6} parent=0 // pred_check_branch
    %13 = sbr.rel (0) target = $region13
  $region12: #{convnet_forward.6} parent=0 // pred_region
    _
  $region13: #{convnet_forward.6} parent=0 // pred_fallthru
    _
  %v14 = vld [vmem:[%s0] sm:$0xff]
  %v15 = vld [vmem:[%s0 + $0x8] sm:$0xff]
  %v16 = vld [vmem:[%s0 + $0x10] sm:$0xff]
  %v17 = vld [vmem:[%s0 + $0x18] sm:$0xff]
  %v18 = vld [vmem:[%s1] sm:$0xff]
  %v19 = vld [vmem:[%s1 + $0x8] sm:$0xff]
  %v20 = vld [vmem:[%s1 + $0x10] sm:$0xff]
  %v21 = vld [vmem:[%s1 + $0x18] sm:$0xff]
  %v22 = vld [vmem:[%s1 + $0x20] sm:$0xff]
  %v23 = vld [vmem:[%s1 + $0x28] sm:$0xff]
  %v24 = vld [vmem:[%s1 + $0x30] sm:$0xff]
  %v25 = vld [vmem:[%s1 + $0x38] sm:$0xff]
  %v26 = vld [vmem:[%s1 + $0x40] sm:$0xff]
  %v27 = vld [vmem:[%s1 + $0x48] sm:$0xff]
  %v28 = vld [vmem:[%s1 + $0x50] sm:$0xff]
  %v29 = vld [vmem:[%s1 + $0x58] sm:$0xff]
  %v30 = vld [vmem:[%s1 + $0x60] sm:$0xff]
  %v31 = vld [vmem:[%s1 + $0x68] sm:$0xff]
  %v32 = vld [vmem:[%s1 + $0x70] sm:$0xff]
  %v33 = vld [vmem:[%s1 + $0x78] sm:$0xff]
  %v34 = vld [vmem:[%s1 + $0x80] sm:$0xff]
  %v35 = vld [vmem:[%s1 + $0x88] sm:$0xff]
  %v36 = vld [vmem:[%s1 + $0x90] sm:$0xff]
  %v37 = vld [vmem:[%s1 + $0x98] sm:$0xff]
  %v38 = vld [vmem:[%s1 + $0xa0] sm:$0xff]
  %v39 = vld [vmem:[%s1 + $0xa8] sm:$0xff]
  %v40 = vld [vmem:[%s1 + $0xb0] sm:$0xff]
  %v41 = vld [vmem:[%s1 + $0xb8] sm:$0xff]
  %v42 = vld [vmem:[%s1 + $0xc0] sm:$0xff]
  %v43 = vld [vmem:[%s1 + $0xc8] sm:$0xff]
  %v44 = vld [vmem:[%s1 + $0xd0] sm:$0xff]
  %v45 = vld [vmem:[%s1 + $0xd8] sm:$0xff]
  %v46 = vld [vmem:[%s1 + $0xe0] sm:$0xff]
  %v47 = vld [vmem:[%s1 + $0xe8] sm:$0xff]
  %v48 = vld [vmem:[%s1 + $0xf0] sm:$0xff]
  %v49 = vld [vmem:[%s1 + $0xf8] sm:$0xff]
  %v50 = vld [vmem:[%s1 + $0x100] sm:$0xff]
  %v51 = vld [vmem:[%s1 + $0x108] sm:$0xff]
  %v52 = vld [vmem:[%s1 + $0x110] sm:$0xff]
  %v53 = vld [vmem:[%s1 + $0x118] sm:$0xff]
  %v54 = vld [vmem:[%s1 + $0x120] sm:$0xff]
  %v55 = vld [vmem:[%s1 + $0x128] sm:$0xff]
  %v56 = vld [vmem:[%s1 + $0x130] sm:$0xff]
  %v57 = vld [vmem:[%s1 + $0x138] sm:$0xff]
  %v58 = vld [vmem:[%s1 + $0x140] sm:$0xff]
  %v59 = vld [vmem:[%s1 + $0x148] sm:$0xff]
  %v60 = vld [vmem:[%s1 + $0x150] sm:$0xff]
  %v61 = vld [vmem:[%s1 + $0x158] sm:$0xff]
  %v62 = vld [vmem:[%s1 + $0x160] sm:$0xff]
  %v63 = vld [vmem:[%s1 + $0x168] sm:$0xff]
  %v64 = vld [vmem:[%s1 + $0x170] sm:$0xff]
  %v65 = vld [vmem:[%s1 + $0x178] sm:$0xff]
  %v66 = vld [vmem:[%s1 + $0x180] sm:$0xff]
  %v67 = vld [vmem:[%s1 + $0x188] sm:$0xff]
  %v68 = vld [vmem:[%s1 + $0x190] sm:$0xff]
  %v69 = vld [vmem:[%s1 + $0x198] sm:$0xff]
  %v70 = vld [vmem:[%s1 + $0x1a0] sm:$0xff]
  %v71 = vld [vmem:[%s1 + $0x1a8] sm:$0xff]
  %v72 = vld [vmem:[%s1 + $0x1b0] sm:$0xff]
  %v73 = vld [vmem:[%s1 + $0x1b8] sm:$0xff]
  %v74 = vld [vmem:[%s1 + $0x1c0] sm:$0xff]
  %v75 = vld [vmem:[%s1 + $0x1c8] sm:$0xff]
  %v76 = vld [vmem:[%s1 + $0x1d0] sm:$0xff]
  %v77 = vld [vmem:[%s1 + $0x1d8] sm:$0xff]
  %v78 = vld [vmem:[%s1 + $0x1e0] sm:$0xff]
  %v79 = vld [vmem:[%s1 + $0x1e8] sm:$0xff]
  %v80 = vld [vmem:[%s1 + $0x1f0] sm:$0xff]
  %v81 = vld [vmem:[%s1 + $0x1f8] sm:$0xff]
  %v82 = vld [vmem:[%s1 + $0x200] sm:$0xff]
  %v83 = vld [vmem:[%s1 + $0x208] sm:$0xff]
  %v84 = vld [vmem:[%s1 + $0x210] sm:$0xff]
  %v85 = vld [vmem:[%s1 + $0x218] sm:$0xff]
  %v86 = vld [vmem:[%s1 + $0x220] sm:$0xff]
  %v87 = vld [vmem:[%s1 + $0x228] sm:$0xff]
  %v88 = vld [vmem:[%s1 + $0x230] sm:$0xff]
  %v89 = vld [vmem:[%s1 + $0x238] sm:$0xff]
  %v90 = vld [vmem:[%s1 + $0x240] sm:$0xff]
  %v91 = vld [vmem:[%s1 + $0x248] sm:$0xff]
  %v92 = vld [vmem:[%s1 + $0x250] sm:$0xff]
  %v93 = vld [vmem:[%s1 + $0x258] sm:$0xff]
  %v94 = vld [vmem:[%s1 + $0x260] sm:$0xff]
  %v95 = vld [vmem:[%s1 + $0x268] sm:$0xff]
  %v96 = vld [vmem:[%s1 + $0x270] sm:$0xff]
  %v97 = vld [vmem:[%s1 + $0x278] sm:$0xff]
  %v98 = vld [vmem:[%s1 + $0x280] sm:$0xff]
  %v99 = vld [vmem:[%s1 + $0x288] sm:$0xff]
  %v100 = vld [vmem:[%s1 + $0x290] sm:$0xff]
  %v101 = vld [vmem:[%s1 + $0x298] sm:$0xff]
  %v102 = vld [vmem:[%s1 + $0x2a0] sm:$0xff]
  %v103 = vld [vmem:[%s1 + $0x2a8] sm:$0xff]
  %v104 = vld [vmem:[%s1 + $0x2b0] sm:$0xff]
  %v105 = vld [vmem:[%s1 + $0x2b8] sm:$0xff]
  %v106 = vld [vmem:[%s1 + $0x2c0] sm:$0xff]
  %v107 = vld [vmem:[%s1 + $0x2c8] sm:$0xff]
  %v108 = vld [vmem:[%s1 + $0x2d0] sm:$0xff]
  %v109 = vld [vmem:[%s1 + $0x2d8] sm:$0xff]
  %v110 = vld [vmem:[%s1 + $0x2e0] sm:$0xff]
  %v111 = vld [vmem:[%s1 + $0x2e8] sm:$0xff]
  %v112 = vld [vmem:[%s1 + $0x2f0] sm:$0xff]
  %v113 = vld [vmem:[%s1 + $0x2f8] sm:$0xff]
  %v114 = vld [vmem:[%s1 + $0x300] sm:$0xff]
  %v115 = vld [vmem:[%s1 + $0x308] sm:$0xff]
  %v116 = vld [vmem:[%s1 + $0x310] sm:$0xff]
  %v117 = vld [vmem:[%s1 + $0x318] sm:$0xff]
  %v118 = vld [vmem:[%s1 + $0x320] sm:$0xff]
  %v119 = vld [vmem:[%s1 + $0x328] sm:$0xff]
  %v120 = vld [vmem:[%s1 + $0x330] sm:$0xff]
  %v121 = vld [vmem:[%s1 + $0x338] sm:$0xff]
  %v122 = vld [vmem:[%s1 + $0x340] sm:$0xff]
  %v123 = vld [vmem:[%s1 + $0x348] sm:$0xff]
  %v124 = vld [vmem:[%s1 + $0x350] sm:$0xff]
  %v125 = vld [vmem:[%s1 + $0x358] sm:$0xff]
  %v126 = vld [vmem:[%s1 + $0x360] sm:$0xff]
  %v127 = vld [vmem:[%s1 + $0x368] sm:$0xff]
  %v128 = vld [vmem:[%s1 + $0x370] sm:$0xff]
  %v129 = vld [vmem:[%s1 + $0x378] sm:$0xff]
  %v130 = vld [vmem:[%s1 + $0x380] sm:$0xff]
  %v131 = vld [vmem:[%s1 + $0x388] sm:$0xff]
  %v132 = vld [vmem:[%s1 + $0x390] sm:$0xff]
  %v133 = vld [vmem:[%s1 + $0x398] sm:$0xff]
  %v134 = vld [vmem:[%s1 + $0x3a0] sm:$0xff]
  %v135 = vld [vmem:[%s1 + $0x3a8] sm:$0xff]
  %v136 = vld [vmem:[%s1 + $0x3b0] sm:$0xff]
  %v137 = vld [vmem:[%s1 + $0x3b8] sm:$0xff]
  %v138 = vld [vmem:[%s1 + $0x3c0] sm:$0xff]
  %v139 = vld [vmem:[%s1 + $0x3c8] sm:$0xff]
  %v140 = vld [vmem:[%s1 + $0x3d0] sm:$0xff]
  %v141 = vld [vmem:[%s1 + $0x3d8] sm:$0xff]
  %v142 = vld [vmem:[%s1 + $0x3e0] sm:$0xff]
  %v143 = vld [vmem:[%s1 + $0x3e8] sm:$0xff]
  %v144 = vld [vmem:[%s1 + $0x3f0] sm:$0xff]
  %v145 = vld [vmem:[%s1 + $0x3f8] sm:$0xff]
  %v146 = vld [vmem:[%s1 + $0x400] sm:$0xff]
  %v147 = vld [vmem:[%s1 + $0x408] sm:$0xff]
  %v148 = vld [vmem:[%s1 + $0x410] sm:$0xff]
  %v149 = vld [vmem:[%s1 + $0x418] sm:$0xff]
  %v150 = vld [vmem:[%s1 + $0x420] sm:$0xff]
  %v151 = vld [vmem:[%s1 + $0x428] sm:$0xff]
  %v152 = vld [vmem:[%s1 + $0x430] sm:$0xff]
  %v153 = vld [vmem:[%s1 + $0x438] sm:$0xff]
  %v154 = vld [vmem:[%s1 + $0x440] sm:$0xff]
  %v155 = vld [vmem:[%s1 + $0x448] sm:$0xff]
  %v156 = vld [vmem:[%s1 + $0x450] sm:$0xff]
  %v157 = vld [vmem:[%s1 + $0x458] sm:$0xff]
  %v158 = vld [vmem:[%s1 + $0x460] sm:$0xff]
  %v159 = vld [vmem:[%s1 + $0x468] sm:$0xff]
  %v160 = vld [vmem:[%s1 + $0x470] sm:$0xff]
  %v161 = vld [vmem:[%s1 + $0x478] sm:$0xff]
  %v162 = vld [vmem:[%s1 + $0x480] sm:$0xff]
  %v163 = vld [vmem:[%s1 + $0x488] sm:$0xff]
  %v164 = vld [vmem:[%s1 + $0x490] sm:$0xff]
  %v165 = vld [vmem:[%s1 + $0x498] sm:$0xff]
  %v166 = vld [vmem:[%s1 + $0x4a0] sm:$0xff]
  %v167 = vld [vmem:[%s1 + $0x4a8] sm:$0xff]
  %v168 = vld [vmem:[%s1 + $0x4b0] sm:$0xff]
  %v169 = vld [vmem:[%s1 + $0x4b8] sm:$0xff]
  %v170 = vld [vmem:[%s1 + $0x4c0] sm:$0xff]
  %v171 = vld [vmem:[%s1 + $0x4c8] sm:$0xff]
  %v172 = vld [vmem:[%s1 + $0x4d0] sm:$0xff]
  %v173 = vld [vmem:[%s1 + $0x4d8] sm:$0xff]
  %v174 = vld [vmem:[%s1 + $0x4e0] sm:$0xff]
  %v175 = vld [vmem:[%s1 + $0x4e8] sm:$0xff]
  %v176 = vld [vmem:[%s1 + $0x4f0] sm:$0xff]
  %v177 = vld [vmem:[%s1 + $0x4f8] sm:$0xff]
  %v178 = vld [vmem:[%s1 + $0x500] sm:$0xff]
  %v179 = vld [vmem:[%s1 + $0x508] sm:$0xff]
  %v180 = vld [vmem:[%s1 + $0x510] sm:$0xff]
  %v181 = vld [vmem:[%s1 + $0x518] sm:$0xff]
  %v182 = vld [vmem:[%s1 + $0x520] sm:$0xff]
  %v183 = vld [vmem:[%s1 + $0x528] sm:$0xff]
  %v184 = vld [vmem:[%s1 + $0x530] sm:$0xff]
  %v185 = vld [vmem:[%s1 + $0x538] sm:$0xff]
  %v186 = vld [vmem:[%s1 + $0x540] sm:$0xff]
  %v187 = vld [vmem:[%s1 + $0x548] sm:$0xff]
  %v188 = vld [vmem:[%s1 + $0x550] sm:$0xff]
  %v189 = vld [vmem:[%s1 + $0x558] sm:$0xff]
  %v190 = vld [vmem:[%s1 + $0x560] sm:$0xff]
  %v191 = vld [vmem:[%s1 + $0x568] sm:$0xff]
  %v192 = vld [vmem:[%s1 + $0x570] sm:$0xff]
  %v193 = vld [vmem:[%s1 + $0x578] sm:$0xff]
  %v194 = vld [vmem:[%s1 + $0x580] sm:$0xff]
  %v195 = vld [vmem:[%s1 + $0x588] sm:$0xff]
  %v196 = vld [vmem:[%s1 + $0x590] sm:$0xff]
  %v197 = vld [vmem:[%s1 + $0x598] sm:$0xff]
  %v198 = vld [vmem:[%s1 + $0x5a0] sm:$0xff]
  %v199 = vld [vmem:[%s1 + $0x5a8] sm:$0xff]
  %v200 = vld [vmem:[%s1 + $0x5b0] sm:$0xff]
  %v201 = vld [vmem:[%s1 + $0x5b8] sm:$0xff]
  %v202 = vld [vmem:[%s1 + $0x5c0] sm:$0xff]
  %v203 = vld [vmem:[%s1 + $0x5c8] sm:$0xff]
  %v204 = vld [vmem:[%s1 + $0x5d0] sm:$0xff]
  %v205 = vld [vmem:[%s1 + $0x5d8] sm:$0xff]
  %v206 = vld [vmem:[%s1 + $0x5e0] sm:$0xff]
  %v207 = vld [vmem:[%s1 + $0x5e8] sm:$0xff]
  %v208 = vld [vmem:[%s1 + $0x5f0] sm:$0xff]
  %v209 = vld [vmem:[%s1 + $0x5f8] sm:$0xff]
  %v210 = vld [vmem:[%s1 + $0x600] sm:$0xff]
  %v211 = vld [vmem:[%s1 + $0x608] sm:$0xff]
  %v212 = vld [vmem:[%s1 + $0x610] sm:$0xff]
  %v213 = vld [vmem:[%s1 + $0x618] sm:$0xff]
  %v214 = vld [vmem:[%s1 + $0x620] sm:$0xff]
  %v215 = vld [vmem:[%s1 + $0x628] sm:$0xff]
  %v216 = vld [vmem:[%s1 + $0x630] sm:$0xff]
  %v217 = vld [vmem:[%s1 + $0x638] sm:$0xff]
  %v218 = vld [vmem:[%s1 + $0x640] sm:$0xff]
  %v219 = vld [vmem:[%s1 + $0x648] sm:$0xff]
  %v220 = vld [vmem:[%s1 + $0x650] sm:$0xff]
  %v221 = vld [vmem:[%s1 + $0x658] sm:$0xff]
  %v222 = vld [vmem:[%s1 + $0x660] sm:$0xff]
  %v223 = vld [vmem:[%s1 + $0x668] sm:$0xff]
  %v224 = vld [vmem:[%s1 + $0x670] sm:$0xff]
  %v225 = vld [vmem:[%s1 + $0x678] sm:$0xff]
  %v226 = vld [vmem:[%s1 + $0x680] sm:$0xff]
  %v227 = vld [vmem:[%s1 + $0x688] sm:$0xff]
  %v228 = vld [vmem:[%s1 + $0x690] sm:$0xff]
  %v229 = vld [vmem:[%s1 + $0x698] sm:$0xff]
  %v230 = vld [vmem:[%s1 + $0x6a0] sm:$0xff]
  %v231 = vld [vmem:[%s1 + $0x6a8] sm:$0xff]
  %v232 = vld [vmem:[%s1 + $0x6b0] sm:$0xff]
  %v233 = vld [vmem:[%s1 + $0x6b8] sm:$0xff]
  %v234 = vld [vmem:[%s1 + $0x6c0] sm:$0xff]
  %v235 = vld [vmem:[%s1 + $0x6c8] sm:$0xff]
  %v236 = vld [vmem:[%s1 + $0x6d0] sm:$0xff]
  %v237 = vld [vmem:[%s1 + $0x6d8] sm:$0xff]
  %v238 = vld [vmem:[%s1 + $0x6e0] sm:$0xff]
  %v239 = vld [vmem:[%s1 + $0x6e8] sm:$0xff]
  %v240 = vld [vmem:[%s1 + $0x6f0] sm:$0xff]
  %v241 = vld [vmem:[%s1 + $0x6f8] sm:$0xff]
  %v242 = vld [vmem:[%s1 + $0x700] sm:$0xff]
  %v243 = vld [vmem:[%s1 + $0x708] sm:$0xff]
  %v244 = vld [vmem:[%s1 + $0x710] sm:$0xff]
  %v245 = vld [vmem:[%s1 + $0x718] sm:$0xff]
  %v246 = vld [vmem:[%s1 + $0x720] sm:$0xff]
  %v247 = vld [vmem:[%s1 + $0x728] sm:$0xff]
  %v248 = vld [vmem:[%s1 + $0x730] sm:$0xff]
  %v249 = vld [vmem:[%s1 + $0x738] sm:$0xff]
  %v250 = vld [vmem:[%s1 + $0x740] sm:$0xff]
  %v251 = vld [vmem:[%s1 + $0x748] sm:$0xff]
  %v252 = vld [vmem:[%s1 + $0x750] sm:$0xff]
  %v253 = vld [vmem:[%s1 + $0x758] sm:$0xff]
  %v254 = vld [vmem:[%s1 + $0x760] sm:$0xff]
  %v255 = vld [vmem:[%s1 + $0x768] sm:$0xff]
  %v256 = vld [vmem:[%s1 + $0x770] sm:$0xff]
  %v257 = vld [vmem:[%s1 + $0x778] sm:$0xff]
  %v258 = vld [vmem:[%s1 + $0x780] sm:$0xff]
  %v259 = vld [vmem:[%s1 + $0x788] sm:$0xff]
  %v260 = vld [vmem:[%s1 + $0x790] sm:$0xff]
  %v261 = vld [vmem:[%s1 + $0x798] sm:$0xff]
  %v262 = vld [vmem:[%s1 + $0x7a0] sm:$0xff]
  %v263 = vld [vmem:[%s1 + $0x7a8] sm:$0xff]
  %v264 = vld [vmem:[%s1 + $0x7b0] sm:$0xff]
  %v265 = vld [vmem:[%s1 + $0x7b8] sm:$0xff]
  %v266 = vld [vmem:[%s1 + $0x7c0] sm:$0xff]
  %v267 = vld [vmem:[%s1 + $0x7c8] sm:$0xff]
  %v268 = vld [vmem:[%s1 + $0x7d0] sm:$0xff]
  %v269 = vld [vmem:[%s1 + $0x7d8] sm:$0xff]
  %v270 = vld [vmem:[%s1 + $0x7e0] sm:$0xff]
  %v271 = vld [vmem:[%s1 + $0x7e8] sm:$0xff]
  %v272 = vld [vmem:[%s1 + $0x7f0] sm:$0xff]
  %v273 = vld [vmem:[%s1 + $0x7f8] sm:$0xff]
  %v274 = vld [vmem:[%s1 + $0x800] sm:$0xff]
  %v275 = vld [vmem:[%s1 + $0x808] sm:$0xff]
  %v276 = vld [vmem:[%s1 + $0x810] sm:$0xff]
  %v277 = vld [vmem:[%s1 + $0x818] sm:$0xff]
  %v278 = vld [vmem:[%s1 + $0x820] sm:$0xff]
  %v279 = vld [vmem:[%s1 + $0x828] sm:$0xff]
  %v280 = vld [vmem:[%s1 + $0x830] sm:$0xff]
  %v281 = vld [vmem:[%s1 + $0x838] sm:$0xff]
  %v282 = vld [vmem:[%s1 + $0x840] sm:$0xff]
  %v283 = vld [vmem:[%s1 + $0x848] sm:$0xff]
  %v284 = vld [vmem:[%s1 + $0x850] sm:$0xff]
  %v285 = vld [vmem:[%s1 + $0x858] sm:$0xff]
  %v286 = vld [vmem:[%s1 + $0x860] sm:$0xff]
  %v287 = vld [vmem:[%s1 + $0x868] sm:$0xff]
  %v288 = vld [vmem:[%s1 + $0x870] sm:$0xff]
  %v289 = vld [vmem:[%s1 + $0x878] sm:$0xff]
  %v290 = vld [vmem:[%s1 + $0x880] sm:$0xff]
  %v291 = vld [vmem:[%s1 + $0x888] sm:$0xff]
  %v292 = vld [vmem:[%s1 + $0x890] sm:$0xff]
  %v293 = vld [vmem:[%s1 + $0x898] sm:$0xff]
  %v294 = vld [vmem:[%s1 + $0x8a0] sm:$0xff]
  %v295 = vld [vmem:[%s1 + $0x8a8] sm:$0xff]
  %v296 = vld [vmem:[%s1 + $0x8b0] sm:$0xff]
  %v297 = vld [vmem:[%s1 + $0x8b8] sm:$0xff]
  %v298 = vld [vmem:[%s1 + $0x8c0] sm:$0xff]
  %v299 = vld [vmem:[%s1 + $0x8c8] sm:$0xff]
  %v300 = vld [vmem:[%s1 + $0x8d0] sm:$0xff]
  %v301 = vld [vmem:[%s1 + $0x8d8] sm:$0xff]
  %v302 = vld [vmem:[%s1 + $0x8e0] sm:$0xff]
  %v303 = vld [vmem:[%s1 + $0x8e8] sm:$0xff]
  %v304 = vld [vmem:[%s1 + $0x8f0] sm:$0xff]
  %v305 = vld [vmem:[%s1 + $0x8f8] sm:$0xff]
  %v306 = vld [vmem:[%s1 + $0x900] sm:$0xff]
  %v307 = vld [vmem:[%s1 + $0x908] sm:$0xff]
  %v308 = vld [vmem:[%s1 + $0x910] sm:$0xff]
  %v309 = vld [vmem:[%s1 + $0x918] sm:$0xff]
  %v310 = vld [vmem:[%s1 + $0x920] sm:$0xff]
  %v311 = vld [vmem:[%s1 + $0x928] sm:$0xff]
  %v312 = vld [vmem:[%s1 + $0x930] sm:$0xff]
  %v313 = vld [vmem:[%s1 + $0x938] sm:$0xff]
  %v314 = vld [vmem:[%s1 + $0x940] sm:$0xff]
  %v315 = vld [vmem:[%s1 + $0x948] sm:$0xff]
  %v316 = vld [vmem:[%s1 + $0x950] sm:$0xff]
  %v317 = vld [vmem:[%s1 + $0x958] sm:$0xff]
  %v318 = vld [vmem:[%s1 + $0x960] sm:$0xff]
  %v319 = vld [vmem:[%s1 + $0x968] sm:$0xff]
  %v320 = vld [vmem:[%s1 + $0x970] sm:$0xff]
  %v321 = vld [vmem:[%s1 + $0x978] sm:$0xff]
  %v322 = vld [vmem:[%s1 + $0x980] sm:$0xff]
  %v323 = vld [vmem:[%s1 + $0x988] sm:$0xff]
  %v324 = vld [vmem:[%s1 + $0x990] sm:$0xff]
  %v325 = vld [vmem:[%s1 + $0x998] sm:$0xff]
  %v326 = vld [vmem:[%s1 + $0x9a0] sm:$0xff]
  %v327 = vld [vmem:[%s1 + $0x9a8] sm:$0xff]
  %v328 = vld [vmem:[%s1 + $0x9b0] sm:$0xff]
  %v329 = vld [vmem:[%s1 + $0x9b8] sm:$0xff]
  %v330 = vld [vmem:[%s1 + $0x9c0] sm:$0xff]
  %v331 = vld [vmem:[%s1 + $0x9c8] sm:$0xff]
  %v332 = vld [vmem:[%s1 + $0x9d0] sm:$0xff]
  %v333 = vld [vmem:[%s1 + $0x9d8] sm:$0xff]
  %v334 = vld [vmem:[%s1 + $0x9e0] sm:$0xff]
  %v335 = vld [vmem:[%s1 + $0x9e8] sm:$0xff]
  %v336 = vld [vmem:[%s1 + $0x9f0] sm:$0xff]
  %v337 = vld [vmem:[%s1 + $0x9f8] sm:$0xff]
  %v338 = vld [vmem:[%s1 + $0xa00] sm:$0xff]
  %v339 = vld [vmem:[%s1 + $0xa08] sm:$0xff]
  %v340 = vld [vmem:[%s1 + $0xa10] sm:$0xff]
  %v341 = vld [vmem:[%s1 + $0xa18] sm:$0xff]
  %v342 = vld [vmem:[%s1 + $0xa20] sm:$0xff]
  %v343 = vld [vmem:[%s1 + $0xa28] sm:$0xff]
  %v344 = vld [vmem:[%s1 + $0xa30] sm:$0xff]
  %v345 = vld [vmem:[%s1 + $0xa38] sm:$0xff]
  %v346 = vld [vmem:[%s1 + $0xa40] sm:$0xff]
  %v347 = vld [vmem:[%s1 + $0xa48] sm:$0xff]
  %v348 = vld [vmem:[%s1 + $0xa50] sm:$0xff]
  %v349 = vld [vmem:[%s1 + $0xa58] sm:$0xff]
  %v350 = vld [vmem:[%s1 + $0xa60] sm:$0xff]
  %v351 = vld [vmem:[%s1 + $0xa68] sm:$0xff]
  %v352 = vld [vmem:[%s1 + $0xa70] sm:$0xff]
  %v353 = vld [vmem:[%s1 + $0xa78] sm:$0xff]
  %v354 = vld [vmem:[%s1 + $0xa80] sm:$0xff]
  %v355 = vld [vmem:[%s1 + $0xa88] sm:$0xff]
  %v356 = vld [vmem:[%s1 + $0xa90] sm:$0xff]
  %v357 = vld [vmem:[%s1 + $0xa98] sm:$0xff]
  %v358 = vld [vmem:[%s1 + $0xaa0] sm:$0xff]
  %v359 = vld [vmem:[%s1 + $0xaa8] sm:$0xff]
  %v360 = vld [vmem:[%s1 + $0xab0] sm:$0xff]
  %v361 = vld [vmem:[%s1 + $0xab8] sm:$0xff]
  %v362 = vld [vmem:[%s1 + $0xac0] sm:$0xff]
  %v363 = vld [vmem:[%s1 + $0xac8] sm:$0xff]
  %v364 = vld [vmem:[%s1 + $0xad0] sm:$0xff]
  %v365 = vld [vmem:[%s1 + $0xad8] sm:$0xff]
  %v366 = vld [vmem:[%s1 + $0xae0] sm:$0xff]
  %v367 = vld [vmem:[%s1 + $0xae8] sm:$0xff]
  %v368 = vld [vmem:[%s1 + $0xaf0] sm:$0xff]
  %v369 = vld [vmem:[%s1 + $0xaf8] sm:$0xff]
  %v370 = vld [vmem:[%s1 + $0xb00] sm:$0xff]
  %v371 = vld [vmem:[%s1 + $0xb08] sm:$0xff]
  %v372 = vld [vmem:[%s1 + $0xb10] sm:$0xff]
  %v373 = vld [vmem:[%s1 + $0xb18] sm:$0xff]
  %v374 = vld [vmem:[%s1 + $0xb20] sm:$0xff]
  %v375 = vld [vmem:[%s1 + $0xb28] sm:$0xff]
  %v376 = vld [vmem:[%s1 + $0xb30] sm:$0xff]
  %v377 = vld [vmem:[%s1 + $0xb38] sm:$0xff]
  %v378 = vld [vmem:[%s1 + $0xb40] sm:$0xff]
  %v379 = vld [vmem:[%s1 + $0xb48] sm:$0xff]
  %v380 = vld [vmem:[%s1 + $0xb50] sm:$0xff]
  %v381 = vld [vmem:[%s1 + $0xb58] sm:$0xff]
  %v382 = vld [vmem:[%s1 + $0xb60] sm:$0xff]
  %v383 = vld [vmem:[%s1 + $0xb68] sm:$0xff]
  %v384 = vld [vmem:[%s1 + $0xb70] sm:$0xff]
  %v385 = vld [vmem:[%s1 + $0xb78] sm:$0xff]
  %v386 = vld [vmem:[%s1 + $0xb80] sm:$0xff]
  %v387 = vld [vmem:[%s1 + $0xb88] sm:$0xff]
  %v388 = vld [vmem:[%s1 + $0xb90] sm:$0xff]
  %v389 = vld [vmem:[%s1 + $0xb98] sm:$0xff]
  %v390 = vld [vmem:[%s1 + $0xba0] sm:$0xff]
  %v391 = vld [vmem:[%s1 + $0xba8] sm:$0xff]
  %v392 = vld [vmem:[%s1 + $0xbb0] sm:$0xff]
  %v393 = vld [vmem:[%s1 + $0xbb8] sm:$0xff]
  %v394 = vld [vmem:[%s1 + $0xbc0] sm:$0xff]
  %v395 = vld [vmem:[%s1 + $0xbc8] sm:$0xff]
  %v396 = vld [vmem:[%s1 + $0xbd0] sm:$0xff]
  %v397 = vld [vmem:[%s1 + $0xbd8] sm:$0xff]
  %v398 = vld [vmem:[%s1 + $0xbe0] sm:$0xff]
  %v399 = vld [vmem:[%s1 + $0xbe8] sm:$0xff]
  %v400 = vld [vmem:[%s1 + $0xbf0] sm:$0xff]
  %v401 = vld [vmem:[%s1 + $0xbf8] sm:$0xff]
  %v402 = vld [vmem:[%s1 + $0xc00] sm:$0xff]
  %v403 = vld [vmem:[%s1 + $0xc08] sm:$0xff]
  %v404 = vld [vmem:[%s1 + $0xc10] sm:$0xff]
  %v405 = vld [vmem:[%s1 + $0xc18] sm:$0xff]
  %v406 = vld [vmem:[%s1 + $0xc20] sm:$0xff]
  %v407 = vld [vmem:[%s1 + $0xc28] sm:$0xff]
  %v408 = vld [vmem:[%s1 + $0xc30] sm:$0xff]
  %v409 = vld [vmem:[%s1 + $0xc38] sm:$0xff]
  %v410 = vld [vmem:[%s1 + $0xc40] sm:$0xff]
  %v411 = vld [vmem:[%s1 + $0xc48] sm:$0xff]
  %v412 = vld [vmem:[%s1 + $0xc50] sm:$0xff]
  %v413 = vld [vmem:[%s1 + $0xc58] sm:$0xff]
  %v414 = vld [vmem:[%s1 + $0xc60] sm:$0xff]
  %v415 = vld [vmem:[%s1 + $0xc68] sm:$0xff]
  %v416 = vld [vmem:[%s1 + $0xc70] sm:$0xff]
  %v417 = vld [vmem:[%s1 + $0xc78] sm:$0xff]
  %v418 = vld [vmem:[%s1 + $0xc80] sm:$0xff]
  %v419 = vld [vmem:[%s1 + $0xc88] sm:$0xff]
  %v420 = vld [vmem:[%s1 + $0xc90] sm:$0xff]
  %v421 = vld [vmem:[%s1 + $0xc98] sm:$0xff]
  %v422 = vld [vmem:[%s1 + $0xca0] sm:$0xff]
  %v423 = vld [vmem:[%s1 + $0xca8] sm:$0xff]
  %v424 = vld [vmem:[%s1 + $0xcb0] sm:$0xff]
  %v425 = vld [vmem:[%s1 + $0xcb8] sm:$0xff]
  %v426 = vld [vmem:[%s1 + $0xcc0] sm:$0xff]
  %v427 = vld [vmem:[%s1 + $0xcc8] sm:$0xff]
  %v428 = vld [vmem:[%s1 + $0xcd0] sm:$0xff]
  %v429 = vld [vmem:[%s1 + $0xcd8] sm:$0xff]
  %v430 = vld [vmem:[%s1 + $0xce0] sm:$0xff]
  %v431 = vld [vmem:[%s1 + $0xce8] sm:$0xff]
  %v432 = vld [vmem:[%s1 + $0xcf0] sm:$0xff]
  %v433 = vld [vmem:[%s1 + $0xcf8] sm:$0xff]
  %v434 = vld [vmem:[%s1 + $0xd00] sm:$0xff]
  %v435 = vld [vmem:[%s1 + $0xd08] sm:$0xff]
  %v436 = vld [vmem:[%s1 + $0xd10] sm:$0xff]
  %v437 = vld [vmem:[%s1 + $0xd18] sm:$0xff]
  %v438 = vld [vmem:[%s1 + $0xd20] sm:$0xff]
  %v439 = vld [vmem:[%s1 + $0xd28] sm:$0xff]
  %v440 = vld [vmem:[%s1 + $0xd30] sm:$0xff]
  %v441 = vld [vmem:[%s1 + $0xd38] sm:$0xff]
  %v442 = vld [vmem:[%s1 + $0xd40] sm:$0xff]
  %v443 = vld [vmem:[%s1 + $0xd48] sm:$0xff]
  %v444 = vld [vmem:[%s1 + $0xd50] sm:$0xff]
  %v445 = vld [vmem:[%s1 + $0xd58] sm:$0xff]
  %v446 = vld [vmem:[%s1 + $0xd60] sm:$0xff]
  %v447 = vld [vmem:[%s1 + $0xd68] sm:$0xff]
  %v448 = vld [vmem:[%s1 + $0xd70] sm:$0xff]
  %v449 = vld [vmem:[%s1 + $0xd78] sm:$0xff]
  %v450 = vld [vmem:[%s1 + $0xd80] sm:$0xff]
  %v451 = vld [vmem:[%s1 + $0xd88] sm:$0xff]
  %v452 = vld [vmem:[%s1 + $0xd90] sm:$0xff]
  %v453 = vld [vmem:[%s1 + $0xd98] sm:$0xff]
  %v454 = vld [vmem:[%s1 + $0xda0] sm:$0xff]
  %v455 = vld [vmem:[%s1 + $0xda8] sm:$0xff]
  %v456 = vld [vmem:[%s1 + $0xdb0] sm:$0xff]
  %v457 = vld [vmem:[%s1 + $0xdb8] sm:$0xff]
  %v458 = vld [vmem:[%s1 + $0xdc0] sm:$0xff]
  %v459 = vld [vmem:[%s1 + $0xdc8] sm:$0xff]
  %v460 = vld [vmem:[%s1 + $0xdd0] sm:$0xff]
  %v461 = vld [vmem:[%s1 + $0xdd8] sm:$0xff]
  %v462 = vld [vmem:[%s1 + $0xde0] sm:$0xff]
  %v463 = vld [vmem:[%s1 + $0xde8] sm:$0xff]
  %v464 = vld [vmem:[%s1 + $0xdf0] sm:$0xff]
  %v465 = vld [vmem:[%s1 + $0xdf8] sm:$0xff]
  %v466 = vld [vmem:[%s1 + $0xe00] sm:$0xff]
  %v467 = vld [vmem:[%s1 + $0xe08] sm:$0xff]
  %v468 = vld [vmem:[%s1 + $0xe10] sm:$0xff]
  %v469 = vld [vmem:[%s1 + $0xe18] sm:$0xff]
  %v470 = vld [vmem:[%s1 + $0xe20] sm:$0xff]
  %v471 = vld [vmem:[%s1 + $0xe28] sm:$0xff]
  %v472 = vld [vmem:[%s1 + $0xe30] sm:$0xff]
  %v473 = vld [vmem:[%s1 + $0xe38] sm:$0xff]
  %v474 = vld [vmem:[%s1 + $0xe40] sm:$0xff]
  %v475 = vld [vmem:[%s1 + $0xe48] sm:$0xff]
  %v476 = vld [vmem:[%s1 + $0xe50] sm:$0xff]
  %v477 = vld [vmem:[%s1 + $0xe58] sm:$0xff]
  %v478 = vld [vmem:[%s1 + $0xe60] sm:$0xff]
  %v479 = vld [vmem:[%s1 + $0xe68] sm:$0xff]
  %v480 = vld [vmem:[%s1 + $0xe70] sm:$0xff]
  %v481 = vld [vmem:[%s1 + $0xe78] sm:$0xff]
  %v482 = vld [vmem:[%s1 + $0xe80] sm:$0xff]
  %v483 = vld [vmem:[%s1 + $0xe88] sm:$0xff]
  %v484 = vld [vmem:[%s1 + $0xe90] sm:$0xff]
  %v485 = vld [vmem:[%s1 + $0xe98] sm:$0xff]
  %v486 = vld [vmem:[%s1 + $0xea0] sm:$0xff]
  %v487 = vld [vmem:[%s1 + $0xea8] sm:$0xff]
  %v488 = vld [vmem:[%s1 + $0xeb0] sm:$0xff]
  %v489 = vld [vmem:[%s1 + $0xeb8] sm:$0xff]
  %v490 = vld [vmem:[%s1 + $0xec0] sm:$0xff]
  %v491 = vld [vmem:[%s1 + $0xec8] sm:$0xff]
  %v492 = vld [vmem:[%s1 + $0xed0] sm:$0xff]
  %v493 = vld [vmem:[%s1 + $0xed8] sm:$0xff]
  %v494 = vld [vmem:[%s1 + $0xee0] sm:$0xff]
  %v495 = vld [vmem:[%s1 + $0xee8] sm:$0xff]
  %v496 = vld [vmem:[%s1 + $0xef0] sm:$0xff]
  %v497 = vld [vmem:[%s1 + $0xef8] sm:$0xff]
  %v498 = vld [vmem:[%s1 + $0xf00] sm:$0xff]
  %v499 = vld [vmem:[%s1 + $0xf08] sm:$0xff]
  %v500 = vld [vmem:[%s1 + $0xf10] sm:$0xff]
  %v501 = vld [vmem:[%s1 + $0xf18] sm:$0xff]
  %v502 = vld [vmem:[%s1 + $0xf20] sm:$0xff]
  %v503 = vld [vmem:[%s1 + $0xf28] sm:$0xff]
  %v504 = vld [vmem:[%s1 + $0xf30] sm:$0xff]
  %v505 = vld [vmem:[%s1 + $0xf38] sm:$0xff]
  %v506 = vld [vmem:[%s1 + $0xf40] sm:$0xff]
  %v507 = vld [vmem:[%s1 + $0xf48] sm:$0xff]
  %v508 = vld [vmem:[%s1 + $0xf50] sm:$0xff]
  %v509 = vld [vmem:[%s1 + $0xf58] sm:$0xff]
  %v510 = vld [vmem:[%s1 + $0xf60] sm:$0xff]
  %v511 = vld [vmem:[%s1 + $0xf68] sm:$0xff]
  %v512 = vld [vmem:[%s1 + $0xf70] sm:$0xff]
  %v513 = vld [vmem:[%s1 + $0xf78] sm:$0xff]
  %v514 = vld [vmem:[%s1 + $0xf80] sm:$0xff]
  %v515 = vld [vmem:[%s1 + $0xf88] sm:$0xff]
  %v516 = vld [vmem:[%s1 + $0xf90] sm:$0xff]
  %v517 = vld [vmem:[%s1 + $0xf98] sm:$0xff]
  %v518 = vld [vmem:[%s1 + $0xfa0] sm:$0xff]
  %v519 = vld [vmem:[%s1 + $0xfa8] sm:$0xff]
  %v520 = vld [vmem:[%s1 + $0xfb0] sm:$0xff]
  %v521 = vld [vmem:[%s1 + $0xfb8] sm:$0xff]
  %v522 = vld [vmem:[%s1 + $0xfc0] sm:$0xff]
  %v523 = vld [vmem:[%s1 + $0xfc8] sm:$0xff]
  %v524 = vld [vmem:[%s1 + $0xfd0] sm:$0xff]
  %v525 = vld [vmem:[%s1 + $0xfd8] sm:$0xff]
  %v526 = vld [vmem:[%s1 + $0xfe0] sm:$0xff]
  %v527 = vld [vmem:[%s1 + $0xfe8] sm:$0xff]
  %v528 = vld [vmem:[%s1 + $0xff0] sm:$0xff]
  %v529 = vld [vmem:[%s1 + $0xff8] sm:$0xff]
  %v530 = vld [vmem:[%s2] sm:$0xff]
  %v532 = vlaneseq
  %v533 = vshrl.u32 %v532, 7
  %v534 = vsub.s32 0, %v533
  %v535 = vrot.slane %v530, %v534
  %v536 = vlaneseq
  %v537 = vshrl.u32 %v536, 7
  %v538 = vsub.s32 1, %v537
  %v539 = vrot.slane %v530, %v538
  %v540 = vlaneseq
  %v541 = vshrl.u32 %v540, 7
  %v542 = vsub.s32 2, %v541
  %v543 = vrot.slane %v530, %v542
  %v544 = vlaneseq
  %v545 = vshrl.u32 %v544, 7
  %v546 = vsub.s32 3, %v545
  %v547 = vrot.slane %v530, %v546
  %v548 = vlaneseq
  %v549 = vshrl.u32 %v548, 7
  %v550 = vsub.s32 4, %v549
  %v551 = vrot.slane %v530, %v550
  %v552 = vlaneseq
  %v553 = vshrl.u32 %v552, 7
  %v554 = vsub.s32 5, %v553
  %v555 = vrot.slane %v530, %v554
  %v556 = vlaneseq
  %v557 = vshrl.u32 %v556, 7
  %v558 = vsub.s32 6, %v557
  %v559 = vrot.slane %v530, %v558
  %v560 = vlaneseq
  %v561 = vshrl.u32 %v560, 7
  %v562 = vsub.s32 7, %v561
  %v563 = vrot.slane %v530, %v562
  %v576 = vunpack.c.l.b16 %v14
  %v577 = vunpack.c.h.b16 %v14
  %v578 = vunpack.c.l.b16 %v15
  %v579 = vunpack.c.h.b16 %v15
  %v580 = vunpack.c.l.b16 %v16
  %v581 = vunpack.c.h.b16 %v16
  %v582 = vunpack.c.l.b16 %v17
  %v583 = vunpack.c.h.b16 %v17
  %v584 = vpack.c.b16 %v576, %v576
  %v585 = vpack.c.b16 %v577, %v577
  %v586 = vpack.c.b16 %v578, %v578
  %v587 = vpack.c.b16 %v579, %v579
  %v588 = vpack.c.b16 %v580, %v580
  %v589 = vpack.c.b16 %v581, %v581
  %v590 = vpack.c.b16 %v582, %v582
  %v591 = vpack.c.b16 %v583, %v583
  %v1112 = vunpack.c.l.b16 %v18
  %v1113 = vunpack.c.h.b16 %v18
  %v1114 = vunpack.c.l.b16 %v19
  %v1115 = vunpack.c.h.b16 %v19
  %v1116 = vunpack.c.l.b16 %v20
  %v1117 = vunpack.c.h.b16 %v20
  %v1118 = vunpack.c.l.b16 %v21
  %v1119 = vunpack.c.h.b16 %v21
  %v1120 = vunpack.c.l.b16 %v22
  %v1121 = vunpack.c.h.b16 %v22
  %v1122 = vunpack.c.l.b16 %v23
  %v1123 = vunpack.c.h.b16 %v23
  %v1124 = vunpack.c.l.b16 %v24
  %v1125 = vunpack.c.h.b16 %v24
  %v1126 = vunpack.c.l.b16 %v25
  %v1127 = vunpack.c.h.b16 %v25
  %v1128 = vunpack.c.l.b16 %v26
  %v1129 = vunpack.c.h.b16 %v26
  %v1130 = vunpack.c.l.b16 %v27
  %v1131 = vunpack.c.h.b16 %v27
  %v1132 = vunpack.c.l.b16 %v28
  %v1133 = vunpack.c.h.b16 %v28
  %v1134 = vunpack.c.l.b16 %v29
  %v1135 = vunpack.c.h.b16 %v29
  %v1136 = vunpack.c.l.b16 %v30
  %v1137 = vunpack.c.h.b16 %v30
  %v1138 = vunpack.c.l.b16 %v31
  %v1139 = vunpack.c.h.b16 %v31
  %v1140 = vunpack.c.l.b16 %v32
  %v1141 = vunpack.c.h.b16 %v32
  %v1142 = vunpack.c.l.b16 %v33
  %v1143 = vunpack.c.h.b16 %v33
  %v1144 = vunpack.c.l.b16 %v34
  %v1145 = vunpack.c.h.b16 %v34
  %v1146 = vunpack.c.l.b16 %v35
  %v1147 = vunpack.c.h.b16 %v35
  %v1148 = vunpack.c.l.b16 %v36
  %v1149 = vunpack.c.h.b16 %v36
  %v1150 = vunpack.c.l.b16 %v37
  %v1151 = vunpack.c.h.b16 %v37
  %v1152 = vunpack.c.l.b16 %v38
  %v1153 = vunpack.c.h.b16 %v38
  %v1154 = vunpack.c.l.b16 %v39
  %v1155 = vunpack.c.h.b16 %v39
  %v1156 = vunpack.c.l.b16 %v40
  %v1157 = vunpack.c.h.b16 %v40
  %v1158 = vunpack.c.l.b16 %v41
  %v1159 = vunpack.c.h.b16 %v41
  %v1160 = vunpack.c.l.b16 %v42
  %v1161 = vunpack.c.h.b16 %v42
  %v1162 = vunpack.c.l.b16 %v43
  %v1163 = vunpack.c.h.b16 %v43
  %v1164 = vunpack.c.l.b16 %v44
  %v1165 = vunpack.c.h.b16 %v44
  %v1166 = vunpack.c.l.b16 %v45
  %v1167 = vunpack.c.h.b16 %v45
  %v1168 = vunpack.c.l.b16 %v46
  %v1169 = vunpack.c.h.b16 %v46
  %v1170 = vunpack.c.l.b16 %v47
  %v1171 = vunpack.c.h.b16 %v47
  %v1172 = vunpack.c.l.b16 %v48
  %v1173 = vunpack.c.h.b16 %v48
  %v1174 = vunpack.c.l.b16 %v49
  %v1175 = vunpack.c.h.b16 %v49
  %v1176 = vunpack.c.l.b16 %v50
  %v1177 = vunpack.c.h.b16 %v50
  %v1178 = vunpack.c.l.b16 %v51
  %v1179 = vunpack.c.h.b16 %v51
  %v1180 = vunpack.c.l.b16 %v52
  %v1181 = vunpack.c.h.b16 %v52
  %v1182 = vunpack.c.l.b16 %v53
  %v1183 = vunpack.c.h.b16 %v53
  %v1184 = vunpack.c.l.b16 %v54
  %v1185 = vunpack.c.h.b16 %v54
  %v1186 = vunpack.c.l.b16 %v55
  %v1187 = vunpack.c.h.b16 %v55
  %v1188 = vunpack.c.l.b16 %v56
  %v1189 = vunpack.c.h.b16 %v56
  %v1190 = vunpack.c.l.b16 %v57
  %v1191 = vunpack.c.h.b16 %v57
  %v1192 = vunpack.c.l.b16 %v58
  %v1193 = vunpack.c.h.b16 %v58
  %v1194 = vunpack.c.l.b16 %v59
  %v1195 = vunpack.c.h.b16 %v59
  %v1196 = vunpack.c.l.b16 %v60
  %v1197 = vunpack.c.h.b16 %v60
  %v1198 = vunpack.c.l.b16 %v61
  %v1199 = vunpack.c.h.b16 %v61
  %v1200 = vunpack.c.l.b16 %v62
  %v1201 = vunpack.c.h.b16 %v62
  %v1202 = vunpack.c.l.b16 %v63
  %v1203 = vunpack.c.h.b16 %v63
  %v1204 = vunpack.c.l.b16 %v64
  %v1205 = vunpack.c.h.b16 %v64
  %v1206 = vunpack.c.l.b16 %v65
  %v1207 = vunpack.c.h.b16 %v65
  %v1208 = vunpack.c.l.b16 %v66
  %v1209 = vunpack.c.h.b16 %v66
  %v1210 = vunpack.c.l.b16 %v67
  %v1211 = vunpack.c.h.b16 %v67
  %v1212 = vunpack.c.l.b16 %v68
  %v1213 = vunpack.c.h.b16 %v68
  %v1214 = vunpack.c.l.b16 %v69
  %v1215 = vunpack.c.h.b16 %v69
  %v1216 = vunpack.c.l.b16 %v70
  %v1217 = vunpack.c.h.b16 %v70
  %v1218 = vunpack.c.l.b16 %v71
  %v1219 = vunpack.c.h.b16 %v71
  %v1220 = vunpack.c.l.b16 %v72
  %v1221 = vunpack.c.h.b16 %v72
  %v1222 = vunpack.c.l.b16 %v73
  %v1223 = vunpack.c.h.b16 %v73
  %v1224 = vunpack.c.l.b16 %v74
  %v1225 = vunpack.c.h.b16 %v74
  %v1226 = vunpack.c.l.b16 %v75
  %v1227 = vunpack.c.h.b16 %v75
  %v1228 = vunpack.c.l.b16 %v76
  %v1229 = vunpack.c.h.b16 %v76
  %v1230 = vunpack.c.l.b16 %v77
  %v1231 = vunpack.c.h.b16 %v77
  %v1232 = vunpack.c.l.b16 %v78
  %v1233 = vunpack.c.h.b16 %v78
  %v1234 = vunpack.c.l.b16 %v79
  %v1235 = vunpack.c.h.b16 %v79
  %v1236 = vunpack.c.l.b16 %v80
  %v1237 = vunpack.c.h.b16 %v80
  %v1238 = vunpack.c.l.b16 %v81
  %v1239 = vunpack.c.h.b16 %v81
  %v1240 = vunpack.c.l.b16 %v82
  %v1241 = vunpack.c.h.b16 %v82
  %v1242 = vunpack.c.l.b16 %v83
  %v1243 = vunpack.c.h.b16 %v83
  %v1244 = vunpack.c.l.b16 %v84
  %v1245 = vunpack.c.h.b16 %v84
  %v1246 = vunpack.c.l.b16 %v85
  %v1247 = vunpack.c.h.b16 %v85
  %v1248 = vunpack.c.l.b16 %v86
  %v1249 = vunpack.c.h.b16 %v86
  %v1250 = vunpack.c.l.b16 %v87
  %v1251 = vunpack.c.h.b16 %v87
  %v1252 = vunpack.c.l.b16 %v88
  %v1253 = vunpack.c.h.b16 %v88
  %v1254 = vunpack.c.l.b16 %v89
  %v1255 = vunpack.c.h.b16 %v89
  %v1256 = vunpack.c.l.b16 %v90
  %v1257 = vunpack.c.h.b16 %v90
  %v1258 = vunpack.c.l.b16 %v91
  %v1259 = vunpack.c.h.b16 %v91
  %v1260 = vunpack.c.l.b16 %v92
  %v1261 = vunpack.c.h.b16 %v92
  %v1262 = vunpack.c.l.b16 %v93
  %v1263 = vunpack.c.h.b16 %v93
  %v1264 = vunpack.c.l.b16 %v94
  %v1265 = vunpack.c.h.b16 %v94
  %v1266 = vunpack.c.l.b16 %v95
  %v1267 = vunpack.c.h.b16 %v95
  %v1268 = vunpack.c.l.b16 %v96
  %v1269 = vunpack.c.h.b16 %v96
  %v1270 = vunpack.c.l.b16 %v97
  %v1271 = vunpack.c.h.b16 %v97
  %v1272 = vunpack.c.l.b16 %v98
  %v1273 = vunpack.c.h.b16 %v98
  %v1274 = vunpack.c.l.b16 %v99
  %v1275 = vunpack.c.h.b16 %v99
  %v1276 = vunpack.c.l.b16 %v100
  %v1277 = vunpack.c.h.b16 %v100
  %v1278 = vunpack.c.l.b16 %v101
  %v1279 = vunpack.c.h.b16 %v101
  %v1280 = vunpack.c.l.b16 %v102
  %v1281 = vunpack.c.h.b16 %v102
  %v1282 = vunpack.c.l.b16 %v103
  %v1283 = vunpack.c.h.b16 %v103
  %v1284 = vunpack.c.l.b16 %v104
  %v1285 = vunpack.c.h.b16 %v104
  %v1286 = vunpack.c.l.b16 %v105
  %v1287 = vunpack.c.h.b16 %v105
  %v1288 = vunpack.c.l.b16 %v106
  %v1289 = vunpack.c.h.b16 %v106
  %v1290 = vunpack.c.l.b16 %v107
  %v1291 = vunpack.c.h.b16 %v107
  %v1292 = vunpack.c.l.b16 %v108
  %v1293 = vunpack.c.h.b16 %v108
  %v1294 = vunpack.c.l.b16 %v109
  %v1295 = vunpack.c.h.b16 %v109
  %v1296 = vunpack.c.l.b16 %v110
  %v1297 = vunpack.c.h.b16 %v110
  %v1298 = vunpack.c.l.b16 %v111
  %v1299 = vunpack.c.h.b16 %v111
  %v1300 = vunpack.c.l.b16 %v112
  %v1301 = vunpack.c.h.b16 %v112
  %v1302 = vunpack.c.l.b16 %v113
  %v1303 = vunpack.c.h.b16 %v113
  %v1304 = vunpack.c.l.b16 %v114
  %v1305 = vunpack.c.h.b16 %v114
  %v1306 = vunpack.c.l.b16 %v115
  %v1307 = vunpack.c.h.b16 %v115
  %v1308 = vunpack.c.l.b16 %v116
  %v1309 = vunpack.c.h.b16 %v116
  %v1310 = vunpack.c.l.b16 %v117
  %v1311 = vunpack.c.h.b16 %v117
  %v1312 = vunpack.c.l.b16 %v118
  %v1313 = vunpack.c.h.b16 %v118
  %v1314 = vunpack.c.l.b16 %v119
  %v1315 = vunpack.c.h.b16 %v119
  %v1316 = vunpack.c.l.b16 %v120
  %v1317 = vunpack.c.h.b16 %v120
  %v1318 = vunpack.c.l.b16 %v121
  %v1319 = vunpack.c.h.b16 %v121
  %v1320 = vunpack.c.l.b16 %v122
  %v1321 = vunpack.c.h.b16 %v122
  %v1322 = vunpack.c.l.b16 %v123
  %v1323 = vunpack.c.h.b16 %v123
  %v1324 = vunpack.c.l.b16 %v124
  %v1325 = vunpack.c.h.b16 %v124
  %v1326 = vunpack.c.l.b16 %v125
  %v1327 = vunpack.c.h.b16 %v125
  %v1328 = vunpack.c.l.b16 %v126
  %v1329 = vunpack.c.h.b16 %v126
  %v1330 = vunpack.c.l.b16 %v127
  %v1331 = vunpack.c.h.b16 %v127
  %v1332 = vunpack.c.l.b16 %v128
  %v1333 = vunpack.c.h.b16 %v128
  %v1334 = vunpack.c.l.b16 %v129
  %v1335 = vunpack.c.h.b16 %v129
  %v1336 = vunpack.c.l.b16 %v130
  %v1337 = vunpack.c.h.b16 %v130
  %v1338 = vunpack.c.l.b16 %v131
  %v1339 = vunpack.c.h.b16 %v131
  %v1340 = vunpack.c.l.b16 %v132
  %v1341 = vunpack.c.h.b16 %v132
  %v1342 = vunpack.c.l.b16 %v133
  %v1343 = vunpack.c.h.b16 %v133
  %v1344 = vunpack.c.l.b16 %v134
  %v1345 = vunpack.c.h.b16 %v134
  %v1346 = vunpack.c.l.b16 %v135
  %v1347 = vunpack.c.h.b16 %v135
  %v1348 = vunpack.c.l.b16 %v136
  %v1349 = vunpack.c.h.b16 %v136
  %v1350 = vunpack.c.l.b16 %v137
  %v1351 = vunpack.c.h.b16 %v137
  %v1352 = vunpack.c.l.b16 %v138
  %v1353 = vunpack.c.h.b16 %v138
  %v1354 = vunpack.c.l.b16 %v139
  %v1355 = vunpack.c.h.b16 %v139
  %v1356 = vunpack.c.l.b16 %v140
  %v1357 = vunpack.c.h.b16 %v140
  %v1358 = vunpack.c.l.b16 %v141
  %v1359 = vunpack.c.h.b16 %v141
  %v1360 = vunpack.c.l.b16 %v142
  %v1361 = vunpack.c.h.b16 %v142
  %v1362 = vunpack.c.l.b16 %v143
  %v1363 = vunpack.c.h.b16 %v143
  %v1364 = vunpack.c.l.b16 %v144
  %v1365 = vunpack.c.h.b16 %v144
  %v1366 = vunpack.c.l.b16 %v145
  %v1367 = vunpack.c.h.b16 %v145
  %v1368 = vunpack.c.l.b16 %v146
  %v1369 = vunpack.c.h.b16 %v146
  %v1370 = vunpack.c.l.b16 %v147
  %v1371 = vunpack.c.h.b16 %v147
  %v1372 = vunpack.c.l.b16 %v148
  %v1373 = vunpack.c.h.b16 %v148
  %v1374 = vunpack.c.l.b16 %v149
  %v1375 = vunpack.c.h.b16 %v149
  %v1376 = vunpack.c.l.b16 %v150
  %v1377 = vunpack.c.h.b16 %v150
  %v1378 = vunpack.c.l.b16 %v151
  %v1379 = vunpack.c.h.b16 %v151
  %v1380 = vunpack.c.l.b16 %v152
  %v1381 = vunpack.c.h.b16 %v152
  %v1382 = vunpack.c.l.b16 %v153
  %v1383 = vunpack.c.h.b16 %v153
  %v1384 = vunpack.c.l.b16 %v154
  %v1385 = vunpack.c.h.b16 %v154
  %v1386 = vunpack.c.l.b16 %v155
  %v1387 = vunpack.c.h.b16 %v155
  %v1388 = vunpack.c.l.b16 %v156
  %v1389 = vunpack.c.h.b16 %v156
  %v1390 = vunpack.c.l.b16 %v157
  %v1391 = vunpack.c.h.b16 %v157
  %v1392 = vunpack.c.l.b16 %v158
  %v1393 = vunpack.c.h.b16 %v158
  %v1394 = vunpack.c.l.b16 %v159
  %v1395 = vunpack.c.h.b16 %v159
  %v1396 = vunpack.c.l.b16 %v160
  %v1397 = vunpack.c.h.b16 %v160
  %v1398 = vunpack.c.l.b16 %v161
  %v1399 = vunpack.c.h.b16 %v161
  %v1400 = vunpack.c.l.b16 %v162
  %v1401 = vunpack.c.h.b16 %v162
  %v1402 = vunpack.c.l.b16 %v163
  %v1403 = vunpack.c.h.b16 %v163
  %v1404 = vunpack.c.l.b16 %v164
  %v1405 = vunpack.c.h.b16 %v164
  %v1406 = vunpack.c.l.b16 %v165
  %v1407 = vunpack.c.h.b16 %v165
  %v1408 = vunpack.c.l.b16 %v166
  %v1409 = vunpack.c.h.b16 %v166
  %v1410 = vunpack.c.l.b16 %v167
  %v1411 = vunpack.c.h.b16 %v167
  %v1412 = vunpack.c.l.b16 %v168
  %v1413 = vunpack.c.h.b16 %v168
  %v1414 = vunpack.c.l.b16 %v169
  %v1415 = vunpack.c.h.b16 %v169
  %v1416 = vunpack.c.l.b16 %v170
  %v1417 = vunpack.c.h.b16 %v170
  %v1418 = vunpack.c.l.b16 %v171
  %v1419 = vunpack.c.h.b16 %v171
  %v1420 = vunpack.c.l.b16 %v172
  %v1421 = vunpack.c.h.b16 %v172
  %v1422 = vunpack.c.l.b16 %v173
  %v1423 = vunpack.c.h.b16 %v173
  %v1424 = vunpack.c.l.b16 %v174
  %v1425 = vunpack.c.h.b16 %v174
  %v1426 = vunpack.c.l.b16 %v175
  %v1427 = vunpack.c.h.b16 %v175
  %v1428 = vunpack.c.l.b16 %v176
  %v1429 = vunpack.c.h.b16 %v176
  %v1430 = vunpack.c.l.b16 %v177
  %v1431 = vunpack.c.h.b16 %v177
  %v1432 = vunpack.c.l.b16 %v178
  %v1433 = vunpack.c.h.b16 %v178
  %v1434 = vunpack.c.l.b16 %v179
  %v1435 = vunpack.c.h.b16 %v179
  %v1436 = vunpack.c.l.b16 %v180
  %v1437 = vunpack.c.h.b16 %v180
  %v1438 = vunpack.c.l.b16 %v181
  %v1439 = vunpack.c.h.b16 %v181
  %v1440 = vunpack.c.l.b16 %v182
  %v1441 = vunpack.c.h.b16 %v182
  %v1442 = vunpack.c.l.b16 %v183
  %v1443 = vunpack.c.h.b16 %v183
  %v1444 = vunpack.c.l.b16 %v184
  %v1445 = vunpack.c.h.b16 %v184
  %v1446 = vunpack.c.l.b16 %v185
  %v1447 = vunpack.c.h.b16 %v185
  %v1448 = vunpack.c.l.b16 %v186
  %v1449 = vunpack.c.h.b16 %v186
  %v1450 = vunpack.c.l.b16 %v187
  %v1451 = vunpack.c.h.b16 %v187
  %v1452 = vunpack.c.l.b16 %v188
  %v1453 = vunpack.c.h.b16 %v188
  %v1454 = vunpack.c.l.b16 %v189
  %v1455 = vunpack.c.h.b16 %v189
  %v1456 = vunpack.c.l.b16 %v190
  %v1457 = vunpack.c.h.b16 %v190
  %v1458 = vunpack.c.l.b16 %v191
  %v1459 = vunpack.c.h.b16 %v191
  %v1460 = vunpack.c.l.b16 %v192
  %v1461 = vunpack.c.h.b16 %v192
  %v1462 = vunpack.c.l.b16 %v193
  %v1463 = vunpack.c.h.b16 %v193
  %v1464 = vunpack.c.l.b16 %v194
  %v1465 = vunpack.c.h.b16 %v194
  %v1466 = vunpack.c.l.b16 %v195
  %v1467 = vunpack.c.h.b16 %v195
  %v1468 = vunpack.c.l.b16 %v196
  %v1469 = vunpack.c.h.b16 %v196
  %v1470 = vunpack.c.l.b16 %v197
  %v1471 = vunpack.c.h.b16 %v197
  %v1472 = vunpack.c.l.b16 %v198
  %v1473 = vunpack.c.h.b16 %v198
  %v1474 = vunpack.c.l.b16 %v199
  %v1475 = vunpack.c.h.b16 %v199
  %v1476 = vunpack.c.l.b16 %v200
  %v1477 = vunpack.c.h.b16 %v200
  %v1478 = vunpack.c.l.b16 %v201
  %v1479 = vunpack.c.h.b16 %v201
  %v1480 = vunpack.c.l.b16 %v202
  %v1481 = vunpack.c.h.b16 %v202
  %v1482 = vunpack.c.l.b16 %v203
  %v1483 = vunpack.c.h.b16 %v203
  %v1484 = vunpack.c.l.b16 %v204
  %v1485 = vunpack.c.h.b16 %v204
  %v1486 = vunpack.c.l.b16 %v205
  %v1487 = vunpack.c.h.b16 %v205
  %v1488 = vunpack.c.l.b16 %v206
  %v1489 = vunpack.c.h.b16 %v206
  %v1490 = vunpack.c.l.b16 %v207
  %v1491 = vunpack.c.h.b16 %v207
  %v1492 = vunpack.c.l.b16 %v208
  %v1493 = vunpack.c.h.b16 %v208
  %v1494 = vunpack.c.l.b16 %v209
  %v1495 = vunpack.c.h.b16 %v209
  %v1496 = vunpack.c.l.b16 %v210
  %v1497 = vunpack.c.h.b16 %v210
  %v1498 = vunpack.c.l.b16 %v211
  %v1499 = vunpack.c.h.b16 %v211
  %v1500 = vunpack.c.l.b16 %v212
  %v1501 = vunpack.c.h.b16 %v212
  %v1502 = vunpack.c.l.b16 %v213
  %v1503 = vunpack.c.h.b16 %v213
  %v1504 = vunpack.c.l.b16 %v214
  %v1505 = vunpack.c.h.b16 %v214
  %v1506 = vunpack.c.l.b16 %v215
  %v1507 = vunpack.c.h.b16 %v215
  %v1508 = vunpack.c.l.b16 %v216
  %v1509 = vunpack.c.h.b16 %v216
  %v1510 = vunpack.c.l.b16 %v217
  %v1511 = vunpack.c.h.b16 %v217
  %v1512 = vunpack.c.l.b16 %v218
  %v1513 = vunpack.c.h.b16 %v218
  %v1514 = vunpack.c.l.b16 %v219
  %v1515 = vunpack.c.h.b16 %v219
  %v1516 = vunpack.c.l.b16 %v220
  %v1517 = vunpack.c.h.b16 %v220
  %v1518 = vunpack.c.l.b16 %v221
  %v1519 = vunpack.c.h.b16 %v221
  %v1520 = vunpack.c.l.b16 %v222
  %v1521 = vunpack.c.h.b16 %v222
  %v1522 = vunpack.c.l.b16 %v223
  %v1523 = vunpack.c.h.b16 %v223
  %v1524 = vunpack.c.l.b16 %v224
  %v1525 = vunpack.c.h.b16 %v224
  %v1526 = vunpack.c.l.b16 %v225
  %v1527 = vunpack.c.h.b16 %v225
  %v1528 = vunpack.c.l.b16 %v226
  %v1529 = vunpack.c.h.b16 %v226
  %v1530 = vunpack.c.l.b16 %v227
  %v1531 = vunpack.c.h.b16 %v227
  %v1532 = vunpack.c.l.b16 %v228
  %v1533 = vunpack.c.h.b16 %v228
  %v1534 = vunpack.c.l.b16 %v229
  %v1535 = vunpack.c.h.b16 %v229
  %v1536 = vunpack.c.l.b16 %v230
  %v1537 = vunpack.c.h.b16 %v230
  %v1538 = vunpack.c.l.b16 %v231
  %v1539 = vunpack.c.h.b16 %v231
  %v1540 = vunpack.c.l.b16 %v232
  %v1541 = vunpack.c.h.b16 %v232
  %v1542 = vunpack.c.l.b16 %v233
  %v1543 = vunpack.c.h.b16 %v233
  %v1544 = vunpack.c.l.b16 %v234
  %v1545 = vunpack.c.h.b16 %v234
  %v1546 = vunpack.c.l.b16 %v235
  %v1547 = vunpack.c.h.b16 %v235
  %v1548 = vunpack.c.l.b16 %v236
  %v1549 = vunpack.c.h.b16 %v236
  %v1550 = vunpack.c.l.b16 %v237
  %v1551 = vunpack.c.h.b16 %v237
  %v1552 = vunpack.c.l.b16 %v238
  %v1553 = vunpack.c.h.b16 %v238
  %v1554 = vunpack.c.l.b16 %v239
  %v1555 = vunpack.c.h.b16 %v239
  %v1556 = vunpack.c.l.b16 %v240
  %v1557 = vunpack.c.h.b16 %v240
  %v1558 = vunpack.c.l.b16 %v241
  %v1559 = vunpack.c.h.b16 %v241
  %v1560 = vunpack.c.l.b16 %v242
  %v1561 = vunpack.c.h.b16 %v242
  %v1562 = vunpack.c.l.b16 %v243
  %v1563 = vunpack.c.h.b16 %v243
  %v1564 = vunpack.c.l.b16 %v244
  %v1565 = vunpack.c.h.b16 %v244
  %v1566 = vunpack.c.l.b16 %v245
  %v1567 = vunpack.c.h.b16 %v245
  %v1568 = vunpack.c.l.b16 %v246
  %v1569 = vunpack.c.h.b16 %v246
  %v1570 = vunpack.c.l.b16 %v247
  %v1571 = vunpack.c.h.b16 %v247
  %v1572 = vunpack.c.l.b16 %v248
  %v1573 = vunpack.c.h.b16 %v248
  %v1574 = vunpack.c.l.b16 %v249
  %v1575 = vunpack.c.h.b16 %v249
  %v1576 = vunpack.c.l.b16 %v250
  %v1577 = vunpack.c.h.b16 %v250
  %v1578 = vunpack.c.l.b16 %v251
  %v1579 = vunpack.c.h.b16 %v251
  %v1580 = vunpack.c.l.b16 %v252
  %v1581 = vunpack.c.h.b16 %v252
  %v1582 = vunpack.c.l.b16 %v253
  %v1583 = vunpack.c.h.b16 %v253
  %v1584 = vunpack.c.l.b16 %v254
  %v1585 = vunpack.c.h.b16 %v254
  %v1586 = vunpack.c.l.b16 %v255
  %v1587 = vunpack.c.h.b16 %v255
  %v1588 = vunpack.c.l.b16 %v256
  %v1589 = vunpack.c.h.b16 %v256
  %v1590 = vunpack.c.l.b16 %v257
  %v1591 = vunpack.c.h.b16 %v257
  %v1592 = vunpack.c.l.b16 %v258
  %v1593 = vunpack.c.h.b16 %v258
  %v1594 = vunpack.c.l.b16 %v259
  %v1595 = vunpack.c.h.b16 %v259
  %v1596 = vunpack.c.l.b16 %v260
  %v1597 = vunpack.c.h.b16 %v260
  %v1598 = vunpack.c.l.b16 %v261
  %v1599 = vunpack.c.h.b16 %v261
  %v1600 = vunpack.c.l.b16 %v262
  %v1601 = vunpack.c.h.b16 %v262
  %v1602 = vunpack.c.l.b16 %v263
  %v1603 = vunpack.c.h.b16 %v263
  %v1604 = vunpack.c.l.b16 %v264
  %v1605 = vunpack.c.h.b16 %v264
  %v1606 = vunpack.c.l.b16 %v265
  %v1607 = vunpack.c.h.b16 %v265
  %v1608 = vunpack.c.l.b16 %v266
  %v1609 = vunpack.c.h.b16 %v266
  %v1610 = vunpack.c.l.b16 %v267
  %v1611 = vunpack.c.h.b16 %v267
  %v1612 = vunpack.c.l.b16 %v268
  %v1613 = vunpack.c.h.b16 %v268
  %v1614 = vunpack.c.l.b16 %v269
  %v1615 = vunpack.c.h.b16 %v269
  %v1616 = vunpack.c.l.b16 %v270
  %v1617 = vunpack.c.h.b16 %v270
  %v1618 = vunpack.c.l.b16 %v271
  %v1619 = vunpack.c.h.b16 %v271
  %v1620 = vunpack.c.l.b16 %v272
  %v1621 = vunpack.c.h.b16 %v272
  %v1622 = vunpack.c.l.b16 %v273
  %v1623 = vunpack.c.h.b16 %v273
  %v1624 = vunpack.c.l.b16 %v274
  %v1625 = vunpack.c.h.b16 %v274
  %v1626 = vunpack.c.l.b16 %v275
  %v1627 = vunpack.c.h.b16 %v275
  %v1628 = vunpack.c.l.b16 %v276
  %v1629 = vunpack.c.h.b16 %v276
  %v1630 = vunpack.c.l.b16 %v277
  %v1631 = vunpack.c.h.b16 %v277
  %v1632 = vunpack.c.l.b16 %v278
  %v1633 = vunpack.c.h.b16 %v278
  %v1634 = vunpack.c.l.b16 %v279
  %v1635 = vunpack.c.h.b16 %v279
  %v1636 = vunpack.c.l.b16 %v280
  %v1637 = vunpack.c.h.b16 %v280
  %v1638 = vunpack.c.l.b16 %v281
  %v1639 = vunpack.c.h.b16 %v281
  %v1640 = vunpack.c.l.b16 %v282
  %v1641 = vunpack.c.h.b16 %v282
  %v1642 = vunpack.c.l.b16 %v283
  %v1643 = vunpack.c.h.b16 %v283
  %v1644 = vunpack.c.l.b16 %v284
  %v1645 = vunpack.c.h.b16 %v284
  %v1646 = vunpack.c.l.b16 %v285
  %v1647 = vunpack.c.h.b16 %v285
  %v1648 = vunpack.c.l.b16 %v286
  %v1649 = vunpack.c.h.b16 %v286
  %v1650 = vunpack.c.l.b16 %v287
  %v1651 = vunpack.c.h.b16 %v287
  %v1652 = vunpack.c.l.b16 %v288
  %v1653 = vunpack.c.h.b16 %v288
  %v1654 = vunpack.c.l.b16 %v289
  %v1655 = vunpack.c.h.b16 %v289
  %v1656 = vunpack.c.l.b16 %v290
  %v1657 = vunpack.c.h.b16 %v290
  %v1658 = vunpack.c.l.b16 %v291
  %v1659 = vunpack.c.h.b16 %v291
  %v1660 = vunpack.c.l.b16 %v292
  %v1661 = vunpack.c.h.b16 %v292
  %v1662 = vunpack.c.l.b16 %v293
  %v1663 = vunpack.c.h.b16 %v293
  %v1664 = vunpack.c.l.b16 %v294
  %v1665 = vunpack.c.h.b16 %v294
  %v1666 = vunpack.c.l.b16 %v295
  %v1667 = vunpack.c.h.b16 %v295
  %v1668 = vunpack.c.l.b16 %v296
  %v1669 = vunpack.c.h.b16 %v296
  %v1670 = vunpack.c.l.b16 %v297
  %v1671 = vunpack.c.h.b16 %v297
  %v1672 = vunpack.c.l.b16 %v298
  %v1673 = vunpack.c.h.b16 %v298
  %v1674 = vunpack.c.l.b16 %v299
  %v1675 = vunpack.c.h.b16 %v299
  %v1676 = vunpack.c.l.b16 %v300
  %v1677 = vunpack.c.h.b16 %v300
  %v1678 = vunpack.c.l.b16 %v301
  %v1679 = vunpack.c.h.b16 %v301
  %v1680 = vunpack.c.l.b16 %v302
  %v1681 = vunpack.c.h.b16 %v302
  %v1682 = vunpack.c.l.b16 %v303
  %v1683 = vunpack.c.h.b16 %v303
  %v1684 = vunpack.c.l.b16 %v304
  %v1685 = vunpack.c.h.b16 %v304
  %v1686 = vunpack.c.l.b16 %v305
  %v1687 = vunpack.c.h.b16 %v305
  %v1688 = vunpack.c.l.b16 %v306
  %v1689 = vunpack.c.h.b16 %v306
  %v1690 = vunpack.c.l.b16 %v307
  %v1691 = vunpack.c.h.b16 %v307
  %v1692 = vunpack.c.l.b16 %v308
  %v1693 = vunpack.c.h.b16 %v308
  %v1694 = vunpack.c.l.b16 %v309
  %v1695 = vunpack.c.h.b16 %v309
  %v1696 = vunpack.c.l.b16 %v310
  %v1697 = vunpack.c.h.b16 %v310
  %v1698 = vunpack.c.l.b16 %v311
  %v1699 = vunpack.c.h.b16 %v311
  %v1700 = vunpack.c.l.b16 %v312
  %v1701 = vunpack.c.h.b16 %v312
  %v1702 = vunpack.c.l.b16 %v313
  %v1703 = vunpack.c.h.b16 %v313
  %v1704 = vunpack.c.l.b16 %v314
  %v1705 = vunpack.c.h.b16 %v314
  %v1706 = vunpack.c.l.b16 %v315
  %v1707 = vunpack.c.h.b16 %v315
  %v1708 = vunpack.c.l.b16 %v316
  %v1709 = vunpack.c.h.b16 %v316
  %v1710 = vunpack.c.l.b16 %v317
  %v1711 = vunpack.c.h.b16 %v317
  %v1712 = vunpack.c.l.b16 %v318
  %v1713 = vunpack.c.h.b16 %v318
  %v1714 = vunpack.c.l.b16 %v319
  %v1715 = vunpack.c.h.b16 %v319
  %v1716 = vunpack.c.l.b16 %v320
  %v1717 = vunpack.c.h.b16 %v320
  %v1718 = vunpack.c.l.b16 %v321
  %v1719 = vunpack.c.h.b16 %v321
  %v1720 = vunpack.c.l.b16 %v322
  %v1721 = vunpack.c.h.b16 %v322
  %v1722 = vunpack.c.l.b16 %v323
  %v1723 = vunpack.c.h.b16 %v323
  %v1724 = vunpack.c.l.b16 %v324
  %v1725 = vunpack.c.h.b16 %v324
  %v1726 = vunpack.c.l.b16 %v325
  %v1727 = vunpack.c.h.b16 %v325
  %v1728 = vunpack.c.l.b16 %v326
  %v1729 = vunpack.c.h.b16 %v326
  %v1730 = vunpack.c.l.b16 %v327
  %v1731 = vunpack.c.h.b16 %v327
  %v1732 = vunpack.c.l.b16 %v328
  %v1733 = vunpack.c.h.b16 %v328
  %v1734 = vunpack.c.l.b16 %v329
  %v1735 = vunpack.c.h.b16 %v329
  %v1736 = vunpack.c.l.b16 %v330
  %v1737 = vunpack.c.h.b16 %v330
  %v1738 = vunpack.c.l.b16 %v331
  %v1739 = vunpack.c.h.b16 %v331
  %v1740 = vunpack.c.l.b16 %v332
  %v1741 = vunpack.c.h.b16 %v332
  %v1742 = vunpack.c.l.b16 %v333
  %v1743 = vunpack.c.h.b16 %v333
  %v1744 = vunpack.c.l.b16 %v334
  %v1745 = vunpack.c.h.b16 %v334
  %v1746 = vunpack.c.l.b16 %v335
  %v1747 = vunpack.c.h.b16 %v335
  %v1748 = vunpack.c.l.b16 %v336
  %v1749 = vunpack.c.h.b16 %v336
  %v1750 = vunpack.c.l.b16 %v337
  %v1751 = vunpack.c.h.b16 %v337
  %v1752 = vunpack.c.l.b16 %v338
  %v1753 = vunpack.c.h.b16 %v338
  %v1754 = vunpack.c.l.b16 %v339
  %v1755 = vunpack.c.h.b16 %v339
  %v1756 = vunpack.c.l.b16 %v340
  %v1757 = vunpack.c.h.b16 %v340
  %v1758 = vunpack.c.l.b16 %v341
  %v1759 = vunpack.c.h.b16 %v341
  %v1760 = vunpack.c.l.b16 %v342
  %v1761 = vunpack.c.h.b16 %v342
  %v1762 = vunpack.c.l.b16 %v343
  %v1763 = vunpack.c.h.b16 %v343
  %v1764 = vunpack.c.l.b16 %v344
  %v1765 = vunpack.c.h.b16 %v344
  %v1766 = vunpack.c.l.b16 %v345
  %v1767 = vunpack.c.h.b16 %v345
  %v1768 = vunpack.c.l.b16 %v346
  %v1769 = vunpack.c.h.b16 %v346
  %v1770 = vunpack.c.l.b16 %v347
  %v1771 = vunpack.c.h.b16 %v347
  %v1772 = vunpack.c.l.b16 %v348
  %v1773 = vunpack.c.h.b16 %v348
  %v1774 = vunpack.c.l.b16 %v349
  %v1775 = vunpack.c.h.b16 %v349
  %v1776 = vunpack.c.l.b16 %v350
  %v1777 = vunpack.c.h.b16 %v350
  %v1778 = vunpack.c.l.b16 %v351
  %v1779 = vunpack.c.h.b16 %v351
  %v1780 = vunpack.c.l.b16 %v352
  %v1781 = vunpack.c.h.b16 %v352
  %v1782 = vunpack.c.l.b16 %v353
  %v1783 = vunpack.c.h.b16 %v353
  %v1784 = vunpack.c.l.b16 %v354
  %v1785 = vunpack.c.h.b16 %v354
  %v1786 = vunpack.c.l.b16 %v355
  %v1787 = vunpack.c.h.b16 %v355
  %v1788 = vunpack.c.l.b16 %v356
  %v1789 = vunpack.c.h.b16 %v356
  %v1790 = vunpack.c.l.b16 %v357
  %v1791 = vunpack.c.h.b16 %v357
  %v1792 = vunpack.c.l.b16 %v358
  %v1793 = vunpack.c.h.b16 %v358
  %v1794 = vunpack.c.l.b16 %v359
  %v1795 = vunpack.c.h.b16 %v359
  %v1796 = vunpack.c.l.b16 %v360
  %v1797 = vunpack.c.h.b16 %v360
  %v1798 = vunpack.c.l.b16 %v361
  %v1799 = vunpack.c.h.b16 %v361
  %v1800 = vunpack.c.l.b16 %v362
  %v1801 = vunpack.c.h.b16 %v362
  %v1802 = vunpack.c.l.b16 %v363
  %v1803 = vunpack.c.h.b16 %v363
  %v1804 = vunpack.c.l.b16 %v364
  %v1805 = vunpack.c.h.b16 %v364
  %v1806 = vunpack.c.l.b16 %v365
  %v1807 = vunpack.c.h.b16 %v365
  %v1808 = vunpack.c.l.b16 %v366
  %v1809 = vunpack.c.h.b16 %v366
  %v1810 = vunpack.c.l.b16 %v367
  %v1811 = vunpack.c.h.b16 %v367
  %v1812 = vunpack.c.l.b16 %v368
  %v1813 = vunpack.c.h.b16 %v368
  %v1814 = vunpack.c.l.b16 %v369
  %v1815 = vunpack.c.h.b16 %v369
  %v1816 = vunpack.c.l.b16 %v370
  %v1817 = vunpack.c.h.b16 %v370
  %v1818 = vunpack.c.l.b16 %v371
  %v1819 = vunpack.c.h.b16 %v371
  %v1820 = vunpack.c.l.b16 %v372
  %v1821 = vunpack.c.h.b16 %v372
  %v1822 = vunpack.c.l.b16 %v373
  %v1823 = vunpack.c.h.b16 %v373
  %v1824 = vunpack.c.l.b16 %v374
  %v1825 = vunpack.c.h.b16 %v374
  %v1826 = vunpack.c.l.b16 %v375
  %v1827 = vunpack.c.h.b16 %v375
  %v1828 = vunpack.c.l.b16 %v376
  %v1829 = vunpack.c.h.b16 %v376
  %v1830 = vunpack.c.l.b16 %v377
  %v1831 = vunpack.c.h.b16 %v377
  %v1832 = vunpack.c.l.b16 %v378
  %v1833 = vunpack.c.h.b16 %v378
  %v1834 = vunpack.c.l.b16 %v379
  %v1835 = vunpack.c.h.b16 %v379
  %v1836 = vunpack.c.l.b16 %v380
  %v1837 = vunpack.c.h.b16 %v380
  %v1838 = vunpack.c.l.b16 %v381
  %v1839 = vunpack.c.h.b16 %v381
  %v1840 = vunpack.c.l.b16 %v382
  %v1841 = vunpack.c.h.b16 %v382
  %v1842 = vunpack.c.l.b16 %v383
  %v1843 = vunpack.c.h.b16 %v383
  %v1844 = vunpack.c.l.b16 %v384
  %v1845 = vunpack.c.h.b16 %v384
  %v1846 = vunpack.c.l.b16 %v385
  %v1847 = vunpack.c.h.b16 %v385
  %v1848 = vunpack.c.l.b16 %v386
  %v1849 = vunpack.c.h.b16 %v386
  %v1850 = vunpack.c.l.b16 %v387
  %v1851 = vunpack.c.h.b16 %v387
  %v1852 = vunpack.c.l.b16 %v388
  %v1853 = vunpack.c.h.b16 %v388
  %v1854 = vunpack.c.l.b16 %v389
  %v1855 = vunpack.c.h.b16 %v389
  %v1856 = vunpack.c.l.b16 %v390
  %v1857 = vunpack.c.h.b16 %v390
  %v1858 = vunpack.c.l.b16 %v391
  %v1859 = vunpack.c.h.b16 %v391
  %v1860 = vunpack.c.l.b16 %v392
  %v1861 = vunpack.c.h.b16 %v392
  %v1862 = vunpack.c.l.b16 %v393
  %v1863 = vunpack.c.h.b16 %v393
  %v1864 = vunpack.c.l.b16 %v394
  %v1865 = vunpack.c.h.b16 %v394
  %v1866 = vunpack.c.l.b16 %v395
  %v1867 = vunpack.c.h.b16 %v395
  %v1868 = vunpack.c.l.b16 %v396
  %v1869 = vunpack.c.h.b16 %v396
  %v1870 = vunpack.c.l.b16 %v397
  %v1871 = vunpack.c.h.b16 %v397
  %v1872 = vunpack.c.l.b16 %v398
  %v1873 = vunpack.c.h.b16 %v398
  %v1874 = vunpack.c.l.b16 %v399
  %v1875 = vunpack.c.h.b16 %v399
  %v1876 = vunpack.c.l.b16 %v400
  %v1877 = vunpack.c.h.b16 %v400
  %v1878 = vunpack.c.l.b16 %v401
  %v1879 = vunpack.c.h.b16 %v401
  %v1880 = vunpack.c.l.b16 %v402
  %v1881 = vunpack.c.h.b16 %v402
  %v1882 = vunpack.c.l.b16 %v403
  %v1883 = vunpack.c.h.b16 %v403
  %v1884 = vunpack.c.l.b16 %v404
  %v1885 = vunpack.c.h.b16 %v404
  %v1886 = vunpack.c.l.b16 %v405
  %v1887 = vunpack.c.h.b16 %v405
  %v1888 = vunpack.c.l.b16 %v406
  %v1889 = vunpack.c.h.b16 %v406
  %v1890 = vunpack.c.l.b16 %v407
  %v1891 = vunpack.c.h.b16 %v407
  %v1892 = vunpack.c.l.b16 %v408
  %v1893 = vunpack.c.h.b16 %v408
  %v1894 = vunpack.c.l.b16 %v409
  %v1895 = vunpack.c.h.b16 %v409
  %v1896 = vunpack.c.l.b16 %v410
  %v1897 = vunpack.c.h.b16 %v410
  %v1898 = vunpack.c.l.b16 %v411
  %v1899 = vunpack.c.h.b16 %v411
  %v1900 = vunpack.c.l.b16 %v412
  %v1901 = vunpack.c.h.b16 %v412
  %v1902 = vunpack.c.l.b16 %v413
  %v1903 = vunpack.c.h.b16 %v413
  %v1904 = vunpack.c.l.b16 %v414
  %v1905 = vunpack.c.h.b16 %v414
  %v1906 = vunpack.c.l.b16 %v415
  %v1907 = vunpack.c.h.b16 %v415
  %v1908 = vunpack.c.l.b16 %v416
  %v1909 = vunpack.c.h.b16 %v416
  %v1910 = vunpack.c.l.b16 %v417
  %v1911 = vunpack.c.h.b16 %v417
  %v1912 = vunpack.c.l.b16 %v418
  %v1913 = vunpack.c.h.b16 %v418
  %v1914 = vunpack.c.l.b16 %v419
  %v1915 = vunpack.c.h.b16 %v419
  %v1916 = vunpack.c.l.b16 %v420
  %v1917 = vunpack.c.h.b16 %v420
  %v1918 = vunpack.c.l.b16 %v421
  %v1919 = vunpack.c.h.b16 %v421
  %v1920 = vunpack.c.l.b16 %v422
  %v1921 = vunpack.c.h.b16 %v422
  %v1922 = vunpack.c.l.b16 %v423
  %v1923 = vunpack.c.h.b16 %v423
  %v1924 = vunpack.c.l.b16 %v424
  %v1925 = vunpack.c.h.b16 %v424
  %v1926 = vunpack.c.l.b16 %v425
  %v1927 = vunpack.c.h.b16 %v425
  %v1928 = vunpack.c.l.b16 %v426
  %v1929 = vunpack.c.h.b16 %v426
  %v1930 = vunpack.c.l.b16 %v427
  %v1931 = vunpack.c.h.b16 %v427
  %v1932 = vunpack.c.l.b16 %v428
  %v1933 = vunpack.c.h.b16 %v428
  %v1934 = vunpack.c.l.b16 %v429
  %v1935 = vunpack.c.h.b16 %v429
  %v1936 = vunpack.c.l.b16 %v430
  %v1937 = vunpack.c.h.b16 %v430
  %v1938 = vunpack.c.l.b16 %v431
  %v1939 = vunpack.c.h.b16 %v431
  %v1940 = vunpack.c.l.b16 %v432
  %v1941 = vunpack.c.h.b16 %v432
  %v1942 = vunpack.c.l.b16 %v433
  %v1943 = vunpack.c.h.b16 %v433
  %v1944 = vunpack.c.l.b16 %v434
  %v1945 = vunpack.c.h.b16 %v434
  %v1946 = vunpack.c.l.b16 %v435
  %v1947 = vunpack.c.h.b16 %v435
  %v1948 = vunpack.c.l.b16 %v436
  %v1949 = vunpack.c.h.b16 %v436
  %v1950 = vunpack.c.l.b16 %v437
  %v1951 = vunpack.c.h.b16 %v437
  %v1952 = vunpack.c.l.b16 %v438
  %v1953 = vunpack.c.h.b16 %v438
  %v1954 = vunpack.c.l.b16 %v439
  %v1955 = vunpack.c.h.b16 %v439
  %v1956 = vunpack.c.l.b16 %v440
  %v1957 = vunpack.c.h.b16 %v440
  %v1958 = vunpack.c.l.b16 %v441
  %v1959 = vunpack.c.h.b16 %v441
  %v1960 = vunpack.c.l.b16 %v442
  %v1961 = vunpack.c.h.b16 %v442
  %v1962 = vunpack.c.l.b16 %v443
  %v1963 = vunpack.c.h.b16 %v443
  %v1964 = vunpack.c.l.b16 %v444
  %v1965 = vunpack.c.h.b16 %v444
  %v1966 = vunpack.c.l.b16 %v445
  %v1967 = vunpack.c.h.b16 %v445
  %v1968 = vunpack.c.l.b16 %v446
  %v1969 = vunpack.c.h.b16 %v446
  %v1970 = vunpack.c.l.b16 %v447
  %v1971 = vunpack.c.h.b16 %v447
  %v1972 = vunpack.c.l.b16 %v448
  %v1973 = vunpack.c.h.b16 %v448
  %v1974 = vunpack.c.l.b16 %v449
  %v1975 = vunpack.c.h.b16 %v449
  %v1976 = vunpack.c.l.b16 %v450
  %v1977 = vunpack.c.h.b16 %v450
  %v1978 = vunpack.c.l.b16 %v451
  %v1979 = vunpack.c.h.b16 %v451
  %v1980 = vunpack.c.l.b16 %v452
  %v1981 = vunpack.c.h.b16 %v452
  %v1982 = vunpack.c.l.b16 %v453
  %v1983 = vunpack.c.h.b16 %v453
  %v1984 = vunpack.c.l.b16 %v454
  %v1985 = vunpack.c.h.b16 %v454
  %v1986 = vunpack.c.l.b16 %v455
  %v1987 = vunpack.c.h.b16 %v455
  %v1988 = vunpack.c.l.b16 %v456
  %v1989 = vunpack.c.h.b16 %v456
  %v1990 = vunpack.c.l.b16 %v457
  %v1991 = vunpack.c.h.b16 %v457
  %v1992 = vunpack.c.l.b16 %v458
  %v1993 = vunpack.c.h.b16 %v458
  %v1994 = vunpack.c.l.b16 %v459
  %v1995 = vunpack.c.h.b16 %v459
  %v1996 = vunpack.c.l.b16 %v460
  %v1997 = vunpack.c.h.b16 %v460
  %v1998 = vunpack.c.l.b16 %v461
  %v1999 = vunpack.c.h.b16 %v461
  %v2000 = vunpack.c.l.b16 %v462
  %v2001 = vunpack.c.h.b16 %v462
  %v2002 = vunpack.c.l.b16 %v463
  %v2003 = vunpack.c.h.b16 %v463
  %v2004 = vunpack.c.l.b16 %v464
  %v2005 = vunpack.c.h.b16 %v464
  %v2006 = vunpack.c.l.b16 %v465
  %v2007 = vunpack.c.h.b16 %v465
  %v2008 = vunpack.c.l.b16 %v466
  %v2009 = vunpack.c.h.b16 %v466
  %v2010 = vunpack.c.l.b16 %v467
  %v2011 = vunpack.c.h.b16 %v467
  %v2012 = vunpack.c.l.b16 %v468
  %v2013 = vunpack.c.h.b16 %v468
  %v2014 = vunpack.c.l.b16 %v469
  %v2015 = vunpack.c.h.b16 %v469
  %v2016 = vunpack.c.l.b16 %v470
  %v2017 = vunpack.c.h.b16 %v470
  %v2018 = vunpack.c.l.b16 %v471
  %v2019 = vunpack.c.h.b16 %v471
  %v2020 = vunpack.c.l.b16 %v472
  %v2021 = vunpack.c.h.b16 %v472
  %v2022 = vunpack.c.l.b16 %v473
  %v2023 = vunpack.c.h.b16 %v473
  %v2024 = vunpack.c.l.b16 %v474
  %v2025 = vunpack.c.h.b16 %v474
  %v2026 = vunpack.c.l.b16 %v475
  %v2027 = vunpack.c.h.b16 %v475
  %v2028 = vunpack.c.l.b16 %v476
  %v2029 = vunpack.c.h.b16 %v476
  %v2030 = vunpack.c.l.b16 %v477
  %v2031 = vunpack.c.h.b16 %v477
  %v2032 = vunpack.c.l.b16 %v478
  %v2033 = vunpack.c.h.b16 %v478
  %v2034 = vunpack.c.l.b16 %v479
  %v2035 = vunpack.c.h.b16 %v479
  %v2036 = vunpack.c.l.b16 %v480
  %v2037 = vunpack.c.h.b16 %v480
  %v2038 = vunpack.c.l.b16 %v481
  %v2039 = vunpack.c.h.b16 %v481
  %v2040 = vunpack.c.l.b16 %v482
  %v2041 = vunpack.c.h.b16 %v482
  %v2042 = vunpack.c.l.b16 %v483
  %v2043 = vunpack.c.h.b16 %v483
  %v2044 = vunpack.c.l.b16 %v484
  %v2045 = vunpack.c.h.b16 %v484
  %v2046 = vunpack.c.l.b16 %v485
  %v2047 = vunpack.c.h.b16 %v485
  %v2048 = vunpack.c.l.b16 %v486
  %v2049 = vunpack.c.h.b16 %v486
  %v2050 = vunpack.c.l.b16 %v487
  %v2051 = vunpack.c.h.b16 %v487
  %v2052 = vunpack.c.l.b16 %v488
  %v2053 = vunpack.c.h.b16 %v488
  %v2054 = vunpack.c.l.b16 %v489
  %v2055 = vunpack.c.h.b16 %v489
  %v2056 = vunpack.c.l.b16 %v490
  %v2057 = vunpack.c.h.b16 %v490
  %v2058 = vunpack.c.l.b16 %v491
  %v2059 = vunpack.c.h.b16 %v491
  %v2060 = vunpack.c.l.b16 %v492
  %v2061 = vunpack.c.h.b16 %v492
  %v2062 = vunpack.c.l.b16 %v493
  %v2063 = vunpack.c.h.b16 %v493
  %v2064 = vunpack.c.l.b16 %v494
  %v2065 = vunpack.c.h.b16 %v494
  %v2066 = vunpack.c.l.b16 %v495
  %v2067 = vunpack.c.h.b16 %v495
  %v2068 = vunpack.c.l.b16 %v496
  %v2069 = vunpack.c.h.b16 %v496
  %v2070 = vunpack.c.l.b16 %v497
  %v2071 = vunpack.c.h.b16 %v497
  %v2072 = vunpack.c.l.b16 %v498
  %v2073 = vunpack.c.h.b16 %v498
  %v2074 = vunpack.c.l.b16 %v499
  %v2075 = vunpack.c.h.b16 %v499
  %v2076 = vunpack.c.l.b16 %v500
  %v2077 = vunpack.c.h.b16 %v500
  %v2078 = vunpack.c.l.b16 %v501
  %v2079 = vunpack.c.h.b16 %v501
  %v2080 = vunpack.c.l.b16 %v502
  %v2081 = vunpack.c.h.b16 %v502
  %v2082 = vunpack.c.l.b16 %v503
  %v2083 = vunpack.c.h.b16 %v503
  %v2084 = vunpack.c.l.b16 %v504
  %v2085 = vunpack.c.h.b16 %v504
  %v2086 = vunpack.c.l.b16 %v505
  %v2087 = vunpack.c.h.b16 %v505
  %v2088 = vunpack.c.l.b16 %v506
  %v2089 = vunpack.c.h.b16 %v506
  %v2090 = vunpack.c.l.b16 %v507
  %v2091 = vunpack.c.h.b16 %v507
  %v2092 = vunpack.c.l.b16 %v508
  %v2093 = vunpack.c.h.b16 %v508
  %v2094 = vunpack.c.l.b16 %v509
  %v2095 = vunpack.c.h.b16 %v509
  %v2096 = vunpack.c.l.b16 %v510
  %v2097 = vunpack.c.h.b16 %v510
  %v2098 = vunpack.c.l.b16 %v511
  %v2099 = vunpack.c.h.b16 %v511
  %v2100 = vunpack.c.l.b16 %v512
  %v2101 = vunpack.c.h.b16 %v512
  %v2102 = vunpack.c.l.b16 %v513
  %v2103 = vunpack.c.h.b16 %v513
  %v2104 = vunpack.c.l.b16 %v514
  %v2105 = vunpack.c.h.b16 %v514
  %v2106 = vunpack.c.l.b16 %v515
  %v2107 = vunpack.c.h.b16 %v515
  %v2108 = vunpack.c.l.b16 %v516
  %v2109 = vunpack.c.h.b16 %v516
  %v2110 = vunpack.c.l.b16 %v517
  %v2111 = vunpack.c.h.b16 %v517
  %v2112 = vunpack.c.l.b16 %v518
  %v2113 = vunpack.c.h.b16 %v518
  %v2114 = vunpack.c.l.b16 %v519
  %v2115 = vunpack.c.h.b16 %v519
  %v2116 = vunpack.c.l.b16 %v520
  %v2117 = vunpack.c.h.b16 %v520
  %v2118 = vunpack.c.l.b16 %v521
  %v2119 = vunpack.c.h.b16 %v521
  %v2120 = vunpack.c.l.b16 %v522
  %v2121 = vunpack.c.h.b16 %v522
  %v2122 = vunpack.c.l.b16 %v523
  %v2123 = vunpack.c.h.b16 %v523
  %v2124 = vunpack.c.l.b16 %v524
  %v2125 = vunpack.c.h.b16 %v524
  %v2126 = vunpack.c.l.b16 %v525
  %v2127 = vunpack.c.h.b16 %v525
  %v2128 = vunpack.c.l.b16 %v526
  %v2129 = vunpack.c.h.b16 %v526
  %v2130 = vunpack.c.l.b16 %v527
  %v2131 = vunpack.c.h.b16 %v527
  %v2132 = vunpack.c.l.b16 %v528
  %v2133 = vunpack.c.h.b16 %v528
  %v2134 = vunpack.c.l.b16 %v529
  %v2135 = vunpack.c.h.b16 %v529
  %v2136 = vpack.c.b16 %v1120, %v1112
  %v2137 = vpack.c.b16 %v1121, %v1113
  %v2138 = vpack.c.b16 %v1122, %v1114
  %v2139 = vpack.c.b16 %v1123, %v1115
  %v2140 = vpack.c.b16 %v1124, %v1116
  %v2141 = vpack.c.b16 %v1125, %v1117
  %v2142 = vpack.c.b16 %v1126, %v1118
  %v2143 = vpack.c.b16 %v1127, %v1119
  %v2144 = vpack.c.b16 %v1136, %v1128
  %v2145 = vpack.c.b16 %v1137, %v1129
  %v2146 = vpack.c.b16 %v1138, %v1130
  %v2147 = vpack.c.b16 %v1139, %v1131
  %v2148 = vpack.c.b16 %v1140, %v1132
  %v2149 = vpack.c.b16 %v1141, %v1133
  %v2150 = vpack.c.b16 %v1142, %v1134
  %v2151 = vpack.c.b16 %v1143, %v1135
  %v2152 = vpack.c.b16 %v1152, %v1144
  %v2153 = vpack.c.b16 %v1153, %v1145
  %v2154 = vpack.c.b16 %v1154, %v1146
  %v2155 = vpack.c.b16 %v1155, %v1147
  %v2156 = vpack.c.b16 %v1156, %v1148
  %v2157 = vpack.c.b16 %v1157, %v1149
  %v2158 = vpack.c.b16 %v1158, %v1150
  %v2159 = vpack.c.b16 %v1159, %v1151
  %v2160 = vpack.c.b16 %v1168, %v1160
  %v2161 = vpack.c.b16 %v1169, %v1161
  %v2162 = vpack.c.b16 %v1170, %v1162
  %v2163 = vpack.c.b16 %v1171, %v1163
  %v2164 = vpack.c.b16 %v1172, %v1164
  %v2165 = vpack.c.b16 %v1173, %v1165
  %v2166 = vpack.c.b16 %v1174, %v1166
  %v2167 = vpack.c.b16 %v1175, %v1167
  %v2168 = vpack.c.b16 %v1184, %v1176
  %v2169 = vpack.c.b16 %v1185, %v1177
  %v2170 = vpack.c.b16 %v1186, %v1178
  %v2171 = vpack.c.b16 %v1187, %v1179
  %v2172 = vpack.c.b16 %v1188, %v1180
  %v2173 = vpack.c.b16 %v1189, %v1181
  %v2174 = vpack.c.b16 %v1190, %v1182
  %v2175 = vpack.c.b16 %v1191, %v1183
  %v2176 = vpack.c.b16 %v1200, %v1192
  %v2177 = vpack.c.b16 %v1201, %v1193
  %v2178 = vpack.c.b16 %v1202, %v1194
  %v2179 = vpack.c.b16 %v1203, %v1195
  %v2180 = vpack.c.b16 %v1204, %v1196
  %v2181 = vpack.c.b16 %v1205, %v1197
  %v2182 = vpack.c.b16 %v1206, %v1198
  %v2183 = vpack.c.b16 %v1207, %v1199
  %v2184 = vpack.c.b16 %v1216, %v1208
  %v2185 = vpack.c.b16 %v1217, %v1209
  %v2186 = vpack.c.b16 %v1218, %v1210
  %v2187 = vpack.c.b16 %v1219, %v1211
  %v2188 = vpack.c.b16 %v1220, %v1212
  %v2189 = vpack.c.b16 %v1221, %v1213
  %v2190 = vpack.c.b16 %v1222, %v1214
  %v2191 = vpack.c.b16 %v1223, %v1215
  %v2192 = vpack.c.b16 %v1232, %v1224
  %v2193 = vpack.c.b16 %v1233, %v1225
  %v2194 = vpack.c.b16 %v1234, %v1226
  %v2195 = vpack.c.b16 %v1235, %v1227
  %v2196 = vpack.c.b16 %v1236, %v1228
  %v2197 = vpack.c.b16 %v1237, %v1229
  %v2198 = vpack.c.b16 %v1238, %v1230
  %v2199 = vpack.c.b16 %v1239, %v1231
  %v2200 = vpack.c.b16 %v1248, %v1240
  %v2201 = vpack.c.b16 %v1249, %v1241
  %v2202 = vpack.c.b16 %v1250, %v1242
  %v2203 = vpack.c.b16 %v1251, %v1243
  %v2204 = vpack.c.b16 %v1252, %v1244
  %v2205 = vpack.c.b16 %v1253, %v1245
  %v2206 = vpack.c.b16 %v1254, %v1246
  %v2207 = vpack.c.b16 %v1255, %v1247
  %v2208 = vpack.c.b16 %v1264, %v1256
  %v2209 = vpack.c.b16 %v1265, %v1257
  %v2210 = vpack.c.b16 %v1266, %v1258
  %v2211 = vpack.c.b16 %v1267, %v1259
  %v2212 = vpack.c.b16 %v1268, %v1260
  %v2213 = vpack.c.b16 %v1269, %v1261
  %v2214 = vpack.c.b16 %v1270, %v1262
  %v2215 = vpack.c.b16 %v1271, %v1263
  %v2216 = vpack.c.b16 %v1280, %v1272
  %v2217 = vpack.c.b16 %v1281, %v1273
  %v2218 = vpack.c.b16 %v1282, %v1274
  %v2219 = vpack.c.b16 %v1283, %v1275
  %v2220 = vpack.c.b16 %v1284, %v1276
  %v2221 = vpack.c.b16 %v1285, %v1277
  %v2222 = vpack.c.b16 %v1286, %v1278
  %v2223 = vpack.c.b16 %v1287, %v1279
  %v2224 = vpack.c.b16 %v1296, %v1288
  %v2225 = vpack.c.b16 %v1297, %v1289
  %v2226 = vpack.c.b16 %v1298, %v1290
  %v2227 = vpack.c.b16 %v1299, %v1291
  %v2228 = vpack.c.b16 %v1300, %v1292
  %v2229 = vpack.c.b16 %v1301, %v1293
  %v2230 = vpack.c.b16 %v1302, %v1294
  %v2231 = vpack.c.b16 %v1303, %v1295
  %v2232 = vpack.c.b16 %v1312, %v1304
  %v2233 = vpack.c.b16 %v1313, %v1305
  %v2234 = vpack.c.b16 %v1314, %v1306
  %v2235 = vpack.c.b16 %v1315, %v1307
  %v2236 = vpack.c.b16 %v1316, %v1308
  %v2237 = vpack.c.b16 %v1317, %v1309
  %v2238 = vpack.c.b16 %v1318, %v1310
  %v2239 = vpack.c.b16 %v1319, %v1311
  %v2240 = vpack.c.b16 %v1328, %v1320
  %v2241 = vpack.c.b16 %v1329, %v1321
  %v2242 = vpack.c.b16 %v1330, %v1322
  %v2243 = vpack.c.b16 %v1331, %v1323
  %v2244 = vpack.c.b16 %v1332, %v1324
  %v2245 = vpack.c.b16 %v1333, %v1325
  %v2246 = vpack.c.b16 %v1334, %v1326
  %v2247 = vpack.c.b16 %v1335, %v1327
  %v2248 = vpack.c.b16 %v1344, %v1336
  %v2249 = vpack.c.b16 %v1345, %v1337
  %v2250 = vpack.c.b16 %v1346, %v1338
  %v2251 = vpack.c.b16 %v1347, %v1339
  %v2252 = vpack.c.b16 %v1348, %v1340
  %v2253 = vpack.c.b16 %v1349, %v1341
  %v2254 = vpack.c.b16 %v1350, %v1342
  %v2255 = vpack.c.b16 %v1351, %v1343
  %v2256 = vpack.c.b16 %v1360, %v1352
  %v2257 = vpack.c.b16 %v1361, %v1353
  %v2258 = vpack.c.b16 %v1362, %v1354
  %v2259 = vpack.c.b16 %v1363, %v1355
  %v2260 = vpack.c.b16 %v1364, %v1356
  %v2261 = vpack.c.b16 %v1365, %v1357
  %v2262 = vpack.c.b16 %v1366, %v1358
  %v2263 = vpack.c.b16 %v1367, %v1359
  %v2264 = vpack.c.b16 %v1376, %v1368
  %v2265 = vpack.c.b16 %v1377, %v1369
  %v2266 = vpack.c.b16 %v1378, %v1370
  %v2267 = vpack.c.b16 %v1379, %v1371
  %v2268 = vpack.c.b16 %v1380, %v1372
  %v2269 = vpack.c.b16 %v1381, %v1373
  %v2270 = vpack.c.b16 %v1382, %v1374
  %v2271 = vpack.c.b16 %v1383, %v1375
  %v2272 = vpack.c.b16 %v1392, %v1384
  %v2273 = vpack.c.b16 %v1393, %v1385
  %v2274 = vpack.c.b16 %v1394, %v1386
  %v2275 = vpack.c.b16 %v1395, %v1387
  %v2276 = vpack.c.b16 %v1396, %v1388
  %v2277 = vpack.c.b16 %v1397, %v1389
  %v2278 = vpack.c.b16 %v1398, %v1390
  %v2279 = vpack.c.b16 %v1399, %v1391
  %v2280 = vpack.c.b16 %v1408, %v1400
  %v2281 = vpack.c.b16 %v1409, %v1401
  %v2282 = vpack.c.b16 %v1410, %v1402
  %v2283 = vpack.c.b16 %v1411, %v1403
  %v2284 = vpack.c.b16 %v1412, %v1404
  %v2285 = vpack.c.b16 %v1413, %v1405
  %v2286 = vpack.c.b16 %v1414, %v1406
  %v2287 = vpack.c.b16 %v1415, %v1407
  %v2288 = vpack.c.b16 %v1424, %v1416
  %v2289 = vpack.c.b16 %v1425, %v1417
  %v2290 = vpack.c.b16 %v1426, %v1418
  %v2291 = vpack.c.b16 %v1427, %v1419
  %v2292 = vpack.c.b16 %v1428, %v1420
  %v2293 = vpack.c.b16 %v1429, %v1421
  %v2294 = vpack.c.b16 %v1430, %v1422
  %v2295 = vpack.c.b16 %v1431, %v1423
  %v2296 = vpack.c.b16 %v1440, %v1432
  %v2297 = vpack.c.b16 %v1441, %v1433
  %v2298 = vpack.c.b16 %v1442, %v1434
  %v2299 = vpack.c.b16 %v1443, %v1435
  %v2300 = vpack.c.b16 %v1444, %v1436
  %v2301 = vpack.c.b16 %v1445, %v1437
  %v2302 = vpack.c.b16 %v1446, %v1438
  %v2303 = vpack.c.b16 %v1447, %v1439
  %v2304 = vpack.c.b16 %v1456, %v1448
  %v2305 = vpack.c.b16 %v1457, %v1449
  %v2306 = vpack.c.b16 %v1458, %v1450
  %v2307 = vpack.c.b16 %v1459, %v1451
  %v2308 = vpack.c.b16 %v1460, %v1452
  %v2309 = vpack.c.b16 %v1461, %v1453
  %v2310 = vpack.c.b16 %v1462, %v1454
  %v2311 = vpack.c.b16 %v1463, %v1455
  %v2312 = vpack.c.b16 %v1472, %v1464
  %v2313 = vpack.c.b16 %v1473, %v1465
  %v2314 = vpack.c.b16 %v1474, %v1466
  %v2315 = vpack.c.b16 %v1475, %v1467
  %v2316 = vpack.c.b16 %v1476, %v1468
  %v2317 = vpack.c.b16 %v1477, %v1469
  %v2318 = vpack.c.b16 %v1478, %v1470
  %v2319 = vpack.c.b16 %v1479, %v1471
  %v2320 = vpack.c.b16 %v1488, %v1480
  %v2321 = vpack.c.b16 %v1489, %v1481
  %v2322 = vpack.c.b16 %v1490, %v1482
  %v2323 = vpack.c.b16 %v1491, %v1483
  %v2324 = vpack.c.b16 %v1492, %v1484
  %v2325 = vpack.c.b16 %v1493, %v1485
  %v2326 = vpack.c.b16 %v1494, %v1486
  %v2327 = vpack.c.b16 %v1495, %v1487
  %v2328 = vpack.c.b16 %v1504, %v1496
  %v2329 = vpack.c.b16 %v1505, %v1497
  %v2330 = vpack.c.b16 %v1506, %v1498
  %v2331 = vpack.c.b16 %v1507, %v1499
  %v2332 = vpack.c.b16 %v1508, %v1500
  %v2333 = vpack.c.b16 %v1509, %v1501
  %v2334 = vpack.c.b16 %v1510, %v1502
  %v2335 = vpack.c.b16 %v1511, %v1503
  %v2336 = vpack.c.b16 %v1520, %v1512
  %v2337 = vpack.c.b16 %v1521, %v1513
  %v2338 = vpack.c.b16 %v1522, %v1514
  %v2339 = vpack.c.b16 %v1523, %v1515
  %v2340 = vpack.c.b16 %v1524, %v1516
  %v2341 = vpack.c.b16 %v1525, %v1517
  %v2342 = vpack.c.b16 %v1526, %v1518
  %v2343 = vpack.c.b16 %v1527, %v1519
  %v2344 = vpack.c.b16 %v1536, %v1528
  %v2345 = vpack.c.b16 %v1537, %v1529
  %v2346 = vpack.c.b16 %v1538, %v1530
  %v2347 = vpack.c.b16 %v1539, %v1531
  %v2348 = vpack.c.b16 %v1540, %v1532
  %v2349 = vpack.c.b16 %v1541, %v1533
  %v2350 = vpack.c.b16 %v1542, %v1534
  %v2351 = vpack.c.b16 %v1543, %v1535
  %v2352 = vpack.c.b16 %v1552, %v1544
  %v2353 = vpack.c.b16 %v1553, %v1545
  %v2354 = vpack.c.b16 %v1554, %v1546
  %v2355 = vpack.c.b16 %v1555, %v1547
  %v2356 = vpack.c.b16 %v1556, %v1548
  %v2357 = vpack.c.b16 %v1557, %v1549
  %v2358 = vpack.c.b16 %v1558, %v1550
  %v2359 = vpack.c.b16 %v1559, %v1551
  %v2360 = vpack.c.b16 %v1568, %v1560
  %v2361 = vpack.c.b16 %v1569, %v1561
  %v2362 = vpack.c.b16 %v1570, %v1562
  %v2363 = vpack.c.b16 %v1571, %v1563
  %v2364 = vpack.c.b16 %v1572, %v1564
  %v2365 = vpack.c.b16 %v1573, %v1565
  %v2366 = vpack.c.b16 %v1574, %v1566
  %v2367 = vpack.c.b16 %v1575, %v1567
  %v2368 = vpack.c.b16 %v1584, %v1576
  %v2369 = vpack.c.b16 %v1585, %v1577
  %v2370 = vpack.c.b16 %v1586, %v1578
  %v2371 = vpack.c.b16 %v1587, %v1579
  %v2372 = vpack.c.b16 %v1588, %v1580
  %v2373 = vpack.c.b16 %v1589, %v1581
  %v2374 = vpack.c.b16 %v1590, %v1582
  %v2375 = vpack.c.b16 %v1591, %v1583
  %v2376 = vpack.c.b16 %v1600, %v1592
  %v2377 = vpack.c.b16 %v1601, %v1593
  %v2378 = vpack.c.b16 %v1602, %v1594
  %v2379 = vpack.c.b16 %v1603, %v1595
  %v2380 = vpack.c.b16 %v1604, %v1596
  %v2381 = vpack.c.b16 %v1605, %v1597
  %v2382 = vpack.c.b16 %v1606, %v1598
  %v2383 = vpack.c.b16 %v1607, %v1599
  %v2384 = vpack.c.b16 %v1616, %v1608
  %v2385 = vpack.c.b16 %v1617, %v1609
  %v2386 = vpack.c.b16 %v1618, %v1610
  %v2387 = vpack.c.b16 %v1619, %v1611
  %v2388 = vpack.c.b16 %v1620, %v1612
  %v2389 = vpack.c.b16 %v1621, %v1613
  %v2390 = vpack.c.b16 %v1622, %v1614
  %v2391 = vpack.c.b16 %v1623, %v1615
  %v2392 = vpack.c.b16 %v1632, %v1624
  %v2393 = vpack.c.b16 %v1633, %v1625
  %v2394 = vpack.c.b16 %v1634, %v1626
  %v2395 = vpack.c.b16 %v1635, %v1627
  %v2396 = vpack.c.b16 %v1636, %v1628
  %v2397 = vpack.c.b16 %v1637, %v1629
  %v2398 = vpack.c.b16 %v1638, %v1630
  %v2399 = vpack.c.b16 %v1639, %v1631
  %v2400 = vpack.c.b16 %v1648, %v1640
  %v2401 = vpack.c.b16 %v1649, %v1641
  %v2402 = vpack.c.b16 %v1650, %v1642
  %v2403 = vpack.c.b16 %v1651, %v1643
  %v2404 = vpack.c.b16 %v1652, %v1644
  %v2405 = vpack.c.b16 %v1653, %v1645
  %v2406 = vpack.c.b16 %v1654, %v1646
  %v2407 = vpack.c.b16 %v1655, %v1647
  %v2408 = vpack.c.b16 %v1664, %v1656
  %v2409 = vpack.c.b16 %v1665, %v1657
  %v2410 = vpack.c.b16 %v1666, %v1658
  %v2411 = vpack.c.b16 %v1667, %v1659
  %v2412 = vpack.c.b16 %v1668, %v1660
  %v2413 = vpack.c.b16 %v1669, %v1661
  %v2414 = vpack.c.b16 %v1670, %v1662
  %v2415 = vpack.c.b16 %v1671, %v1663
  %v2416 = vpack.c.b16 %v1680, %v1672
  %v2417 = vpack.c.b16 %v1681, %v1673
  %v2418 = vpack.c.b16 %v1682, %v1674
  %v2419 = vpack.c.b16 %v1683, %v1675
  %v2420 = vpack.c.b16 %v1684, %v1676
  %v2421 = vpack.c.b16 %v1685, %v1677
  %v2422 = vpack.c.b16 %v1686, %v1678
  %v2423 = vpack.c.b16 %v1687, %v1679
  %v2424 = vpack.c.b16 %v1696, %v1688
  %v2425 = vpack.c.b16 %v1697, %v1689
  %v2426 = vpack.c.b16 %v1698, %v1690
  %v2427 = vpack.c.b16 %v1699, %v1691
  %v2428 = vpack.c.b16 %v1700, %v1692
  %v2429 = vpack.c.b16 %v1701, %v1693
  %v2430 = vpack.c.b16 %v1702, %v1694
  %v2431 = vpack.c.b16 %v1703, %v1695
  %v2432 = vpack.c.b16 %v1712, %v1704
  %v2433 = vpack.c.b16 %v1713, %v1705
  %v2434 = vpack.c.b16 %v1714, %v1706
  %v2435 = vpack.c.b16 %v1715, %v1707
  %v2436 = vpack.c.b16 %v1716, %v1708
  %v2437 = vpack.c.b16 %v1717, %v1709
  %v2438 = vpack.c.b16 %v1718, %v1710
  %v2439 = vpack.c.b16 %v1719, %v1711
  %v2440 = vpack.c.b16 %v1728, %v1720
  %v2441 = vpack.c.b16 %v1729, %v1721
  %v2442 = vpack.c.b16 %v1730, %v1722
  %v2443 = vpack.c.b16 %v1731, %v1723
  %v2444 = vpack.c.b16 %v1732, %v1724
  %v2445 = vpack.c.b16 %v1733, %v1725
  %v2446 = vpack.c.b16 %v1734, %v1726
  %v2447 = vpack.c.b16 %v1735, %v1727
  %v2448 = vpack.c.b16 %v1744, %v1736
  %v2449 = vpack.c.b16 %v1745, %v1737
  %v2450 = vpack.c.b16 %v1746, %v1738
  %v2451 = vpack.c.b16 %v1747, %v1739
  %v2452 = vpack.c.b16 %v1748, %v1740
  %v2453 = vpack.c.b16 %v1749, %v1741
  %v2454 = vpack.c.b16 %v1750, %v1742
  %v2455 = vpack.c.b16 %v1751, %v1743
  %v2456 = vpack.c.b16 %v1760, %v1752
  %v2457 = vpack.c.b16 %v1761, %v1753
  %v2458 = vpack.c.b16 %v1762, %v1754
  %v2459 = vpack.c.b16 %v1763, %v1755
  %v2460 = vpack.c.b16 %v1764, %v1756
  %v2461 = vpack.c.b16 %v1765, %v1757
  %v2462 = vpack.c.b16 %v1766, %v1758
  %v2463 = vpack.c.b16 %v1767, %v1759
  %v2464 = vpack.c.b16 %v1776, %v1768
  %v2465 = vpack.c.b16 %v1777, %v1769
  %v2466 = vpack.c.b16 %v1778, %v1770
  %v2467 = vpack.c.b16 %v1779, %v1771
  %v2468 = vpack.c.b16 %v1780, %v1772
  %v2469 = vpack.c.b16 %v1781, %v1773
  %v2470 = vpack.c.b16 %v1782, %v1774
  %v2471 = vpack.c.b16 %v1783, %v1775
  %v2472 = vpack.c.b16 %v1792, %v1784
  %v2473 = vpack.c.b16 %v1793, %v1785
  %v2474 = vpack.c.b16 %v1794, %v1786
  %v2475 = vpack.c.b16 %v1795, %v1787
  %v2476 = vpack.c.b16 %v1796, %v1788
  %v2477 = vpack.c.b16 %v1797, %v1789
  %v2478 = vpack.c.b16 %v1798, %v1790
  %v2479 = vpack.c.b16 %v1799, %v1791
  %v2480 = vpack.c.b16 %v1808, %v1800
  %v2481 = vpack.c.b16 %v1809, %v1801
  %v2482 = vpack.c.b16 %v1810, %v1802
  %v2483 = vpack.c.b16 %v1811, %v1803
  %v2484 = vpack.c.b16 %v1812, %v1804
  %v2485 = vpack.c.b16 %v1813, %v1805
  %v2486 = vpack.c.b16 %v1814, %v1806
  %v2487 = vpack.c.b16 %v1815, %v1807
  %v2488 = vpack.c.b16 %v1824, %v1816
  %v2489 = vpack.c.b16 %v1825, %v1817
  %v2490 = vpack.c.b16 %v1826, %v1818
  %v2491 = vpack.c.b16 %v1827, %v1819
  %v2492 = vpack.c.b16 %v1828, %v1820
  %v2493 = vpack.c.b16 %v1829, %v1821
  %v2494 = vpack.c.b16 %v1830, %v1822
  %v2495 = vpack.c.b16 %v1831, %v1823
  %v2496 = vpack.c.b16 %v1840, %v1832
  %v2497 = vpack.c.b16 %v1841, %v1833
  %v2498 = vpack.c.b16 %v1842, %v1834
  %v2499 = vpack.c.b16 %v1843, %v1835
  %v2500 = vpack.c.b16 %v1844, %v1836
  %v2501 = vpack.c.b16 %v1845, %v1837
  %v2502 = vpack.c.b16 %v1846, %v1838
  %v2503 = vpack.c.b16 %v1847, %v1839
  %v2504 = vpack.c.b16 %v1856, %v1848
  %v2505 = vpack.c.b16 %v1857, %v1849
  %v2506 = vpack.c.b16 %v1858, %v1850
  %v2507 = vpack.c.b16 %v1859, %v1851
  %v2508 = vpack.c.b16 %v1860, %v1852
  %v2509 = vpack.c.b16 %v1861, %v1853
  %v2510 = vpack.c.b16 %v1862, %v1854
  %v2511 = vpack.c.b16 %v1863, %v1855
  %v2512 = vpack.c.b16 %v1872, %v1864
  %v2513 = vpack.c.b16 %v1873, %v1865
  %v2514 = vpack.c.b16 %v1874, %v1866
  %v2515 = vpack.c.b16 %v1875, %v1867
  %v2516 = vpack.c.b16 %v1876, %v1868
  %v2517 = vpack.c.b16 %v1877, %v1869
  %v2518 = vpack.c.b16 %v1878, %v1870
  %v2519 = vpack.c.b16 %v1879, %v1871
  %v2520 = vpack.c.b16 %v1888, %v1880
  %v2521 = vpack.c.b16 %v1889, %v1881
  %v2522 = vpack.c.b16 %v1890, %v1882
  %v2523 = vpack.c.b16 %v1891, %v1883
  %v2524 = vpack.c.b16 %v1892, %v1884
  %v2525 = vpack.c.b16 %v1893, %v1885
  %v2526 = vpack.c.b16 %v1894, %v1886
  %v2527 = vpack.c.b16 %v1895, %v1887
  %v2528 = vpack.c.b16 %v1904, %v1896
  %v2529 = vpack.c.b16 %v1905, %v1897
  %v2530 = vpack.c.b16 %v1906, %v1898
  %v2531 = vpack.c.b16 %v1907, %v1899
  %v2532 = vpack.c.b16 %v1908, %v1900
  %v2533 = vpack.c.b16 %v1909, %v1901
  %v2534 = vpack.c.b16 %v1910, %v1902
  %v2535 = vpack.c.b16 %v1911, %v1903
  %v2536 = vpack.c.b16 %v1920, %v1912
  %v2537 = vpack.c.b16 %v1921, %v1913
  %v2538 = vpack.c.b16 %v1922, %v1914
  %v2539 = vpack.c.b16 %v1923, %v1915
  %v2540 = vpack.c.b16 %v1924, %v1916
  %v2541 = vpack.c.b16 %v1925, %v1917
  %v2542 = vpack.c.b16 %v1926, %v1918
  %v2543 = vpack.c.b16 %v1927, %v1919
  %v2544 = vpack.c.b16 %v1936, %v1928
  %v2545 = vpack.c.b16 %v1937, %v1929
  %v2546 = vpack.c.b16 %v1938, %v1930
  %v2547 = vpack.c.b16 %v1939, %v1931
  %v2548 = vpack.c.b16 %v1940, %v1932
  %v2549 = vpack.c.b16 %v1941, %v1933
  %v2550 = vpack.c.b16 %v1942, %v1934
  %v2551 = vpack.c.b16 %v1943, %v1935
  %v2552 = vpack.c.b16 %v1952, %v1944
  %v2553 = vpack.c.b16 %v1953, %v1945
  %v2554 = vpack.c.b16 %v1954, %v1946
  %v2555 = vpack.c.b16 %v1955, %v1947
  %v2556 = vpack.c.b16 %v1956, %v1948
  %v2557 = vpack.c.b16 %v1957, %v1949
  %v2558 = vpack.c.b16 %v1958, %v1950
  %v2559 = vpack.c.b16 %v1959, %v1951
  %v2560 = vpack.c.b16 %v1968, %v1960
  %v2561 = vpack.c.b16 %v1969, %v1961
  %v2562 = vpack.c.b16 %v1970, %v1962
  %v2563 = vpack.c.b16 %v1971, %v1963
  %v2564 = vpack.c.b16 %v1972, %v1964
  %v2565 = vpack.c.b16 %v1973, %v1965
  %v2566 = vpack.c.b16 %v1974, %v1966
  %v2567 = vpack.c.b16 %v1975, %v1967
  %v2568 = vpack.c.b16 %v1984, %v1976
  %v2569 = vpack.c.b16 %v1985, %v1977
  %v2570 = vpack.c.b16 %v1986, %v1978
  %v2571 = vpack.c.b16 %v1987, %v1979
  %v2572 = vpack.c.b16 %v1988, %v1980
  %v2573 = vpack.c.b16 %v1989, %v1981
  %v2574 = vpack.c.b16 %v1990, %v1982
  %v2575 = vpack.c.b16 %v1991, %v1983
  %v2576 = vpack.c.b16 %v2000, %v1992
  %v2577 = vpack.c.b16 %v2001, %v1993
  %v2578 = vpack.c.b16 %v2002, %v1994
  %v2579 = vpack.c.b16 %v2003, %v1995
  %v2580 = vpack.c.b16 %v2004, %v1996
  %v2581 = vpack.c.b16 %v2005, %v1997
  %v2582 = vpack.c.b16 %v2006, %v1998
  %v2583 = vpack.c.b16 %v2007, %v1999
  %v2584 = vpack.c.b16 %v2016, %v2008
  %v2585 = vpack.c.b16 %v2017, %v2009
  %v2586 = vpack.c.b16 %v2018, %v2010
  %v2587 = vpack.c.b16 %v2019, %v2011
  %v2588 = vpack.c.b16 %v2020, %v2012
  %v2589 = vpack.c.b16 %v2021, %v2013
  %v2590 = vpack.c.b16 %v2022, %v2014
  %v2591 = vpack.c.b16 %v2023, %v2015
  %v2592 = vpack.c.b16 %v2032, %v2024
  %v2593 = vpack.c.b16 %v2033, %v2025
  %v2594 = vpack.c.b16 %v2034, %v2026
  %v2595 = vpack.c.b16 %v2035, %v2027
  %v2596 = vpack.c.b16 %v2036, %v2028
  %v2597 = vpack.c.b16 %v2037, %v2029
  %v2598 = vpack.c.b16 %v2038, %v2030
  %v2599 = vpack.c.b16 %v2039, %v2031
  %v2600 = vpack.c.b16 %v2048, %v2040
  %v2601 = vpack.c.b16 %v2049, %v2041
  %v2602 = vpack.c.b16 %v2050, %v2042
  %v2603 = vpack.c.b16 %v2051, %v2043
  %v2604 = vpack.c.b16 %v2052, %v2044
  %v2605 = vpack.c.b16 %v2053, %v2045
  %v2606 = vpack.c.b16 %v2054, %v2046
  %v2607 = vpack.c.b16 %v2055, %v2047
  %v2608 = vpack.c.b16 %v2064, %v2056
  %v2609 = vpack.c.b16 %v2065, %v2057
  %v2610 = vpack.c.b16 %v2066, %v2058
  %v2611 = vpack.c.b16 %v2067, %v2059
  %v2612 = vpack.c.b16 %v2068, %v2060
  %v2613 = vpack.c.b16 %v2069, %v2061
  %v2614 = vpack.c.b16 %v2070, %v2062
  %v2615 = vpack.c.b16 %v2071, %v2063
  %v2616 = vpack.c.b16 %v2080, %v2072
  %v2617 = vpack.c.b16 %v2081, %v2073
  %v2618 = vpack.c.b16 %v2082, %v2074
  %v2619 = vpack.c.b16 %v2083, %v2075
  %v2620 = vpack.c.b16 %v2084, %v2076
  %v2621 = vpack.c.b16 %v2085, %v2077
  %v2622 = vpack.c.b16 %v2086, %v2078
  %v2623 = vpack.c.b16 %v2087, %v2079
  %v2624 = vpack.c.b16 %v2096, %v2088
  %v2625 = vpack.c.b16 %v2097, %v2089
  %v2626 = vpack.c.b16 %v2098, %v2090
  %v2627 = vpack.c.b16 %v2099, %v2091
  %v2628 = vpack.c.b16 %v2100, %v2092
  %v2629 = vpack.c.b16 %v2101, %v2093
  %v2630 = vpack.c.b16 %v2102, %v2094
  %v2631 = vpack.c.b16 %v2103, %v2095
  %v2632 = vpack.c.b16 %v2112, %v2104
  %v2633 = vpack.c.b16 %v2113, %v2105
  %v2634 = vpack.c.b16 %v2114, %v2106
  %v2635 = vpack.c.b16 %v2115, %v2107
  %v2636 = vpack.c.b16 %v2116, %v2108
  %v2637 = vpack.c.b16 %v2117, %v2109
  %v2638 = vpack.c.b16 %v2118, %v2110
  %v2639 = vpack.c.b16 %v2119, %v2111
  %v2640 = vpack.c.b16 %v2128, %v2120
  %v2641 = vpack.c.b16 %v2129, %v2121
  %v2642 = vpack.c.b16 %v2130, %v2122
  %v2643 = vpack.c.b16 %v2131, %v2123
  %v2644 = vpack.c.b16 %v2132, %v2124
  %v2645 = vpack.c.b16 %v2133, %v2125
  %v2646 = vpack.c.b16 %v2134, %v2126
  %v2647 = vpack.c.b16 %v2135, %v2127
  %3160 = vmatprep.subr.bf16.mxu0 %v2137
  %3161 = vmatpush1.bf16.msra.mxu0 %v2136
  %3162 = vmatprep.subr.bf16.mxu0 %v2145
  %3163 = vmatpush1.bf16.msra.mxu0 %v2144
  %3164 = vmatprep.subr.bf16.mxu0 %v2153
  %3165 = vmatpush1.bf16.msra.mxu0 %v2152
  %3166 = vmatprep.subr.bf16.mxu0 %v2161
  %3167 = vmatpush1.bf16.msra.mxu0 %v2160
  %3168 = vmatprep.subr.bf16.mxu0 %v2169
  %3169 = vmatpush1.bf16.msra.mxu0 %v2168
  %3170 = vmatprep.subr.bf16.mxu0 %v2177
  %3171 = vmatpush1.bf16.msra.mxu0 %v2176
  %3172 = vmatprep.subr.bf16.mxu0 %v2185
  %3173 = vmatpush1.bf16.msra.mxu0 %v2184
  %3174 = vmatprep.subr.bf16.mxu0 %v2193
  %3175 = vmatpush1.bf16.msra.mxu0 %v2192
  %3176 = vmatprep.subr.bf16.mxu0 %v2201
  %3177 = vmatpush1.bf16.msra.mxu0 %v2200
  %3178 = vmatprep.subr.bf16.mxu0 %v2209
  %3179 = vmatpush1.bf16.msra.mxu0 %v2208
  %3180 = vmatprep.subr.bf16.mxu0 %v2217
  %3181 = vmatpush1.bf16.msra.mxu0 %v2216
  %3182 = vmatprep.subr.bf16.mxu0 %v2225
  %3183 = vmatpush1.bf16.msra.mxu0 %v2224
  %3184 = vmatprep.subr.bf16.mxu0 %v2233
  %3185 = vmatpush1.bf16.msra.mxu0 %v2232
  %3186 = vmatprep.subr.bf16.mxu0 %v2241
  %3187 = vmatpush1.bf16.msra.mxu0 %v2240
  %3188 = vmatprep.subr.bf16.mxu0 %v2249
  %3189 = vmatpush1.bf16.msra.mxu0 %v2248
  %3190 = vmatprep.subr.bf16.mxu0 %v2257
  %3191 = vmatpush1.bf16.msra.mxu0 %v2256
  %3192 = vmatprep.mubr.bf16.mxu0 %v585
  %3193 = vmatmul.mubr.bf16.gmra.mrb[0].mxu0 %v584
  %v3194 = vpop.f32.mrb[0].mxu0
  %v3195 = vadd.f32 %v535, %v3194
  %v3196 = vpop.f32.mrb[0].mxu0
  %v3197 = vadd.f32 %v539, %v3196
  %v3198 = vpop.f32.mrb[0].mxu0
  %v3199 = vpop.f32.mrb[0].mxu0
  %3200 = vdwg.mxu0
  %3201 = vmatprep.subr.bf16.mxu0 %v2265
  %3202 = vmatpush1.bf16.msra.mxu0 %v2264
  %3203 = vmatprep.subr.bf16.mxu0 %v2273
  %3204 = vmatpush1.bf16.msra.mxu0 %v2272
  %3205 = vmatprep.subr.bf16.mxu0 %v2281
  %3206 = vmatpush1.bf16.msra.mxu0 %v2280
  %3207 = vmatprep.subr.bf16.mxu0 %v2289
  %3208 = vmatpush1.bf16.msra.mxu0 %v2288
  %3209 = vmatprep.subr.bf16.mxu0 %v2297
  %3210 = vmatpush1.bf16.msra.mxu0 %v2296
  %3211 = vmatprep.subr.bf16.mxu0 %v2305
  %3212 = vmatpush1.bf16.msra.mxu0 %v2304
  %3213 = vmatprep.subr.bf16.mxu0 %v2313
  %3214 = vmatpush1.bf16.msra.mxu0 %v2312
  %3215 = vmatprep.subr.bf16.mxu0 %v2321
  %3216 = vmatpush1.bf16.msra.mxu0 %v2320
  %3217 = vmatprep.subr.bf16.mxu0 %v2329
  %3218 = vmatpush1.bf16.msra.mxu0 %v2328
  %3219 = vmatprep.subr.bf16.mxu0 %v2337
  %3220 = vmatpush1.bf16.msra.mxu0 %v2336
  %3221 = vmatprep.subr.bf16.mxu0 %v2345
  %3222 = vmatpush1.bf16.msra.mxu0 %v2344
  %3223 = vmatprep.subr.bf16.mxu0 %v2353
  %3224 = vmatpush1.bf16.msra.mxu0 %v2352
  %3225 = vmatprep.subr.bf16.mxu0 %v2361
  %3226 = vmatpush1.bf16.msra.mxu0 %v2360
  %3227 = vmatprep.subr.bf16.mxu0 %v2369
  %3228 = vmatpush1.bf16.msra.mxu0 %v2368
  %3229 = vmatprep.subr.bf16.mxu0 %v2377
  %3230 = vmatpush1.bf16.msra.mxu0 %v2376
  %3231 = vmatprep.subr.bf16.mxu0 %v2385
  %3232 = vmatpush1.bf16.msra.mxu0 %v2384
  %3233 = vmatprep.mubr.bf16.mxu0 %v587
  %3234 = vmatmul.mubr.bf16.gmra.mrb[0].mxu0 %v586
  %v3235 = vpop.f32.mrb[0].mxu0
  %v3236 = vadd.f32 %v3195, %v3235
  %v3237 = vpop.f32.mrb[0].mxu0
  %v3238 = vadd.f32 %v3197, %v3237
  %v3239 = vpop.f32.mrb[0].mxu0
  %v3240 = vpop.f32.mrb[0].mxu0
  %3241 = vdwg.mxu0
  %3242 = vmatprep.subr.bf16.mxu0 %v2393
  %3243 = vmatpush1.bf16.msra.mxu0 %v2392
  %3244 = vmatprep.subr.bf16.mxu0 %v2401
  %3245 = vmatpush1.bf16.msra.mxu0 %v2400
  %3246 = vmatprep.subr.bf16.mxu0 %v2409
  %3247 = vmatpush1.bf16.msra.mxu0 %v2408
  %3248 = vmatprep.subr.bf16.mxu0 %v2417
  %3249 = vmatpush1.bf16.msra.mxu0 %v2416
  %3250 = vmatprep.subr.bf16.mxu0 %v2425
  %3251 = vmatpush1.bf16.msra.mxu0 %v2424
  %3252 = vmatprep.subr.bf16.mxu0 %v2433
  %3253 = vmatpush1.bf16.msra.mxu0 %v2432
  %3254 = vmatprep.subr.bf16.mxu0 %v2441
  %3255 = vmatpush1.bf16.msra.mxu0 %v2440
  %3256 = vmatprep.subr.bf16.mxu0 %v2449
  %3257 = vmatpush1.bf16.msra.mxu0 %v2448
  %3258 = vmatprep.subr.bf16.mxu0 %v2457
  %3259 = vmatpush1.bf16.msra.mxu0 %v2456
  %3260 = vmatprep.subr.bf16.mxu0 %v2465
  %3261 = vmatpush1.bf16.msra.mxu0 %v2464
  %3262 = vmatprep.subr.bf16.mxu0 %v2473
  %3263 = vmatpush1.bf16.msra.mxu0 %v2472
  %3264 = vmatprep.subr.bf16.mxu0 %v2481
  %3265 = vmatpush1.bf16.msra.mxu0 %v2480
  %3266 = vmatprep.subr.bf16.mxu0 %v2489
  %3267 = vmatpush1.bf16.msra.mxu0 %v2488
  %3268 = vmatprep.subr.bf16.mxu0 %v2497
  %3269 = vmatpush1.bf16.msra.mxu0 %v2496
  %3270 = vmatprep.subr.bf16.mxu0 %v2505
  %3271 = vmatpush1.bf16.msra.mxu0 %v2504
  %3272 = vmatprep.subr.bf16.mxu0 %v2513
  %3273 = vmatpush1.bf16.msra.mxu0 %v2512
  %3274 = vmatprep.mubr.bf16.mxu0 %v589
  %3275 = vmatmul.mubr.bf16.gmra.mrb[0].mxu0 %v588
  %v3276 = vpop.f32.mrb[0].mxu0
  %v3277 = vadd.f32 %v3236, %v3276
  %v3278 = vpop.f32.mrb[0].mxu0
  %v3279 = vadd.f32 %v3238, %v3278
  %v3280 = vpop.f32.mrb[0].mxu0
  %v3281 = vpop.f32.mrb[0].mxu0
  %3282 = vdwg.mxu0
  %3283 = vmatprep.subr.bf16.mxu0 %v2521
  %3284 = vmatpush1.bf16.msra.mxu0 %v2520
  %3285 = vmatprep.subr.bf16.mxu0 %v2529
  %3286 = vmatpush1.bf16.msra.mxu0 %v2528
  %3287 = vmatprep.subr.bf16.mxu0 %v2537
  %3288 = vmatpush1.bf16.msra.mxu0 %v2536
  %3289 = vmatprep.subr.bf16.mxu0 %v2545
  %3290 = vmatpush1.bf16.msra.mxu0 %v2544
  %3291 = vmatprep.subr.bf16.mxu0 %v2553
  %3292 = vmatpush1.bf16.msra.mxu0 %v2552
  %3293 = vmatprep.subr.bf16.mxu0 %v2561
  %3294 = vmatpush1.bf16.msra.mxu0 %v2560
  %3295 = vmatprep.subr.bf16.mxu0 %v2569
  %3296 = vmatpush1.bf16.msra.mxu0 %v2568
  %3297 = vmatprep.subr.bf16.mxu0 %v2577
  %3298 = vmatpush1.bf16.msra.mxu0 %v2576
  %3299 = vmatprep.subr.bf16.mxu0 %v2585
  %3300 = vmatpush1.bf16.msra.mxu0 %v2584
  %3301 = vmatprep.subr.bf16.mxu0 %v2593
  %3302 = vmatpush1.bf16.msra.mxu0 %v2592
  %3303 = vmatprep.subr.bf16.mxu0 %v2601
  %3304 = vmatpush1.bf16.msra.mxu0 %v2600
  %3305 = vmatprep.subr.bf16.mxu0 %v2609
  %3306 = vmatpush1.bf16.msra.mxu0 %v2608
  %3307 = vmatprep.subr.bf16.mxu0 %v2617
  %3308 = vmatpush1.bf16.msra.mxu0 %v2616
  %3309 = vmatprep.subr.bf16.mxu0 %v2625
  %3310 = vmatpush1.bf16.msra.mxu0 %v2624
  %3311 = vmatprep.subr.bf16.mxu0 %v2633
  %3312 = vmatpush1.bf16.msra.mxu0 %v2632
  %3313 = vmatprep.subr.bf16.mxu0 %v2641
  %3314 = vmatpush1.bf16.msra.mxu0 %v2640
  %3315 = vmatprep.mubr.bf16.mxu0 %v591
  %3316 = vmatmul.mubr.bf16.gmra.mrb[0].mxu0 %v590
  %v3317 = vpop.f32.mrb[0].mxu0
  %v3318 = vadd.f32 %v3277, %v3317
  %v3319 = vpop.f32.mrb[0].mxu0
  %v3320 = vadd.f32 %v3279, %v3319
  %v3321 = vpop.f32.mrb[0].mxu0
  %v3322 = vpop.f32.mrb[0].mxu0
  %3323 = vdwg.mxu0
  %3324 = vmatprep.subr.bf16.mxu0 %v2139
  %3325 = vmatpush1.bf16.msra.mxu0 %v2138
  %3326 = vmatprep.subr.bf16.mxu0 %v2147
  %3327 = vmatpush1.bf16.msra.mxu0 %v2146
  %3328 = vmatprep.subr.bf16.mxu0 %v2155
  %3329 = vmatpush1.bf16.msra.mxu0 %v2154
  %3330 = vmatprep.subr.bf16.mxu0 %v2163
  %3331 = vmatpush1.bf16.msra.mxu0 %v2162
  %3332 = vmatprep.subr.bf16.mxu0 %v2171
  %3333 = vmatpush1.bf16.msra.mxu0 %v2170
  %3334 = vmatprep.subr.bf16.mxu0 %v2179
  %3335 = vmatpush1.bf16.msra.mxu0 %v2178
  %3336 = vmatprep.subr.bf16.mxu0 %v2187
  %3337 = vmatpush1.bf16.msra.mxu0 %v2186
  %3338 = vmatprep.subr.bf16.mxu0 %v2195
  %3339 = vmatpush1.bf16.msra.mxu0 %v2194
  %3340 = vmatprep.subr.bf16.mxu0 %v2203
  %3341 = vmatpush1.bf16.msra.mxu0 %v2202
  %3342 = vmatprep.subr.bf16.mxu0 %v2211
  %3343 = vmatpush1.bf16.msra.mxu0 %v2210
  %3344 = vmatprep.subr.bf16.mxu0 %v2219
  %3345 = vmatpush1.bf16.msra.mxu0 %v2218
  %3346 = vmatprep.subr.bf16.mxu0 %v2227
  %3347 = vmatpush1.bf16.msra.mxu0 %v2226
  %3348 = vmatprep.subr.bf16.mxu0 %v2235
  %3349 = vmatpush1.bf16.msra.mxu0 %v2234
  %3350 = vmatprep.subr.bf16.mxu0 %v2243
  %3351 = vmatpush1.bf16.msra.mxu0 %v2242
  %3352 = vmatprep.subr.bf16.mxu0 %v2251
  %3353 = vmatpush1.bf16.msra.mxu0 %v2250
  %3354 = vmatprep.subr.bf16.mxu0 %v2259
  %3355 = vmatpush1.bf16.msra.mxu0 %v2258
  %3356 = vmatprep.mubr.bf16.mxu0 %v585
  %3357 = vmatmul.mubr.bf16.gmra.mrb[0].mxu0 %v584
  %v3358 = vpop.f32.mrb[0].mxu0
  %v3359 = vadd.f32 %v543, %v3358
  %v3360 = vpop.f32.mrb[0].mxu0
  %v3361 = vadd.f32 %v547, %v3360
  %v3362 = vpop.f32.mrb[0].mxu0
  %v3363 = vpop.f32.mrb[0].mxu0
  %3364 = vdwg.mxu0
  %3365 = vmatprep.subr.bf16.mxu0 %v2267
  %3366 = vmatpush1.bf16.msra.mxu0 %v2266
  %3367 = vmatprep.subr.bf16.mxu0 %v2275
  %3368 = vmatpush1.bf16.msra.mxu0 %v2274
  %3369 = vmatprep.subr.bf16.mxu0 %v2283
  %3370 = vmatpush1.bf16.msra.mxu0 %v2282
  %3371 = vmatprep.subr.bf16.mxu0 %v2291
  %3372 = vmatpush1.bf16.msra.mxu0 %v2290
  %3373 = vmatprep.subr.bf16.mxu0 %v2299
  %3374 = vmatpush1.bf16.msra.mxu0 %v2298
  %3375 = vmatprep.subr.bf16.mxu0 %v2307
  %3376 = vmatpush1.bf16.msra.mxu0 %v2306
  %3377 = vmatprep.subr.bf16.mxu0 %v2315
  %3378 = vmatpush1.bf16.msra.mxu0 %v2314
  %3379 = vmatprep.subr.bf16.mxu0 %v2323
  %3380 = vmatpush1.bf16.msra.mxu0 %v2322
  %3381 = vmatprep.subr.bf16.mxu0 %v2331
  %3382 = vmatpush1.bf16.msra.mxu0 %v2330
  %3383 = vmatprep.subr.bf16.mxu0 %v2339
  %3384 = vmatpush1.bf16.msra.mxu0 %v2338
  %3385 = vmatprep.subr.bf16.mxu0 %v2347
  %3386 = vmatpush1.bf16.msra.mxu0 %v2346
  %3387 = vmatprep.subr.bf16.mxu0 %v2355
  %3388 = vmatpush1.bf16.msra.mxu0 %v2354
  %3389 = vmatprep.subr.bf16.mxu0 %v2363
  %3390 = vmatpush1.bf16.msra.mxu0 %v2362
  %3391 = vmatprep.subr.bf16.mxu0 %v2371
  %3392 = vmatpush1.bf16.msra.mxu0 %v2370
  %3393 = vmatprep.subr.bf16.mxu0 %v2379
  %3394 = vmatpush1.bf16.msra.mxu0 %v2378
  %3395 = vmatprep.subr.bf16.mxu0 %v2387
  %3396 = vmatpush1.bf16.msra.mxu0 %v2386
  %3397 = vmatprep.mubr.bf16.mxu0 %v587
  %3398 = vmatmul.mubr.bf16.gmra.mrb[0].mxu0 %v586
  %v3399 = vpop.f32.mrb[0].mxu0
  %v3400 = vadd.f32 %v3359, %v3399
  %v3401 = vpop.f32.mrb[0].mxu0
  %v3402 = vadd.f32 %v3361, %v3401
  %v3403 = vpop.f32.mrb[0].mxu0
  %v3404 = vpop.f32.mrb[0].mxu0
  %3405 = vdwg.mxu0
  %3406 = vmatprep.subr.bf16.mxu0 %v2395
  %3407 = vmatpush1.bf16.msra.mxu0 %v2394
  %3408 = vmatprep.subr.bf16.mxu0 %v2403
  %3409 = vmatpush1.bf16.msra.mxu0 %v2402
  %3410 = vmatprep.subr.bf16.mxu0 %v2411
  %3411 = vmatpush1.bf16.msra.mxu0 %v2410
  %3412 = vmatprep.subr.bf16.mxu0 %v2419
  %3413 = vmatpush1.bf16.msra.mxu0 %v2418
  %3414 = vmatprep.subr.bf16.mxu0 %v2427
  %3415 = vmatpush1.bf16.msra.mxu0 %v2426
  %3416 = vmatprep.subr.bf16.mxu0 %v2435
  %3417 = vmatpush1.bf16.msra.mxu0 %v2434
  %3418 = vmatprep.subr.bf16.mxu0 %v2443
  %3419 = vmatpush1.bf16.msra.mxu0 %v2442
  %3420 = vmatprep.subr.bf16.mxu0 %v2451
  %3421 = vmatpush1.bf16.msra.mxu0 %v2450
  %3422 = vmatprep.subr.bf16.mxu0 %v2459
  %3423 = vmatpush1.bf16.msra.mxu0 %v2458
  %3424 = vmatprep.subr.bf16.mxu0 %v2467
  %3425 = vmatpush1.bf16.msra.mxu0 %v2466
  %3426 = vmatprep.subr.bf16.mxu0 %v2475
  %3427 = vmatpush1.bf16.msra.mxu0 %v2474
  %3428 = vmatprep.subr.bf16.mxu0 %v2483
  %3429 = vmatpush1.bf16.msra.mxu0 %v2482
  %3430 = vmatprep.subr.bf16.mxu0 %v2491
  %3431 = vmatpush1.bf16.msra.mxu0 %v2490
  %3432 = vmatprep.subr.bf16.mxu0 %v2499
  %3433 = vmatpush1.bf16.msra.mxu0 %v2498
  %3434 = vmatprep.subr.bf16.mxu0 %v2507
  %3435 = vmatpush1.bf16.msra.mxu0 %v2506
  %3436 = vmatprep.subr.bf16.mxu0 %v2515
  %3437 = vmatpush1.bf16.msra.mxu0 %v2514
  %3438 = vmatprep.mubr.bf16.mxu0 %v589
  %3439 = vmatmul.mubr.bf16.gmra.mrb[0].mxu0 %v588
  %v3440 = vpop.f32.mrb[0].mxu0
  %v3441 = vadd.f32 %v3400, %v3440
  %v3442 = vpop.f32.mrb[0].mxu0
  %v3443 = vadd.f32 %v3402, %v3442
  %v3444 = vpop.f32.mrb[0].mxu0
  %v3445 = vpop.f32.mrb[0].mxu0
  %3446 = vdwg.mxu0
  %3447 = vmatprep.subr.bf16.mxu0 %v2523
  %3448 = vmatpush1.bf16.msra.mxu0 %v2522
  %3449 = vmatprep.subr.bf16.mxu0 %v2531
  %3450 = vmatpush1.bf16.msra.mxu0 %v2530
  %3451 = vmatprep.subr.bf16.mxu0 %v2539
  %3452 = vmatpush1.bf16.msra.mxu0 %v2538
  %3453 = vmatprep.subr.bf16.mxu0 %v2547
  %3454 = vmatpush1.bf16.msra.mxu0 %v2546
  %3455 = vmatprep.subr.bf16.mxu0 %v2555
  %3456 = vmatpush1.bf16.msra.mxu0 %v2554
  %3457 = vmatprep.subr.bf16.mxu0 %v2563
  %3458 = vmatpush1.bf16.msra.mxu0 %v2562
  %3459 = vmatprep.subr.bf16.mxu0 %v2571
  %3460 = vmatpush1.bf16.msra.mxu0 %v2570
  %3461 = vmatprep.subr.bf16.mxu0 %v2579
  %3462 = vmatpush1.bf16.msra.mxu0 %v2578
  %3463 = vmatprep.subr.bf16.mxu0 %v2587
  %3464 = vmatpush1.bf16.msra.mxu0 %v2586
  %3465 = vmatprep.subr.bf16.mxu0 %v2595
  %3466 = vmatpush1.bf16.msra.mxu0 %v2594
  %3467 = vmatprep.subr.bf16.mxu0 %v2603
  %3468 = vmatpush1.bf16.msra.mxu0 %v2602
  %3469 = vmatprep.subr.bf16.mxu0 %v2611
  %3470 = vmatpush1.bf16.msra.mxu0 %v2610
  %3471 = vmatprep.subr.bf16.mxu0 %v2619
  %3472 = vmatpush1.bf16.msra.mxu0 %v2618
  %3473 = vmatprep.subr.bf16.mxu0 %v2627
  %3474 = vmatpush1.bf16.msra.mxu0 %v2626
  %3475 = vmatprep.subr.bf16.mxu0 %v2635
  %3476 = vmatpush1.bf16.msra.mxu0 %v2634
  %3477 = vmatprep.subr.bf16.mxu0 %v2643
  %3478 = vmatpush1.bf16.msra.mxu0 %v2642
  %3479 = vmatprep.mubr.bf16.mxu0 %v591
  %3480 = vmatmul.mubr.bf16.gmra.mrb[0].mxu0 %v590
  %v3481 = vpop.f32.mrb[0].mxu0
  %v3482 = vadd.f32 %v3441, %v3481
  %v3483 = vpop.f32.mrb[0].mxu0
  %v3484 = vadd.f32 %v3443, %v3483
  %v3485 = vpop.f32.mrb[0].mxu0
  %v3486 = vpop.f32.mrb[0].mxu0
  %3487 = vdwg.mxu0
  %3488 = vmatprep.subr.bf16.mxu0 %v2141
  %3489 = vmatpush1.bf16.msra.mxu0 %v2140
  %3490 = vmatprep.subr.bf16.mxu0 %v2149
  %3491 = vmatpush1.bf16.msra.mxu0 %v2148
  %3492 = vmatprep.subr.bf16.mxu0 %v2157
  %3493 = vmatpush1.bf16.msra.mxu0 %v2156
  %3494 = vmatprep.subr.bf16.mxu0 %v2165
  %3495 = vmatpush1.bf16.msra.mxu0 %v2164
  %3496 = vmatprep.subr.bf16.mxu0 %v2173
  %3497 = vmatpush1.bf16.msra.mxu0 %v2172
  %3498 = vmatprep.subr.bf16.mxu0 %v2181
  %3499 = vmatpush1.bf16.msra.mxu0 %v2180
  %3500 = vmatprep.subr.bf16.mxu0 %v2189
  %3501 = vmatpush1.bf16.msra.mxu0 %v2188
  %3502 = vmatprep.subr.bf16.mxu0 %v2197
  %3503 = vmatpush1.bf16.msra.mxu0 %v2196
  %3504 = vmatprep.subr.bf16.mxu0 %v2205
  %3505 = vmatpush1.bf16.msra.mxu0 %v2204
  %3506 = vmatprep.subr.bf16.mxu0 %v2213
  %3507 = vmatpush1.bf16.msra.mxu0 %v2212
  %3508 = vmatprep.subr.bf16.mxu0 %v2221
  %3509 = vmatpush1.bf16.msra.mxu0 %v2220
  %3510 = vmatprep.subr.bf16.mxu0 %v2229
  %3511 = vmatpush1.bf16.msra.mxu0 %v2228
  %3512 = vmatprep.subr.bf16.mxu0 %v2237
  %3513 = vmatpush1.bf16.msra.mxu0 %v2236
  %3514 = vmatprep.subr.bf16.mxu0 %v2245
  %3515 = vmatpush1.bf16.msra.mxu0 %v2244
  %3516 = vmatprep.subr.bf16.mxu0 %v2253
  %3517 = vmatpush1.bf16.msra.mxu0 %v2252
  %3518 = vmatprep.subr.bf16.mxu0 %v2261
  %3519 = vmatpush1.bf16.msra.mxu0 %v2260
  %3520 = vmatprep.mubr.bf16.mxu0 %v585
  %3521 = vmatmul.mubr.bf16.gmra.mrb[0].mxu0 %v584
  %v3522 = vpop.f32.mrb[0].mxu0
  %v3523 = vadd.f32 %v551, %v3522
  %v3524 = vpop.f32.mrb[0].mxu0
  %v3525 = vadd.f32 %v555, %v3524
  %v3526 = vpop.f32.mrb[0].mxu0
  %v3527 = vpop.f32.mrb[0].mxu0
  %3528 = vdwg.mxu0
  %3529 = vmatprep.subr.bf16.mxu0 %v2269
  %3530 = vmatpush1.bf16.msra.mxu0 %v2268
  %3531 = vmatprep.subr.bf16.mxu0 %v2277
  %3532 = vmatpush1.bf16.msra.mxu0 %v2276
  %3533 = vmatprep.subr.bf16.mxu0 %v2285
  %3534 = vmatpush1.bf16.msra.mxu0 %v2284
  %3535 = vmatprep.subr.bf16.mxu0 %v2293
  %3536 = vmatpush1.bf16.msra.mxu0 %v2292
  %3537 = vmatprep.subr.bf16.mxu0 %v2301
  %3538 = vmatpush1.bf16.msra.mxu0 %v2300
  %3539 = vmatprep.subr.bf16.mxu0 %v2309
  %3540 = vmatpush1.bf16.msra.mxu0 %v2308
  %3541 = vmatprep.subr.bf16.mxu0 %v2317
  %3542 = vmatpush1.bf16.msra.mxu0 %v2316
  %3543 = vmatprep.subr.bf16.mxu0 %v2325
  %3544 = vmatpush1.bf16.msra.mxu0 %v2324
  %3545 = vmatprep.subr.bf16.mxu0 %v2333
  %3546 = vmatpush1.bf16.msra.mxu0 %v2332
  %3547 = vmatprep.subr.bf16.mxu0 %v2341
  %3548 = vmatpush1.bf16.msra.mxu0 %v2340
  %3549 = vmatprep.subr.bf16.mxu0 %v2349
  %3550 = vmatpush1.bf16.msra.mxu0 %v2348
  %3551 = vmatprep.subr.bf16.mxu0 %v2357
  %3552 = vmatpush1.bf16.msra.mxu0 %v2356
  %3553 = vmatprep.subr.bf16.mxu0 %v2365
  %3554 = vmatpush1.bf16.msra.mxu0 %v2364
  %3555 = vmatprep.subr.bf16.mxu0 %v2373
  %3556 = vmatpush1.bf16.msra.mxu0 %v2372
  %3557 = vmatprep.subr.bf16.mxu0 %v2381
  %3558 = vmatpush1.bf16.msra.mxu0 %v2380
  %3559 = vmatprep.subr.bf16.mxu0 %v2389
  %3560 = vmatpush1.bf16.msra.mxu0 %v2388
  %3561 = vmatprep.mubr.bf16.mxu0 %v587
  %3562 = vmatmul.mubr.bf16.gmra.mrb[0].mxu0 %v586
  %v3563 = vpop.f32.mrb[0].mxu0
  %v3564 = vadd.f32 %v3523, %v3563
  %v3565 = vpop.f32.mrb[0].mxu0
  %v3566 = vadd.f32 %v3525, %v3565
  %v3567 = vpop.f32.mrb[0].mxu0
  %v3568 = vpop.f32.mrb[0].mxu0
  %3569 = vdwg.mxu0
  %3570 = vmatprep.subr.bf16.mxu0 %v2397
  %3571 = vmatpush1.bf16.msra.mxu0 %v2396
  %3572 = vmatprep.subr.bf16.mxu0 %v2405
  %3573 = vmatpush1.bf16.msra.mxu0 %v2404
  %3574 = vmatprep.subr.bf16.mxu0 %v2413
  %3575 = vmatpush1.bf16.msra.mxu0 %v2412
  %3576 = vmatprep.subr.bf16.mxu0 %v2421
  %3577 = vmatpush1.bf16.msra.mxu0 %v2420
  %3578 = vmatprep.subr.bf16.mxu0 %v2429
  %3579 = vmatpush1.bf16.msra.mxu0 %v2428
  %3580 = vmatprep.subr.bf16.mxu0 %v2437
  %3581 = vmatpush1.bf16.msra.mxu0 %v2436
  %3582 = vmatprep.subr.bf16.mxu0 %v2445
  %3583 = vmatpush1.bf16.msra.mxu0 %v2444
  %3584 = vmatprep.subr.bf16.mxu0 %v2453
  %3585 = vmatpush1.bf16.msra.mxu0 %v2452
  %3586 = vmatprep.subr.bf16.mxu0 %v2461
  %3587 = vmatpush1.bf16.msra.mxu0 %v2460
  %3588 = vmatprep.subr.bf16.mxu0 %v2469
  %3589 = vmatpush1.bf16.msra.mxu0 %v2468
  %3590 = vmatprep.subr.bf16.mxu0 %v2477
  %3591 = vmatpush1.bf16.msra.mxu0 %v2476
  %3592 = vmatprep.subr.bf16.mxu0 %v2485
  %3593 = vmatpush1.bf16.msra.mxu0 %v2484
  %3594 = vmatprep.subr.bf16.mxu0 %v2493
  %3595 = vmatpush1.bf16.msra.mxu0 %v2492
  %3596 = vmatprep.subr.bf16.mxu0 %v2501
  %3597 = vmatpush1.bf16.msra.mxu0 %v2500
  %3598 = vmatprep.subr.bf16.mxu0 %v2509
  %3599 = vmatpush1.bf16.msra.mxu0 %v2508
  %3600 = vmatprep.subr.bf16.mxu0 %v2517
  %3601 = vmatpush1.bf16.msra.mxu0 %v2516
  %3602 = vmatprep.mubr.bf16.mxu0 %v589
  %3603 = vmatmul.mubr.bf16.gmra.mrb[0].mxu0 %v588
  %v3604 = vpop.f32.mrb[0].mxu0
  %v3605 = vadd.f32 %v3564, %v3604
  %v3606 = vpop.f32.mrb[0].mxu0
  %v3607 = vadd.f32 %v3566, %v3606
  %v3608 = vpop.f32.mrb[0].mxu0
  %v3609 = vpop.f32.mrb[0].mxu0
  %3610 = vdwg.mxu0
  %3611 = vmatprep.subr.bf16.mxu0 %v2525
  %3612 = vmatpush1.bf16.msra.mxu0 %v2524
  %3613 = vmatprep.subr.bf16.mxu0 %v2533
  %3614 = vmatpush1.bf16.msra.mxu0 %v2532
  %3615 = vmatprep.subr.bf16.mxu0 %v2541
  %3616 = vmatpush1.bf16.msra.mxu0 %v2540
  %3617 = vmatprep.subr.bf16.mxu0 %v2549
  %3618 = vmatpush1.bf16.msra.mxu0 %v2548
  %3619 = vmatprep.subr.bf16.mxu0 %v2557
  %3620 = vmatpush1.bf16.msra.mxu0 %v2556
  %3621 = vmatprep.subr.bf16.mxu0 %v2565
  %3622 = vmatpush1.bf16.msra.mxu0 %v2564
  %3623 = vmatprep.subr.bf16.mxu0 %v2573
  %3624 = vmatpush1.bf16.msra.mxu0 %v2572
  %3625 = vmatprep.subr.bf16.mxu0 %v2581
  %3626 = vmatpush1.bf16.msra.mxu0 %v2580
  %3627 = vmatprep.subr.bf16.mxu0 %v2589
  %3628 = vmatpush1.bf16.msra.mxu0 %v2588
  %3629 = vmatprep.subr.bf16.mxu0 %v2597
  %3630 = vmatpush1.bf16.msra.mxu0 %v2596
  %3631 = vmatprep.subr.bf16.mxu0 %v2605
  %3632 = vmatpush1.bf16.msra.mxu0 %v2604
  %3633 = vmatprep.subr.bf16.mxu0 %v2613
  %3634 = vmatpush1.bf16.msra.mxu0 %v2612
  %3635 = vmatprep.subr.bf16.mxu0 %v2621
  %3636 = vmatpush1.bf16.msra.mxu0 %v2620
  %3637 = vmatprep.subr.bf16.mxu0 %v2629
  %3638 = vmatpush1.bf16.msra.mxu0 %v2628
  %3639 = vmatprep.subr.bf16.mxu0 %v2637
  %3640 = vmatpush1.bf16.msra.mxu0 %v2636
  %3641 = vmatprep.subr.bf16.mxu0 %v2645
  %3642 = vmatpush1.bf16.msra.mxu0 %v2644
  %3643 = vmatprep.mubr.bf16.mxu0 %v591
  %3644 = vmatmul.mubr.bf16.gmra.mrb[0].mxu0 %v590
  %v3645 = vpop.f32.mrb[0].mxu0
  %v3646 = vadd.f32 %v3605, %v3645
  %v3647 = vpop.f32.mrb[0].mxu0
  %v3648 = vadd.f32 %v3607, %v3647
  %v3649 = vpop.f32.mrb[0].mxu0
  %v3650 = vpop.f32.mrb[0].mxu0
  %3651 = vdwg.mxu0
  %3652 = vmatprep.subr.bf16.mxu0 %v2143
  %3653 = vmatpush1.bf16.msra.mxu0 %v2142
  %3654 = vmatprep.subr.bf16.mxu0 %v2151
  %3655 = vmatpush1.bf16.msra.mxu0 %v2150
  %3656 = vmatprep.subr.bf16.mxu0 %v2159
  %3657 = vmatpush1.bf16.msra.mxu0 %v2158
  %3658 = vmatprep.subr.bf16.mxu0 %v2167
  %3659 = vmatpush1.bf16.msra.mxu0 %v2166
  %3660 = vmatprep.subr.bf16.mxu0 %v2175
  %3661 = vmatpush1.bf16.msra.mxu0 %v2174
  %3662 = vmatprep.subr.bf16.mxu0 %v2183
  %3663 = vmatpush1.bf16.msra.mxu0 %v2182
  %3664 = vmatprep.subr.bf16.mxu0 %v2191
  %3665 = vmatpush1.bf16.msra.mxu0 %v2190
  %3666 = vmatprep.subr.bf16.mxu0 %v2199
  %3667 = vmatpush1.bf16.msra.mxu0 %v2198
  %3668 = vmatprep.subr.bf16.mxu0 %v2207
  %3669 = vmatpush1.bf16.msra.mxu0 %v2206
  %3670 = vmatprep.subr.bf16.mxu0 %v2215
  %3671 = vmatpush1.bf16.msra.mxu0 %v2214
  %3672 = vmatprep.subr.bf16.mxu0 %v2223
  %3673 = vmatpush1.bf16.msra.mxu0 %v2222
  %3674 = vmatprep.subr.bf16.mxu0 %v2231
  %3675 = vmatpush1.bf16.msra.mxu0 %v2230
  %3676 = vmatprep.subr.bf16.mxu0 %v2239
  %3677 = vmatpush1.bf16.msra.mxu0 %v2238
  %3678 = vmatprep.subr.bf16.mxu0 %v2247
  %3679 = vmatpush1.bf16.msra.mxu0 %v2246
  %3680 = vmatprep.subr.bf16.mxu0 %v2255
  %3681 = vmatpush1.bf16.msra.mxu0 %v2254
  %3682 = vmatprep.subr.bf16.mxu0 %v2263
  %3683 = vmatpush1.bf16.msra.mxu0 %v2262
  %3684 = vmatprep.mubr.bf16.mxu0 %v585
  %3685 = vmatmul.mubr.bf16.gmra.mrb[0].mxu0 %v584
  %v3686 = vpop.f32.mrb[0].mxu0
  %v3687 = vadd.f32 %v559, %v3686
  %v3688 = vpop.f32.mrb[0].mxu0
  %v3689 = vadd.f32 %v563, %v3688
  %v3690 = vpop.f32.mrb[0].mxu0
  %v3691 = vpop.f32.mrb[0].mxu0
  %3692 = vdwg.mxu0
  %3693 = vmatprep.subr.bf16.mxu0 %v2271
  %3694 = vmatpush1.bf16.msra.mxu0 %v2270
  %3695 = vmatprep.subr.bf16.mxu0 %v2279
  %3696 = vmatpush1.bf16.msra.mxu0 %v2278
  %3697 = vmatprep.subr.bf16.mxu0 %v2287
  %3698 = vmatpush1.bf16.msra.mxu0 %v2286
  %3699 = vmatprep.subr.bf16.mxu0 %v2295
  %3700 = vmatpush1.bf16.msra.mxu0 %v2294
  %3701 = vmatprep.subr.bf16.mxu0 %v2303
  %3702 = vmatpush1.bf16.msra.mxu0 %v2302
  %3703 = vmatprep.subr.bf16.mxu0 %v2311
  %3704 = vmatpush1.bf16.msra.mxu0 %v2310
  %3705 = vmatprep.subr.bf16.mxu0 %v2319
  %3706 = vmatpush1.bf16.msra.mxu0 %v2318
  %3707 = vmatprep.subr.bf16.mxu0 %v2327
  %3708 = vmatpush1.bf16.msra.mxu0 %v2326
  %3709 = vmatprep.subr.bf16.mxu0 %v2335
  %3710 = vmatpush1.bf16.msra.mxu0 %v2334
  %3711 = vmatprep.subr.bf16.mxu0 %v2343
  %3712 = vmatpush1.bf16.msra.mxu0 %v2342
  %3713 = vmatprep.subr.bf16.mxu0 %v2351
  %3714 = vmatpush1.bf16.msra.mxu0 %v2350
  %3715 = vmatprep.subr.bf16.mxu0 %v2359
  %3716 = vmatpush1.bf16.msra.mxu0 %v2358
  %3717 = vmatprep.subr.bf16.mxu0 %v2367
  %3718 = vmatpush1.bf16.msra.mxu0 %v2366
  %3719 = vmatprep.subr.bf16.mxu0 %v2375
  %3720 = vmatpush1.bf16.msra.mxu0 %v2374
  %3721 = vmatprep.subr.bf16.mxu0 %v2383
  %3722 = vmatpush1.bf16.msra.mxu0 %v2382
  %3723 = vmatprep.subr.bf16.mxu0 %v2391
  %3724 = vmatpush1.bf16.msra.mxu0 %v2390
  %3725 = vmatprep.mubr.bf16.mxu0 %v587
  %3726 = vmatmul.mubr.bf16.gmra.mrb[0].mxu0 %v586
  %v3727 = vpop.f32.mrb[0].mxu0
  %v3728 = vadd.f32 %v3687, %v3727
  %v3729 = vpop.f32.mrb[0].mxu0
  %v3730 = vadd.f32 %v3689, %v3729
  %v3731 = vpop.f32.mrb[0].mxu0
  %v3732 = vpop.f32.mrb[0].mxu0
  %3733 = vdwg.mxu0
  %3734 = vmatprep.subr.bf16.mxu0 %v2399
  %3735 = vmatpush1.bf16.msra.mxu0 %v2398
  %3736 = vmatprep.subr.bf16.mxu0 %v2407
  %3737 = vmatpush1.bf16.msra.mxu0 %v2406
  %3738 = vmatprep.subr.bf16.mxu0 %v2415
  %3739 = vmatpush1.bf16.msra.mxu0 %v2414
  %3740 = vmatprep.subr.bf16.mxu0 %v2423
  %3741 = vmatpush1.bf16.msra.mxu0 %v2422
  %3742 = vmatprep.subr.bf16.mxu0 %v2431
  %3743 = vmatpush1.bf16.msra.mxu0 %v2430
  %3744 = vmatprep.subr.bf16.mxu0 %v2439
  %3745 = vmatpush1.bf16.msra.mxu0 %v2438
  %3746 = vmatprep.subr.bf16.mxu0 %v2447
  %3747 = vmatpush1.bf16.msra.mxu0 %v2446
  %3748 = vmatprep.subr.bf16.mxu0 %v2455
  %3749 = vmatpush1.bf16.msra.mxu0 %v2454
  %3750 = vmatprep.subr.bf16.mxu0 %v2463
  %3751 = vmatpush1.bf16.msra.mxu0 %v2462
  %3752 = vmatprep.subr.bf16.mxu0 %v2471
  %3753 = vmatpush1.bf16.msra.mxu0 %v2470
  %3754 = vmatprep.subr.bf16.mxu0 %v2479
  %3755 = vmatpush1.bf16.msra.mxu0 %v2478
  %3756 = vmatprep.subr.bf16.mxu0 %v2487
  %3757 = vmatpush1.bf16.msra.mxu0 %v2486
  %3758 = vmatprep.subr.bf16.mxu0 %v2495
  %3759 = vmatpush1.bf16.msra.mxu0 %v2494
  %3760 = vmatprep.subr.bf16.mxu0 %v2503
  %3761 = vmatpush1.bf16.msra.mxu0 %v2502
  %3762 = vmatprep.subr.bf16.mxu0 %v2511
  %3763 = vmatpush1.bf16.msra.mxu0 %v2510
  %3764 = vmatprep.subr.bf16.mxu0 %v2519
  %3765 = vmatpush1.bf16.msra.mxu0 %v2518
  %3766 = vmatprep.mubr.bf16.mxu0 %v589
  %3767 = vmatmul.mubr.bf16.gmra.mrb[0].mxu0 %v588
  %v3768 = vpop.f32.mrb[0].mxu0
  %v3769 = vadd.f32 %v3728, %v3768
  %v3770 = vpop.f32.mrb[0].mxu0
  %v3771 = vadd.f32 %v3730, %v3770
  %v3772 = vpop.f32.mrb[0].mxu0
  %v3773 = vpop.f32.mrb[0].mxu0
  %3774 = vdwg.mxu0
  %3775 = vmatprep.subr.bf16.mxu0 %v2527
  %3776 = vmatpush1.bf16.msra.mxu0 %v2526
  %3777 = vmatprep.subr.bf16.mxu0 %v2535
  %3778 = vmatpush1.bf16.msra.mxu0 %v2534
  %3779 = vmatprep.subr.bf16.mxu0 %v2543
  %3780 = vmatpush1.bf16.msra.mxu0 %v2542
  %3781 = vmatprep.subr.bf16.mxu0 %v2551
  %3782 = vmatpush1.bf16.msra.mxu0 %v2550
  %3783 = vmatprep.subr.bf16.mxu0 %v2559
  %3784 = vmatpush1.bf16.msra.mxu0 %v2558
  %3785 = vmatprep.subr.bf16.mxu0 %v2567
  %3786 = vmatpush1.bf16.msra.mxu0 %v2566
  %3787 = vmatprep.subr.bf16.mxu0 %v2575
  %3788 = vmatpush1.bf16.msra.mxu0 %v2574
  %3789 = vmatprep.subr.bf16.mxu0 %v2583
  %3790 = vmatpush1.bf16.msra.mxu0 %v2582
  %3791 = vmatprep.subr.bf16.mxu0 %v2591
  %3792 = vmatpush1.bf16.msra.mxu0 %v2590
  %3793 = vmatprep.subr.bf16.mxu0 %v2599
  %3794 = vmatpush1.bf16.msra.mxu0 %v2598
  %3795 = vmatprep.subr.bf16.mxu0 %v2607
  %3796 = vmatpush1.bf16.msra.mxu0 %v2606
  %3797 = vmatprep.subr.bf16.mxu0 %v2615
  %3798 = vmatpush1.bf16.msra.mxu0 %v2614
  %3799 = vmatprep.subr.bf16.mxu0 %v2623
  %3800 = vmatpush1.bf16.msra.mxu0 %v2622
  %3801 = vmatprep.subr.bf16.mxu0 %v2631
  %3802 = vmatpush1.bf16.msra.mxu0 %v2630
  %3803 = vmatprep.subr.bf16.mxu0 %v2639
  %3804 = vmatpush1.bf16.msra.mxu0 %v2638
  %3805 = vmatprep.subr.bf16.mxu0 %v2647
  %3806 = vmatpush1.bf16.msra.mxu0 %v2646
  %3807 = vmatprep.mubr.bf16.mxu0 %v591
  %3808 = vmatmul.mubr.bf16.gmra.mrb[0].mxu0 %v590
  %v3809 = vpop.f32.mrb[0].mxu0
  %v3810 = vadd.f32 %v3769, %v3809
  %v3811 = vpop.f32.mrb[0].mxu0
  %v3812 = vadd.f32 %v3771, %v3811
  %v3813 = vpop.f32.mrb[0].mxu0
  %v3814 = vpop.f32.mrb[0].mxu0
  %3815 = vdwg.mxu0
  %v3816 = vpack.c.bf16 %v3318, %v3318
  %v3817 = vpack.c.bf16 %v3320, %v3320
  %v3818 = vpack.c.bf16 %v3482, %v3482
  %v3819 = vpack.c.bf16 %v3484, %v3484
  %v3820 = vpack.c.bf16 %v3646, %v3646
  %v3821 = vpack.c.bf16 %v3648, %v3648
  %v3822 = vpack.c.bf16 %v3810, %v3810
  %v3823 = vpack.c.bf16 %v3812, %v3812
  %v3832 = vunpack.c.l.b16 %v3816
  %v3833 = vunpack.c.l.b16 %v3817
  %v3834 = vunpack.c.l.b16 %v3818
  %v3835 = vunpack.c.l.b16 %v3819
  %v3836 = vunpack.c.l.b16 %v3820
  %v3837 = vunpack.c.l.b16 %v3821
  %v3838 = vunpack.c.l.b16 %v3822
  %v3839 = vunpack.c.l.b16 %v3823
  %v3840 = vpack.c.b16 %v3833, %v3832
  %v3841 = vpack.c.b16 %v3835, %v3834
  %v3842 = vpack.c.b16 %v3837, %v3836
  %v3843 = vpack.c.b16 %v3839, %v3838
  %3848 = vst [vmem:[%s3] sm:$0xff] %v3840
  %3849 = vst [vmem:[%s3 + $0x8] sm:$0xff] %v3841
  %3850 = vst [vmem:[%s3 + $0x10] sm:$0xff] %v3842
  %3851 = vst [vmem:[%s3 + $0x18] sm:$0xff] %v3843
  // Predicated region
  $region14: #{convnet_forward.6} parent=0 // pred_check
    _
  $region15: #{convnet_forward.6} parent=0 // pred_check_branch
    %3853 = sbr.rel (0) target = $region17
  $region16: #{convnet_forward.6} parent=0 // pred_region
    _
  $region17: #{convnet_forward.6} parent=0 // pred_fallthru
    _
  // Predicated region
  $region18: #{convnet_forward.6} parent=0 // pred_check
    _
  $region19: #{convnet_forward.6} parent=0 // pred_check_branch
    %3855 = sbr.rel (0) target = $region21
  $region20: #{convnet_forward.6} parent=0 // pred_region
    _
  $region21: #{convnet_forward.6} parent=0 // pred_fallthru
    _

</llo_original>
